<compile_context>
chip_gen: v5e
topology: v5e:2x2
jax: 0.10.0
libtpu: 0.0.40
codegen_flags: <defaults>
</compile_context>

<pallas_src>
import functools

import jax
import jax.numpy as jnp
from jax.experimental import pallas as pl
from jax.experimental.pallas import tpu as pltpu

# -------------------- small config consistent with the module ---------------
# (original: 32 layers, 32 heads x 128 dim, hidden 4096 -- scaled down here)
NUM_LAYERS = 2
BATCH      = 2
SEQ        = 8
MEM_SEQ    = 8
HIDDEN     = 64
NUM_HEADS  = 4
HEAD_DIM   = HIDDEN // NUM_HEADS          # 16
INTER      = 128                          # SwiGLU MLP intermediate size
VOCAB      = 96
VOCAB_PAD  = 128                          # lm_head output padded to a full lane width
ROPE_BASE  = 10000.0
RMS_EPS    = 1e-6


# ----------------------------- fused decoder kernel -------------------------
def _make_kernel(B, S, T, has_memory):
    BS = B * S
    f32, bf16 = jnp.float32, jnp.bfloat16
    D, H, NH = HEAD_DIM, HIDDEN, NUM_HEADS
    scale = 1.0 / (D ** 0.5)

    def kernel(*refs):
        if has_memory:
            (h_ref, mem_ref, cos_ref, sin_ref, rot_ref,
             ln1_ref, ln2_ref, wqkv_ref, wo_ref, xwqkv_ref, xwo_ref,
             wgu_ref, wd_ref, norm_ref, lmhead_ref,
             o_ref, attn_ref) = refs
        else:
            (h_ref, cos_ref, sin_ref, rot_ref,
             ln1_ref, ln2_ref, wqkv_ref, wo_ref,
             wgu_ref, wd_ref, norm_ref, lmhead_ref,
             o_ref, attn_ref) = refs
            mem_ref = xwqkv_ref = xwo_ref = None

        def rms(x, w):
            # RMSNorm over the lane axis; f32 elementwise (v5e has no bf16 VPU/EUP).
            var = jnp.mean(x * x, axis=-1, keepdims=True)
            return (x * jax.lax.rsqrt(var + RMS_EPS)) * w

        def mm(x, w):
            # bf16 MXU operands, f32 accumulation.
            return jnp.dot(x.astype(bf16), w.astype(bf16),
                           preferred_element_type=f32)

        def split_heads(x2d, L, base):
            # [B*L, ...] -> [NH*B, L, D], head-major along the (cheap) leading axis.
            return jnp.concatenate(
                [x2d[:, base + hd * D: base + (hd + 1) * D].reshape(B, L, D)
                 for hd in range(NH)], axis=0)

        def attention(q3, k3, v3, bias):
            # q3: [NH*B, S, D]; k3/v3: [NH*B, L, D]; one batched softmax chain.
            s = jnp.einsum('hqd,hkd->hqk', q3.astype(bf16), k3.astype(bf16),
                           preferred_element_type=f32) * scale
            s = s + bias[None]
            m = jnp.max(s, axis=-1, keepdims=True)
            p = jnp.exp(s - m)
            l = jnp.sum(p, axis=-1, keepdims=True)
            p = p * pl.reciprocal(l, approx=True)      # EUP slot; ~free
            o3 = jnp.einsum('hqk,hkd->hqd', p.astype(bf16), v3.astype(bf16),
                            preferred_element_type=f32)
            # merge heads via static lane-offset stores into VMEM scratch
            for hd in range(NH):
                attn_ref[:, hd * D:(hd + 1) * D] = (
                    o3[hd * B:(hd + 1) * B].reshape(BS, D))
            return attn_ref[...]

        def causal_bias(Sq, Tk, offset):
            # bottom-right aligned causal mask as an additive bias (hoisted).
            row = jax.lax.broadcasted_iota(jnp.int32, (Sq, Tk), 0)
            col = jax.lax.broadcasted_iota(jnp.int32, (Sq, Tk), 1)
            return jnp.where(col <= row + offset, 0.0, -1e30).astype(f32)

        # ----- hoisted invariants (computed once, reused by every layer) -----
        cos2h = cos_ref[...]                   # [B*S, 2H] lane-tiled cos
        sin2h = sin_ref[...]                   # [B*S, 2H] lane-tiled sin
        rot = rot_ref[...]                     # [2H, 2H] block-diag rotate_half (+/-1)
        bias_self = causal_bias(S, S, 0)
        bias_cross = causal_bias(S, T, T - S) if has_memory else None

        h = h_ref[...]                         # [B*S, H] f32 residual stream
        for layer in range(NUM_LAYERS):        # static unroll (weights in VMEM)
            ln1 = ln1_ref[layer]               # [1, H]
            ln2 = ln2_ref[layer]

            # ---------------- self attention (RoPE, causal) ----------------
            # TODO(synk): the torch module persists k_cache/v_cache across
            # calls; only a fresh single forward (no pre-existing cache) is
            # implemented here.
            x = rms(h, ln1)
            qkv = mm(x, wqkv_ref[layer])                    # [BS, 3H] fused q|k|v
            qk = qkv[:, :2 * H]
            # RoPE on q|k in one shot: x*cos + (x @ R)*sin, R = per-head
            # block-diagonal rotate-half with the sign folded in.
            qk = qk * cos2h + mm(qk, rot) * sin2h
            q3 = split_heads(qk, S, 0)
            k3 = split_heads(qk, S, H)
            v3 = split_heads(qkv, S, 2 * H)
            h = h + mm(attention(q3, k3, v3, bias_self), wo_ref[layer])

            # --------- cross attention over memory (causal, no RoPE) ---------
            if has_memory:
                x = rms(h, ln1)                # torch code reuses input_layernorm
                mem = mem_ref[layer]           # [B*T, H]
                # fused q|k|v projection: one matmul over row-stacked [x ; mem]
                proj = mm(jnp.concatenate([x, mem], axis=0), xwqkv_ref[layer])
                x_rows, m_rows = proj[:BS], proj[BS:]
                q3 = split_heads(x_rows, S, 0)
                k3 = split_heads(m_rows, T, H)
                v3 = split_heads(m_rows, T, 2 * H)
                h = h + mm(attention(q3, k3, v3, bias_cross), xwo_ref[layer])

            # ---------------- SwiGLU MLP (fused gate|up) ----------------
            x = rms(h, ln2)
            gu = mm(x, wgu_ref[layer])                      # [BS, 2*INTER]
            g, u = gu[:, :INTER], gu[:, INTER:]
            h = h + mm(g * jax.nn.sigmoid(g) * u, wd_ref[layer])

        # ------------- final norm + lm_head (lane-padded VOCAB) -------------
        h = rms(h, norm_ref[...])
        o_ref[...] = mm(h, lmhead_ref[...])    # [B*S, VOCAB_PAD], lane-dense store

    return kernel


# ------------------------------- JAX glue ------------------------------------
def rope_cos_sin(seq_len, dim, base=ROPE_BASE):
    inv_freq = 1.0 / (base ** (jnp.arange(0, dim, 2, dtype=jnp.float32) / dim))
    t = jnp.arange(seq_len, dtype=jnp.float32)
    freqs = jnp.outer(t, inv_freq)                     # [S, D/2]
    emb = jnp.concatenate([freqs, freqs], axis=-1)     # [S, D]
    return jnp.cos(emb), jnp.sin(emb)


def make_rotate_half_matrix(width, d):
    # Block-diagonal matrix R s.t. (x @ R) == rotate_half(x) per d-wide head
    # block (sign folded in). Entries are 0/+-1 -> exact in bf16.
    half = d // 2
    r = jnp.zeros((d, d), jnp.float32)
    r = r.at[half:, :half].set(-jnp.eye(half, dtype=jnp.float32))
    r = r.at[:half, half:].set(jnp.eye(half, dtype=jnp.float32))
    return jnp.kron(jnp.eye(width // d, dtype=jnp.float32), r).astype(jnp.bfloat16)


def _cost_estimate(B, S, T, has_memory, arrays):
    BS, BT = B * S, B * T
    H, D, NH, I = HIDDEN, HEAD_DIM, NUM_HEADS, INTER
    per_layer = (2 * BS * H * (3 * H)                 # qkv proj
                 + 2 * BS * (2 * H) * (2 * H)         # RoPE rotation matmul
                 + 2 * 2 * NH * B * S * S * D         # self-attn qk^T + pv
                 + 2 * BS * H * H                     # o proj
                 + 2 * BS * H * (2 * I) + 2 * BS * I * H)   # SwiGLU
    transc_layer = NH * B * S * S + BS * I
    if has_memory:
        per_layer += (2 * (BS + BT) * H * (3 * H)
                      + 2 * 2 * NH * B * S * T * D
                      + 2 * BS * H * H)
        transc_layer += NH * B * S * T
    flops = NUM_LAYERS * per_layer + 2 * BS * H * VOCAB_PAD
    transc = NUM_LAYERS * transc_layer
    bytes_acc = sum(int(a.size) * a.dtype.itemsize for a in arrays)
    bytes_acc += BS * VOCAB_PAD * 4
    return int(flops), int(transc), int(bytes_acc)


def decoder_forward(params, input_ids, memory=None):
    B, S = input_ids.shape
    BS = B * S
    h0 = params['embed'][input_ids].reshape(BS, HIDDEN).astype(jnp.float32)

    cos, sin = rope_cos_sin(S, HEAD_DIM)               # [S, D]
    # lane-tile cos/sin across the 2*NUM_HEADS head blocks of q|k and across batch
    cos2h = jnp.tile(cos, (B, 2 * NUM_HEADS))          # [B*S, 2*HIDDEN]
    sin2h = jnp.tile(sin, (B, 2 * NUM_HEADS))
    rot = make_rotate_half_matrix(2 * HIDDEN, HEAD_DIM)

    has_memory = memory is not None
    if has_memory:
        # torch: memory.chunk(NUM_LAYERS, dim=0) on [L*B, T, H]
        T = memory.shape[1]
        mem = memory.reshape(NUM_LAYERS, -1, HIDDEN).astype(jnp.float32)  # [L, B*T, H]
    else:
        T = S
        mem = None

    inputs = [h0]
    if has_memory:
        inputs.append(mem)                 # no dummy-memory DMA when memory is None
    inputs += [cos2h, sin2h, rot, params['ln1'], params['ln2'],
               params['wqkv'], params['wo']]
    if has_memory:
        inputs += [params['xwqkv'], params['xwo']]
    inputs += [params['wgu'], params['wd'], params['norm'], params['lm_head']]

    flops, transc, bytes_acc = _cost_estimate(B, S, T, has_memory, inputs)

    kernel = _make_kernel(B, S, T, has_memory)
    logits_pad = pl.pallas_call(
        kernel,
        out_shape=jax.ShapeDtypeStruct((BS, VOCAB_PAD), jnp.float32),
        scratch_shapes=[pltpu.VMEM((BS, HIDDEN), jnp.float32)],   # head-merge buffer
        compiler_params=pltpu.CompilerParams(vmem_limit_bytes=32 * 1024 * 1024),
        cost_estimate=pl.CostEstimate(flops=flops, transcendentals=transc,
                                      bytes_accessed=bytes_acc),
    )(*inputs)

    return logits_pad[:, :VOCAB].reshape(B, S, VOCAB).astype(jnp.float32)


# ------------------------- deterministic parameters --------------------------
def init_params(key):
    def nrm(k, shape, scale=0.02, dtype=jnp.float32):
        return (scale * jax.random.normal(k, shape, dtype=jnp.float32)).astype(dtype)

    keys = jax.random.split(key, 7)
    bf16 = jnp.bfloat16

    lm = nrm(keys[1], (HIDDEN, VOCAB))
    lm_pad = jnp.zeros((HIDDEN, VOCAB_PAD), jnp.float32).at[:, :VOCAB].set(lm)

    return {
        'embed':   nrm(keys[0], (VOCAB, HIDDEN)),
        'lm_head': lm_pad.astype(bf16),                               # [H, 128]
        'norm':    jnp.ones((1, HIDDEN), jnp.float32),
        'ln1':     jnp.ones((NUM_LAYERS, 1, HIDDEN), jnp.float32),    # input_layernorm
        'ln2':     jnp.ones((NUM_LAYERS, 1, HIDDEN), jnp.float32),    # post_attention_layernorm
        # self-attn q|k|v fused, o
        'wqkv':    nrm(keys[2], (NUM_LAYERS, HIDDEN, 3 * HIDDEN), dtype=bf16),
        'wo':      nrm(keys[3], (NUM_LAYERS, HIDDEN, HIDDEN), dtype=bf16),
        # CrossAttnQKVProj (trainable copies) fused + OProj(zero_init=True)
        'xwqkv':   nrm(keys[4], (NUM_LAYERS, HIDDEN, 3 * HIDDEN), dtype=bf16),
        'xwo':     jnp.zeros((NUM_LAYERS, HIDDEN, HIDDEN), bf16),
        # SwiGLU gate|up fused, down
        'wgu':     nrm(keys[5], (NUM_LAYERS, HIDDEN, 2 * INTER), dtype=bf16),
        'wd':      nrm(keys[6], (NUM_LAYERS, INTER, HIDDEN), dtype=bf16),
    }


# ----------------------------------- main ------------------------------------
if __name__ == "__main__":
    key = jax.random.PRNGKey(0)
    pkey, ikey, mkey = jax.random.split(key, 3)
    params = init_params(pkey)
    input_ids = jax.random.randint(ikey, (BATCH, SEQ), 0, VOCAB, dtype=jnp.int32)
    # memory layout [NUM_LAYERS * BATCH, MEM_SEQ, HIDDEN]; chunked along dim 0
    memory = 0.02 * jax.random.normal(
        mkey, (NUM_LAYERS * BATCH, MEM_SEQ, HIDDEN), dtype=jnp.float32)

    fwd = jax.jit(decoder_forward)
    logits = fwd(params, input_ids, memory)
    logits = jax.block_until_ready(logits)
    assert logits.shape == (BATCH, SEQ, VOCAB)
    assert logits.dtype == jnp.float32
    assert bool(jnp.all(jnp.isfinite(logits)))
    print("KERNEL_OK")
</pallas_src>

<mosaic_0001>
module attributes {stable_mosaic.version = 11 : i64} {
  func.func @kernel(%arg0: memref<16x64xf32, #tpu.memory_space<vmem>>, %arg1: memref<2x16x64xf32, #tpu.memory_space<vmem>>, %arg2: memref<16x128xf32, #tpu.memory_space<vmem>>, %arg3: memref<16x128xf32, #tpu.memory_space<vmem>>, %arg4: memref<128x128xbf16, #tpu.memory_space<vmem>>, %arg5: memref<2x1x64xf32, #tpu.memory_space<vmem>>, %arg6: memref<2x1x64xf32, #tpu.memory_space<vmem>>, %arg7: memref<2x64x192xbf16, #tpu.memory_space<vmem>>, %arg8: memref<2x64x64xbf16, #tpu.memory_space<vmem>>, %arg9: memref<2x64x192xbf16, #tpu.memory_space<vmem>>, %arg10: memref<2x64x64xbf16, #tpu.memory_space<vmem>>, %arg11: memref<2x64x256xbf16, #tpu.memory_space<vmem>>, %arg12: memref<2x128x64xbf16, #tpu.memory_space<vmem>>, %arg13: memref<1x64xf32, #tpu.memory_space<vmem>>, %arg14: memref<64x128xbf16, #tpu.memory_space<vmem>>, %arg15: memref<16x128xf32, #tpu.memory_space<vmem>>, %arg16: memref<16x64xf32, #tpu.memory_space<vmem>>) attributes {dimension_semantics = [], scalar_prefetch = 0 : i64, scratch_operands = 1 : i64, tpu.core_type = #tpu.core_type<tc>} {
    %c0 = arith.constant 0 : index
    %c0_0 = arith.constant 0 : index
    %0 = vector.load %arg2[%c0, %c0_0] : memref<16x128xf32, #tpu.memory_space<vmem>>, vector<16x128xf32>
    %c0_1 = arith.constant 0 : index
    %c0_2 = arith.constant 0 : index
    %1 = vector.load %arg3[%c0_1, %c0_2] : memref<16x128xf32, #tpu.memory_space<vmem>>, vector<16x128xf32>
    %c0_3 = arith.constant 0 : index
    %c0_4 = arith.constant 0 : index
    %2 = vector.load %arg4[%c0_3, %c0_4] : memref<128x128xbf16, #tpu.memory_space<vmem>>, vector<128x128xbf16>
    %3 = tpu.iota {dimensions = array<i32: 0>} : vector<8x8xi32>
    %4 = tpu.iota {dimensions = array<i32: 1>} : vector<8x8xi32>
    %c0_i32 = arith.constant 0 : i32
    %5 = vector.broadcast %c0_i32 : i32 to vector<8x8xi32>
    %6 = arith.addi %3, %5 : vector<8x8xi32>
    %7 = arith.cmpi sle, %4, %6 : vector<8x8xi32>
    %cst = arith.constant 0.000000e+00 : f32
    %cst_5 = arith.constant -1.000000e+30 : f32
    %8 = vector.broadcast %cst : f32 to vector<8x8xf32>
    %9 = vector.broadcast %cst_5 : f32 to vector<8x8xf32>
    %10 = arith.select %7, %8, %9 : vector<8x8xi1>, vector<8x8xf32>
    %11 = tpu.iota {dimensions = array<i32: 0>} : vector<8x8xi32>
    %12 = tpu.iota {dimensions = array<i32: 1>} : vector<8x8xi32>
    %c0_i32_6 = arith.constant 0 : i32
    %13 = vector.broadcast %c0_i32_6 : i32 to vector<8x8xi32>
    %14 = arith.addi %11, %13 : vector<8x8xi32>
    %15 = arith.cmpi sle, %12, %14 : vector<8x8xi32>
    %cst_7 = arith.constant 0.000000e+00 : f32
    %cst_8 = arith.constant -1.000000e+30 : f32
    %16 = vector.broadcast %cst_7 : f32 to vector<8x8xf32>
    %17 = vector.broadcast %cst_8 : f32 to vector<8x8xf32>
    %18 = arith.select %15, %16, %17 : vector<8x8xi1>, vector<8x8xf32>
    %c0_9 = arith.constant 0 : index
    %c0_10 = arith.constant 0 : index
    %19 = vector.load %arg0[%c0_9, %c0_10] : memref<16x64xf32, #tpu.memory_space<vmem>>, vector<16x64xf32>
    %c0_11 = arith.constant 0 : index
    %c0_12 = arith.constant 0 : index
    %c0_13 = arith.constant 0 : index
    %20 = vector.load %arg5[%c0_11, %c0_12, %c0_13] : memref<2x1x64xf32, #tpu.memory_space<vmem>>, vector<1x1x64xf32>
    %21 = vector.shape_cast %20 : vector<1x1x64xf32> to vector<1x64xf32>
    %c0_14 = arith.constant 0 : index
    %c0_15 = arith.constant 0 : index
    %c0_16 = arith.constant 0 : index
    %22 = vector.load %arg6[%c0_14, %c0_15, %c0_16] : memref<2x1x64xf32, #tpu.memory_space<vmem>>, vector<1x1x64xf32>
    %23 = vector.shape_cast %22 : vector<1x1x64xf32> to vector<1x64xf32>
    %24 = arith.mulf %19, %19 : vector<16x64xf32>
    %cst_17 = arith.constant dense<0.000000e+00> : vector<16xf32>
    %25 = vector.multi_reduction <add>, %24, %cst_17 [1] : vector<16x64xf32> to vector<16xf32>
    %26 = vector.shape_cast %25 : vector<16xf32> to vector<16x1xf32>
    %cst_18 = arith.constant 6.400000e+01 : f32
    %27 = vector.broadcast %cst_18 : f32 to vector<16x1xf32>
    %28 = arith.divf %26, %27 : vector<16x1xf32>
    %cst_19 = arith.constant 9.99999997E-7 : f32
    %29 = vector.broadcast %cst_19 : f32 to vector<16x1xf32>
    %30 = arith.addf %28, %29 : vector<16x1xf32>
    %31 = math.rsqrt %30 : vector<16x1xf32>
    %32 = vector.broadcast %31 : vector<16x1xf32> to vector<16x64xf32>
    %33 = arith.mulf %19, %32 : vector<16x64xf32>
    %34 = vector.broadcast %21 : vector<1x64xf32> to vector<16x64xf32>
    %35 = arith.mulf %33, %34 : vector<16x64xf32>
    %c0_20 = arith.constant 0 : index
    %c0_21 = arith.constant 0 : index
    %c0_22 = arith.constant 0 : index
    %36 = vector.load %arg7[%c0_20, %c0_21, %c0_22] : memref<2x64x192xbf16, #tpu.memory_space<vmem>>, vector<1x64x192xbf16>
    %37 = vector.shape_cast %36 : vector<1x64x192xbf16> to vector<64x192xbf16>
    %38 = arith.truncf %35 : vector<16x64xf32> to vector<16x64xbf16>
    %cst_23 = arith.constant dense<0.000000e+00> : vector<16x192xf32>
    %39 = tpu.matmul %38, %37, %cst_23 {dimension_numbers = #tpu.dot_dimension_numbers<[1], [0], [0], [1], [0, 0, 1, 1], [], []>} : vector<16x64xbf16>, vector<64x192xbf16>, vector<16x192xf32> -> vector<16x192xf32>
    %40 = vector.extract_strided_slice %39 {offsets = [0, 0], sizes = [16, 128], strides = [1, 1]} : vector<16x192xf32> to vector<16x128xf32>
    %41 = arith.mulf %40, %0 : vector<16x128xf32>
    %42 = arith.truncf %40 : vector<16x128xf32> to vector<16x128xbf16>
    %cst_24 = arith.constant dense<0.000000e+00> : vector<16x128xf32>
    %43 = tpu.matmul %42, %2, %cst_24 {dimension_numbers = #tpu.dot_dimension_numbers<[1], [0], [0], [1], [0, 0, 1, 1], [], []>} : vector<16x128xbf16>, vector<128x128xbf16>, vector<16x128xf32> -> vector<16x128xf32>
    %44 = arith.mulf %43, %1 : vector<16x128xf32>
    %45 = arith.addf %41, %44 : vector<16x128xf32>
    %46 = vector.extract_strided_slice %45 {offsets = [0, 0], sizes = [16, 16], strides = [1, 1]} : vector<16x128xf32> to vector<16x16xf32>
    %47 = vector.shape_cast %46 : vector<16x16xf32> to vector<2x8x16xf32>
    %48 = vector.extract_strided_slice %45 {offsets = [0, 16], sizes = [16, 16], strides = [1, 1]} : vector<16x128xf32> to vector<16x16xf32>
    %49 = vector.shape_cast %48 : vector<16x16xf32> to vector<2x8x16xf32>
    %50 = vector.extract_strided_slice %45 {offsets = [0, 32], sizes = [16, 16], strides = [1, 1]} : vector<16x128xf32> to vector<16x16xf32>
    %51 = vector.shape_cast %50 : vector<16x16xf32> to vector<2x8x16xf32>
    %52 = vector.extract_strided_slice %45 {offsets = [0, 48], sizes = [16, 16], strides = [1, 1]} : vector<16x128xf32> to vector<16x16xf32>
    %53 = vector.shape_cast %52 : vector<16x16xf32> to vector<2x8x16xf32>
    %54 = tpu.concatenate %47, %49, %51, %53 in 0 : vector<2x8x16xf32>, vector<2x8x16xf32>, vector<2x8x16xf32>, vector<2x8x16xf32> -> vector<8x8x16xf32>
    %55 = vector.extract_strided_slice %45 {offsets = [0, 64], sizes = [16, 16], strides = [1, 1]} : vector<16x128xf32> to vector<16x16xf32>
    %56 = vector.shape_cast %55 : vector<16x16xf32> to vector<2x8x16xf32>
    %57 = vector.extract_strided_slice %45 {offsets = [0, 80], sizes = [16, 16], strides = [1, 1]} : vector<16x128xf32> to vector<16x16xf32>
    %58 = vector.shape_cast %57 : vector<16x16xf32> to vector<2x8x16xf32>
    %59 = vector.extract_strided_slice %45 {offsets = [0, 96], sizes = [16, 16], strides = [1, 1]} : vector<16x128xf32> to vector<16x16xf32>
    %60 = vector.shape_cast %59 : vector<16x16xf32> to vector<2x8x16xf32>
    %61 = vector.extract_strided_slice %45 {offsets = [0, 112], sizes = [16, 16], strides = [1, 1]} : vector<16x128xf32> to vector<16x16xf32>
    %62 = vector.shape_cast %61 : vector<16x16xf32> to vector<2x8x16xf32>
    %63 = tpu.concatenate %56, %58, %60, %62 in 0 : vector<2x8x16xf32>, vector<2x8x16xf32>, vector<2x8x16xf32>, vector<2x8x16xf32> -> vector<8x8x16xf32>
    %64 = vector.extract_strided_slice %39 {offsets = [0, 128], sizes = [16, 16], strides = [1, 1]} : vector<16x192xf32> to vector<16x16xf32>
    %65 = vector.shape_cast %64 : vector<16x16xf32> to vector<2x8x16xf32>
    %66 = vector.extract_strided_slice %39 {offsets = [0, 144], sizes = [16, 16], strides = [1, 1]} : vector<16x192xf32> to vector<16x16xf32>
    %67 = vector.shape_cast %66 : vector<16x16xf32> to vector<2x8x16xf32>
    %68 = vector.extract_strided_slice %39 {offsets = [0, 160], sizes = [16, 16], strides = [1, 1]} : vector<16x192xf32> to vector<16x16xf32>
    %69 = vector.shape_cast %68 : vector<16x16xf32> to vector<2x8x16xf32>
    %70 = vector.extract_strided_slice %39 {offsets = [0, 176], sizes = [16, 16], strides = [1, 1]} : vector<16x192xf32> to vector<16x16xf32>
    %71 = vector.shape_cast %70 : vector<16x16xf32> to vector<2x8x16xf32>
    %72 = tpu.concatenate %65, %67, %69, %71 in 0 : vector<2x8x16xf32>, vector<2x8x16xf32>, vector<2x8x16xf32>, vector<2x8x16xf32> -> vector<8x8x16xf32>
    %73 = arith.truncf %54 : vector<8x8x16xf32> to vector<8x8x16xbf16>
    %74 = arith.truncf %63 : vector<8x8x16xf32> to vector<8x8x16xbf16>
    "tpu.trace_start"() <{level = 10 : i32, message = "hqd,hkd->hqk"}> : () -> ()
    %cst_25 = arith.constant dense<0.000000e+00> : vector<8x8x8xf32>
    %75 = tpu.matmul %73, %74, %cst_25 {dimension_numbers = #tpu.dot_dimension_numbers<[2], [2], [1], [1], [0, 0, 0, 1, 1, 1], [0], [0]>} : vector<8x8x16xbf16>, vector<8x8x16xbf16>, vector<8x8x8xf32> -> vector<8x8x8xf32>
    "tpu.trace_stop"() : () -> ()
    %cst_26 = arith.constant 2.500000e-01 : f32
    %76 = vector.broadcast %cst_26 : f32 to vector<8x8x8xf32>
    %77 = arith.mulf %75, %76 : vector<8x8x8xf32>
    %78 = vector.shape_cast %10 : vector<8x8xf32> to vector<1x8x8xf32>
    %79 = vector.broadcast %78 : vector<1x8x8xf32> to vector<8x8x8xf32>
    %80 = arith.addf %77, %79 : vector<8x8x8xf32>
    %cst_27 = arith.constant dense<0xFF800000> : vector<8x8xf32>
    %81 = vector.multi_reduction <maximumf>, %80, %cst_27 [2] : vector<8x8x8xf32> to vector<8x8xf32>
    %82 = vector.shape_cast %81 : vector<8x8xf32> to vector<8x8x1xf32>
    %83 = vector.broadcast %82 : vector<8x8x1xf32> to vector<8x8x8xf32>
    %84 = arith.subf %80, %83 : vector<8x8x8xf32>
    %85 = math.exp %84 : vector<8x8x8xf32>
    %cst_28 = arith.constant dense<0.000000e+00> : vector<8x8xf32>
    %86 = vector.multi_reduction <add>, %85, %cst_28 [2] : vector<8x8x8xf32> to vector<8x8xf32>
    %87 = vector.shape_cast %86 : vector<8x8xf32> to vector<8x8x1xf32>
    %88 = tpu.reciprocal %87 {approx = true} : vector<8x8x1xf32> -> vector<8x8x1xf32>
    %89 = vector.broadcast %88 : vector<8x8x1xf32> to vector<8x8x8xf32>
    %90 = arith.mulf %85, %89 : vector<8x8x8xf32>
    %91 = arith.truncf %90 : vector<8x8x8xf32> to vector<8x8x8xbf16>
    %92 = arith.truncf %72 : vector<8x8x16xf32> to vector<8x8x16xbf16>
    "tpu.trace_start"() <{level = 10 : i32, message = "hqk,hkd->hqd"}> : () -> ()
    %cst_29 = arith.constant dense<0.000000e+00> : vector<8x8x16xf32>
    %93 = tpu.matmul %91, %92, %cst_29 {dimension_numbers = #tpu.dot_dimension_numbers<[2], [1], [1], [2], [0, 0, 0, 1, 1, 2], [0], [0]>} : vector<8x8x8xbf16>, vector<8x8x16xbf16>, vector<8x8x16xf32> -> vector<8x8x16xf32>
    "tpu.trace_stop"() : () -> ()
    %94 = vector.extract_strided_slice %93 {offsets = [0, 0, 0], sizes = [2, 8, 16], strides = [1, 1, 1]} : vector<8x8x16xf32> to vector<2x8x16xf32>
    %95 = vector.shape_cast %94 : vector<2x8x16xf32> to vector<16x16xf32>
    %c0_30 = arith.constant 0 : index
    %c0_31 = arith.constant 0 : index
    %96 = vector.load %arg16[%c0_30, %c0_31] : memref<16x64xf32, #tpu.memory_space<vmem>>, vector<16x16xf32>
    tpu.vector_store %arg16[%c0_30, %c0_31], %95 {strides = array<i32>} : memref<16x64xf32, #tpu.memory_space<vmem>>, vector<16x16xf32>,
    %97 = vector.extract_strided_slice %93 {offsets = [2, 0, 0], sizes = [2, 8, 16], strides = [1, 1, 1]} : vector<8x8x16xf32> to vector<2x8x16xf32>
    %98 = vector.shape_cast %97 : vector<2x8x16xf32> to vector<16x16xf32>
    %c0_32 = arith.constant 0 : index
    %c16 = arith.constant 16 : index
    %99 = vector.load %arg16[%c0_32, %c16] : memref<16x64xf32, #tpu.memory_space<vmem>>, vector<16x16xf32>
    tpu.vector_store %arg16[%c0_32, %c16], %98 {strides = array<i32>} : memref<16x64xf32, #tpu.memory_space<vmem>>, vector<16x16xf32>,
    %100 = vector.extract_strided_slice %93 {offsets = [4, 0, 0], sizes = [2, 8, 16], strides = [1, 1, 1]} : vector<8x8x16xf32> to vector<2x8x16xf32>
    %101 = vector.shape_cast %100 : vector<2x8x16xf32> to vector<16x16xf32>
    %c0_33 = arith.constant 0 : index
    %c32 = arith.constant 32 : index
    %102 = vector.load %arg16[%c0_33, %c32] : memref<16x64xf32, #tpu.memory_space<vmem>>, vector<16x16xf32>
    tpu.vector_store %arg16[%c0_33, %c32], %101 {strides = array<i32>} : memref<16x64xf32, #tpu.memory_space<vmem>>, vector<16x16xf32>,
    %103 = vector.extract_strided_slice %93 {offsets = [6, 0, 0], sizes = [2, 8, 16], strides = [1, 1, 1]} : vector<8x8x16xf32> to vector<2x8x16xf32>
    %104 = vector.shape_cast %103 : vector<2x8x16xf32> to vector<16x16xf32>
    %c0_34 = arith.constant 0 : index
    %c48 = arith.constant 48 : index
    %105 = vector.load %arg16[%c0_34, %c48] : memref<16x64xf32, #tpu.memory_space<vmem>>, vector<16x16xf32>
    tpu.vector_store %arg16[%c0_34, %c48], %104 {strides = array<i32>} : memref<16x64xf32, #tpu.memory_space<vmem>>, vector<16x16xf32>,
    %c0_35 = arith.constant 0 : index
    %c0_36 = arith.constant 0 : index
    %106 = vector.load %arg16[%c0_35, %c0_36] : memref<16x64xf32, #tpu.memory_space<vmem>>, vector<16x64xf32>
    %c0_37 = arith.constant 0 : index
    %c0_38 = arith.constant 0 : index
    %c0_39 = arith.constant 0 : index
    %107 = vector.load %arg8[%c0_37, %c0_38, %c0_39] : memref<2x64x64xbf16, #tpu.memory_space<vmem>>, vector<1x64x64xbf16>
    %108 = vector.shape_cast %107 : vector<1x64x64xbf16> to vector<64x64xbf16>
    %109 = arith.truncf %106 : vector<16x64xf32> to vector<16x64xbf16>
    %cst_40 = arith.constant dense<0.000000e+00> : vector<16x64xf32>
    %110 = tpu.matmul %109, %108, %cst_40 {dimension_numbers = #tpu.dot_dimension_numbers<[1], [0], [0], [1], [0, 0, 1, 1], [], []>} : vector<16x64xbf16>, vector<64x64xbf16>, vector<16x64xf32> -> vector<16x64xf32>
    %111 = arith.addf %19, %110 : vector<16x64xf32>
    %112 = arith.mulf %111, %111 : vector<16x64xf32>
    %cst_41 = arith.constant dense<0.000000e+00> : vector<16xf32>
    %113 = vector.multi_reduction <add>, %112, %cst_41 [1] : vector<16x64xf32> to vector<16xf32>
    %114 = vector.shape_cast %113 : vector<16xf32> to vector<16x1xf32>
    %cst_42 = arith.constant 6.400000e+01 : f32
    %115 = vector.broadcast %cst_42 : f32 to vector<16x1xf32>
    %116 = arith.divf %114, %115 : vector<16x1xf32>
    %cst_43 = arith.constant 9.99999997E-7 : f32
    %117 = vector.broadcast %cst_43 : f32 to vector<16x1xf32>
    %118 = arith.addf %116, %117 : vector<16x1xf32>
    %119 = math.rsqrt %118 : vector<16x1xf32>
    %120 = vector.broadcast %119 : vector<16x1xf32> to vector<16x64xf32>
    %121 = arith.mulf %111, %120 : vector<16x64xf32>
    %122 = vector.broadcast %21 : vector<1x64xf32> to vector<16x64xf32>
    %123 = arith.mulf %121, %122 : vector<16x64xf32>
    %c0_44 = arith.constant 0 : index
    %c0_45 = arith.constant 0 : index
    %c0_46 = arith.constant 0 : index
    %124 = vector.load %arg1[%c0_44, %c0_45, %c0_46] : memref<2x16x64xf32, #tpu.memory_space<vmem>>, vector<1x16x64xf32>
    %125 = vector.shape_cast %124 : vector<1x16x64xf32> to vector<16x64xf32>
    %126 = tpu.concatenate %123, %125 in 0 : vector<16x64xf32>, vector<16x64xf32> -> vector<32x64xf32>
    %c0_47 = arith.constant 0 : index
    %c0_48 = arith.constant 0 : index
    %c0_49 = arith.constant 0 : index
    %127 = vector.load %arg9[%c0_47, %c0_48, %c0_49] : memref<2x64x192xbf16, #tpu.memory_space<vmem>>, vector<1x64x192xbf16>
    %128 = vector.shape_cast %127 : vector<1x64x192xbf16> to vector<64x192xbf16>
    %129 = arith.truncf %126 : vector<32x64xf32> to vector<32x64xbf16>
    %cst_50 = arith.constant dense<0.000000e+00> : vector<32x192xf32>
    %130 = tpu.matmul %129, %128, %cst_50 {dimension_numbers = #tpu.dot_dimension_numbers<[1], [0], [0], [1], [0, 0, 1, 1], [], []>} : vector<32x64xbf16>, vector<64x192xbf16>, vector<32x192xf32> -> vector<32x192xf32>
    %131 = vector.extract_strided_slice %130 {offsets = [0, 0], sizes = [16, 192], strides = [1, 1]} : vector<32x192xf32> to vector<16x192xf32>
    %132 = vector.extract_strided_slice %130 {offsets = [16, 0], sizes = [16, 192], strides = [1, 1]} : vector<32x192xf32> to vector<16x192xf32>
    %133 = vector.extract_strided_slice %131 {offsets = [0, 0], sizes = [16, 16], strides = [1, 1]} : vector<16x192xf32> to vector<16x16xf32>
    %134 = vector.shape_cast %133 : vector<16x16xf32> to vector<2x8x16xf32>
    %135 = vector.extract_strided_slice %131 {offsets = [0, 16], sizes = [16, 16], strides = [1, 1]} : vector<16x192xf32> to vector<16x16xf32>
    %136 = vector.shape_cast %135 : vector<16x16xf32> to vector<2x8x16xf32>
    %137 = vector.extract_strided_slice %131 {offsets = [0, 32], sizes = [16, 16], strides = [1, 1]} : vector<16x192xf32> to vector<16x16xf32>
    %138 = vector.shape_cast %137 : vector<16x16xf32> to vector<2x8x16xf32>
    %139 = vector.extract_strided_slice %131 {offsets = [0, 48], sizes = [16, 16], strides = [1, 1]} : vector<16x192xf32> to vector<16x16xf32>
    %140 = vector.shape_cast %139 : vector<16x16xf32> to vector<2x8x16xf32>
    %141 = tpu.concatenate %134, %136, %138, %140 in 0 : vector<2x8x16xf32>, vector<2x8x16xf32>, vector<2x8x16xf32>, vector<2x8x16xf32> -> vector<8x8x16xf32>
    %142 = vector.extract_strided_slice %132 {offsets = [0, 64], sizes = [16, 16], strides = [1, 1]} : vector<16x192xf32> to vector<16x16xf32>
    %143 = vector.shape_cast %142 : vector<16x16xf32> to vector<2x8x16xf32>
    %144 = vector.extract_strided_slice %132 {offsets = [0, 80], sizes = [16, 16], strides = [1, 1]} : vector<16x192xf32> to vector<16x16xf32>
    %145 = vector.shape_cast %144 : vector<16x16xf32> to vector<2x8x16xf32>
    %146 = vector.extract_strided_slice %132 {offsets = [0, 96], sizes = [16, 16], strides = [1, 1]} : vector<16x192xf32> to vector<16x16xf32>
    %147 = vector.shape_cast %146 : vector<16x16xf32> to vector<2x8x16xf32>
    %148 = vector.extract_strided_slice %132 {offsets = [0, 112], sizes = [16, 16], strides = [1, 1]} : vector<16x192xf32> to vector<16x16xf32>
    %149 = vector.shape_cast %148 : vector<16x16xf32> to vector<2x8x16xf32>
    %150 = tpu.concatenate %143, %145, %147, %149 in 0 : vector<2x8x16xf32>, vector<2x8x16xf32>, vector<2x8x16xf32>, vector<2x8x16xf32> -> vector<8x8x16xf32>
    %151 = vector.extract_strided_slice %132 {offsets = [0, 128], sizes = [16, 16], strides = [1, 1]} : vector<16x192xf32> to vector<16x16xf32>
    %152 = vector.shape_cast %151 : vector<16x16xf32> to vector<2x8x16xf32>
    %153 = vector.extract_strided_slice %132 {offsets = [0, 144], sizes = [16, 16], strides = [1, 1]} : vector<16x192xf32> to vector<16x16xf32>
    %154 = vector.shape_cast %153 : vector<16x16xf32> to vector<2x8x16xf32>
    %155 = vector.extract_strided_slice %132 {offsets = [0, 160], sizes = [16, 16], strides = [1, 1]} : vector<16x192xf32> to vector<16x16xf32>
    %156 = vector.shape_cast %155 : vector<16x16xf32> to vector<2x8x16xf32>
    %157 = vector.extract_strided_slice %132 {offsets = [0, 176], sizes = [16, 16], strides = [1, 1]} : vector<16x192xf32> to vector<16x16xf32>
    %158 = vector.shape_cast %157 : vector<16x16xf32> to vector<2x8x16xf32>
    %159 = tpu.concatenate %152, %154, %156, %158 in 0 : vector<2x8x16xf32>, vector<2x8x16xf32>, vector<2x8x16xf32>, vector<2x8x16xf32> -> vector<8x8x16xf32>
    %160 = arith.truncf %141 : vector<8x8x16xf32> to vector<8x8x16xbf16>
    %161 = arith.truncf %150 : vector<8x8x16xf32> to vector<8x8x16xbf16>
    "tpu.trace_start"() <{level = 10 : i32, message = "hqd,hkd->hqk"}> : () -> ()
    %cst_51 = arith.constant dense<0.000000e+00> : vector<8x8x8xf32>
    %162 = tpu.matmul %160, %161, %cst_51 {dimension_numbers = #tpu.dot_dimension_numbers<[2], [2], [1], [1], [0, 0, 0, 1, 1, 1], [0], [0]>} : vector<8x8x16xbf16>, vector<8x8x16xbf16>, vector<8x8x8xf32> -> vector<8x8x8xf32>
    "tpu.trace_stop"() : () -> ()
    %cst_52 = arith.constant 2.500000e-01 : f32
    %163 = vector.broadcast %cst_52 : f32 to vector<8x8x8xf32>
    %164 = arith.mulf %162, %163 : vector<8x8x8xf32>
    %165 = vector.shape_cast %18 : vector<8x8xf32> to vector<1x8x8xf32>
    %166 = vector.broadcast %165 : vector<1x8x8xf32> to vector<8x8x8xf32>
    %167 = arith.addf %164, %166 : vector<8x8x8xf32>
    %cst_53 = arith.constant dense<0xFF800000> : vector<8x8xf32>
    %168 = vector.multi_reduction <maximumf>, %167, %cst_53 [2] : vector<8x8x8xf32> to vector<8x8xf32>
    %169 = vector.shape_cast %168 : vector<8x8xf32> to vector<8x8x1xf32>
    %170 = vector.broadcast %169 : vector<8x8x1xf32> to vector<8x8x8xf32>
    %171 = arith.subf %167, %170 : vector<8x8x8xf32>
    %172 = math.exp %171 : vector<8x8x8xf32>
    %cst_54 = arith.constant dense<0.000000e+00> : vector<8x8xf32>
    %173 = vector.multi_reduction <add>, %172, %cst_54 [2] : vector<8x8x8xf32> to vector<8x8xf32>
    %174 = vector.shape_cast %173 : vector<8x8xf32> to vector<8x8x1xf32>
    %175 = tpu.reciprocal %174 {approx = true} : vector<8x8x1xf32> -> vector<8x8x1xf32>
    %176 = vector.broadcast %175 : vector<8x8x1xf32> to vector<8x8x8xf32>
    %177 = arith.mulf %172, %176 : vector<8x8x8xf32>
    %178 = arith.truncf %177 : vector<8x8x8xf32> to vector<8x8x8xbf16>
    %179 = arith.truncf %159 : vector<8x8x16xf32> to vector<8x8x16xbf16>
    "tpu.trace_start"() <{level = 10 : i32, message = "hqk,hkd->hqd"}> : () -> ()
    %cst_55 = arith.constant dense<0.000000e+00> : vector<8x8x16xf32>
    %180 = tpu.matmul %178, %179, %cst_55 {dimension_numbers = #tpu.dot_dimension_numbers<[2], [1], [1], [2], [0, 0, 0, 1, 1, 2], [0], [0]>} : vector<8x8x8xbf16>, vector<8x8x16xbf16>, vector<8x8x16xf32> -> vector<8x8x16xf32>
    "tpu.trace_stop"() : () -> ()
    %181 = vector.extract_strided_slice %180 {offsets = [0, 0, 0], sizes = [2, 8, 16], strides = [1, 1, 1]} : vector<8x8x16xf32> to vector<2x8x16xf32>
    %182 = vector.shape_cast %181 : vector<2x8x16xf32> to vector<16x16xf32>
    %c0_56 = arith.constant 0 : index
    %c0_57 = arith.constant 0 : index
    %183 = vector.load %arg16[%c0_56, %c0_57] : memref<16x64xf32, #tpu.memory_space<vmem>>, vector<16x16xf32>
    tpu.vector_store %arg16[%c0_56, %c0_57], %182 {strides = array<i32>} : memref<16x64xf32, #tpu.memory_space<vmem>>, vector<16x16xf32>,
    %184 = vector.extract_strided_slice %180 {offsets = [2, 0, 0], sizes = [2, 8, 16], strides = [1, 1, 1]} : vector<8x8x16xf32> to vector<2x8x16xf32>
    %185 = vector.shape_cast %184 : vector<2x8x16xf32> to vector<16x16xf32>
    %c0_58 = arith.constant 0 : index
    %c16_59 = arith.constant 16 : index
    %186 = vector.load %arg16[%c0_58, %c16_59] : memref<16x64xf32, #tpu.memory_space<vmem>>, vector<16x16xf32>
    tpu.vector_store %arg16[%c0_58, %c16_59], %185 {strides = array<i32>} : memref<16x64xf32, #tpu.memory_space<vmem>>, vector<16x16xf32>,
    %187 = vector.extract_strided_slice %180 {offsets = [4, 0, 0], sizes = [2, 8, 16], strides = [1, 1, 1]} : vector<8x8x16xf32> to vector<2x8x16xf32>
    %188 = vector.shape_cast %187 : vector<2x8x16xf32> to vector<16x16xf32>
    %c0_60 = arith.constant 0 : index
    %c32_61 = arith.constant 32 : index
    %189 = vector.load %arg16[%c0_60, %c32_61] : memref<16x64xf32, #tpu.memory_space<vmem>>, vector<16x16xf32>
    tpu.vector_store %arg16[%c0_60, %c32_61], %188 {strides = array<i32>} : memref<16x64xf32, #tpu.memory_space<vmem>>, vector<16x16xf32>,
    %190 = vector.extract_strided_slice %180 {offsets = [6, 0, 0], sizes = [2, 8, 16], strides = [1, 1, 1]} : vector<8x8x16xf32> to vector<2x8x16xf32>
    %191 = vector.shape_cast %190 : vector<2x8x16xf32> to vector<16x16xf32>
    %c0_62 = arith.constant 0 : index
    %c48_63 = arith.constant 48 : index
    %192 = vector.load %arg16[%c0_62, %c48_63] : memref<16x64xf32, #tpu.memory_space<vmem>>, vector<16x16xf32>
    tpu.vector_store %arg16[%c0_62, %c48_63], %191 {strides = array<i32>} : memref<16x64xf32, #tpu.memory_space<vmem>>, vector<16x16xf32>,
    %c0_64 = arith.constant 0 : index
    %c0_65 = arith.constant 0 : index
    %193 = vector.load %arg16[%c0_64, %c0_65] : memref<16x64xf32, #tpu.memory_space<vmem>>, vector<16x64xf32>
    %c0_66 = arith.constant 0 : index
    %c0_67 = arith.constant 0 : index
    %c0_68 = arith.constant 0 : index
    %194 = vector.load %arg10[%c0_66, %c0_67, %c0_68] : memref<2x64x64xbf16, #tpu.memory_space<vmem>>, vector<1x64x64xbf16>
    %195 = vector.shape_cast %194 : vector<1x64x64xbf16> to vector<64x64xbf16>
    %196 = arith.truncf %193 : vector<16x64xf32> to vector<16x64xbf16>
    %cst_69 = arith.constant dense<0.000000e+00> : vector<16x64xf32>
    %197 = tpu.matmul %196, %195, %cst_69 {dimension_numbers = #tpu.dot_dimension_numbers<[1], [0], [0], [1], [0, 0, 1, 1], [], []>} : vector<16x64xbf16>, vector<64x64xbf16>, vector<16x64xf32> -> vector<16x64xf32>
    %198 = arith.addf %111, %197 : vector<16x64xf32>
    %199 = arith.mulf %198, %198 : vector<16x64xf32>
    %cst_70 = arith.constant dense<0.000000e+00> : vector<16xf32>
    %200 = vector.multi_reduction <add>, %199, %cst_70 [1] : vector<16x64xf32> to vector<16xf32>
    %201 = vector.shape_cast %200 : vector<16xf32> to vector<16x1xf32>
    %cst_71 = arith.constant 6.400000e+01 : f32
    %202 = vector.broadcast %cst_71 : f32 to vector<16x1xf32>
    %203 = arith.divf %201, %202 : vector<16x1xf32>
    %cst_72 = arith.constant 9.99999997E-7 : f32
    %204 = vector.broadcast %cst_72 : f32 to vector<16x1xf32>
    %205 = arith.addf %203, %204 : vector<16x1xf32>
    %206 = math.rsqrt %205 : vector<16x1xf32>
    %207 = vector.broadcast %206 : vector<16x1xf32> to vector<16x64xf32>
    %208 = arith.mulf %198, %207 : vector<16x64xf32>
    %209 = vector.broadcast %23 : vector<1x64xf32> to vector<16x64xf32>
    %210 = arith.mulf %208, %209 : vector<16x64xf32>
    %c0_73 = arith.constant 0 : index
    %c0_74 = arith.constant 0 : index
    %c0_75 = arith.constant 0 : index
    %211 = vector.load %arg11[%c0_73, %c0_74, %c0_75] : memref<2x64x256xbf16, #tpu.memory_space<vmem>>, vector<1x64x256xbf16>
    %212 = vector.shape_cast %211 : vector<1x64x256xbf16> to vector<64x256xbf16>
    %213 = arith.truncf %210 : vector<16x64xf32> to vector<16x64xbf16>
    %cst_76 = arith.constant dense<0.000000e+00> : vector<16x256xf32>
    %214 = tpu.matmul %213, %212, %cst_76 {dimension_numbers = #tpu.dot_dimension_numbers<[1], [0], [0], [1], [0, 0, 1, 1], [], []>} : vector<16x64xbf16>, vector<64x256xbf16>, vector<16x256xf32> -> vector<16x256xf32>
    %215 = vector.extract_strided_slice %214 {offsets = [0, 0], sizes = [16, 128], strides = [1, 1]} : vector<16x256xf32> to vector<16x128xf32>
    %216 = vector.extract_strided_slice %214 {offsets = [0, 128], sizes = [16, 128], strides = [1, 1]} : vector<16x256xf32> to vector<16x128xf32>
    %217 = arith.negf %215 : vector<16x128xf32>
    %218 = math.exp %217 : vector<16x128xf32>
    %cst_77 = arith.constant 1.000000e+00 : f32
    %219 = vector.broadcast %cst_77 : f32 to vector<16x128xf32>
    %220 = arith.addf %219, %218 : vector<16x128xf32>
    %221 = arith.divf %219, %220 : vector<16x128xf32>
    %222 = arith.mulf %215, %221 : vector<16x128xf32>
    %223 = arith.mulf %222, %216 : vector<16x128xf32>
    %c0_78 = arith.constant 0 : index
    %c0_79 = arith.constant 0 : index
    %c0_80 = arith.constant 0 : index
    %224 = vector.load %arg12[%c0_78, %c0_79, %c0_80] : memref<2x128x64xbf16, #tpu.memory_space<vmem>>, vector<1x128x64xbf16>
    %225 = vector.shape_cast %224 : vector<1x128x64xbf16> to vector<128x64xbf16>
    %226 = arith.truncf %223 : vector<16x128xf32> to vector<16x128xbf16>
    %cst_81 = arith.constant dense<0.000000e+00> : vector<16x64xf32>
    %227 = tpu.matmul %226, %225, %cst_81 {dimension_numbers = #tpu.dot_dimension_numbers<[1], [0], [0], [1], [0, 0, 1, 1], [], []>} : vector<16x128xbf16>, vector<128x64xbf16>, vector<16x64xf32> -> vector<16x64xf32>
    %228 = arith.addf %198, %227 : vector<16x64xf32>
    %c1 = arith.constant 1 : index
    %c0_82 = arith.constant 0 : index
    %c0_83 = arith.constant 0 : index
    %229 = vector.load %arg5[%c1, %c0_82, %c0_83] : memref<2x1x64xf32, #tpu.memory_space<vmem>>, vector<1x1x64xf32>
    %230 = vector.shape_cast %229 : vector<1x1x64xf32> to vector<1x64xf32>
    %c1_84 = arith.constant 1 : index
    %c0_85 = arith.constant 0 : index
    %c0_86 = arith.constant 0 : index
    %231 = vector.load %arg6[%c1_84, %c0_85, %c0_86] : memref<2x1x64xf32, #tpu.memory_space<vmem>>, vector<1x1x64xf32>
    %232 = vector.shape_cast %231 : vector<1x1x64xf32> to vector<1x64xf32>
    %233 = arith.mulf %228, %228 : vector<16x64xf32>
    %cst_87 = arith.constant dense<0.000000e+00> : vector<16xf32>
    %234 = vector.multi_reduction <add>, %233, %cst_87 [1] : vector<16x64xf32> to vector<16xf32>
    %235 = vector.shape_cast %234 : vector<16xf32> to vector<16x1xf32>
    %cst_88 = arith.constant 6.400000e+01 : f32
    %236 = vector.broadcast %cst_88 : f32 to vector<16x1xf32>
    %237 = arith.divf %235, %236 : vector<16x1xf32>
    %cst_89 = arith.constant 9.99999997E-7 : f32
    %238 = vector.broadcast %cst_89 : f32 to vector<16x1xf32>
    %239 = arith.addf %237, %238 : vector<16x1xf32>
    %240 = math.rsqrt %239 : vector<16x1xf32>
    %241 = vector.broadcast %240 : vector<16x1xf32> to vector<16x64xf32>
    %242 = arith.mulf %228, %241 : vector<16x64xf32>
    %243 = vector.broadcast %230 : vector<1x64xf32> to vector<16x64xf32>
    %244 = arith.mulf %242, %243 : vector<16x64xf32>
    %c1_90 = arith.constant 1 : index
    %c0_91 = arith.constant 0 : index
    %c0_92 = arith.constant 0 : index
    %245 = vector.load %arg7[%c1_90, %c0_91, %c0_92] : memref<2x64x192xbf16, #tpu.memory_space<vmem>>, vector<1x64x192xbf16>
    %246 = vector.shape_cast %245 : vector<1x64x192xbf16> to vector<64x192xbf16>
    %247 = arith.truncf %244 : vector<16x64xf32> to vector<16x64xbf16>
    %cst_93 = arith.constant dense<0.000000e+00> : vector<16x192xf32>
    %248 = tpu.matmul %247, %246, %cst_93 {dimension_numbers = #tpu.dot_dimension_numbers<[1], [0], [0], [1], [0, 0, 1, 1], [], []>} : vector<16x64xbf16>, vector<64x192xbf16>, vector<16x192xf32> -> vector<16x192xf32>
    %249 = vector.extract_strided_slice %248 {offsets = [0, 0], sizes = [16, 128], strides = [1, 1]} : vector<16x192xf32> to vector<16x128xf32>
    %250 = arith.mulf %249, %0 : vector<16x128xf32>
    %251 = arith.truncf %249 : vector<16x128xf32> to vector<16x128xbf16>
    %cst_94 = arith.constant dense<0.000000e+00> : vector<16x128xf32>
    %252 = tpu.matmul %251, %2, %cst_94 {dimension_numbers = #tpu.dot_dimension_numbers<[1], [0], [0], [1], [0, 0, 1, 1], [], []>} : vector<16x128xbf16>, vector<128x128xbf16>, vector<16x128xf32> -> vector<16x128xf32>
    %253 = arith.mulf %252, %1 : vector<16x128xf32>
    %254 = arith.addf %250, %253 : vector<16x128xf32>
    %255 = vector.extract_strided_slice %254 {offsets = [0, 0], sizes = [16, 16], strides = [1, 1]} : vector<16x128xf32> to vector<16x16xf32>
    %256 = vector.shape_cast %255 : vector<16x16xf32> to vector<2x8x16xf32>
    %257 = vector.extract_strided_slice %254 {offsets = [0, 16], sizes = [16, 16], strides = [1, 1]} : vector<16x128xf32> to vector<16x16xf32>
    %258 = vector.shape_cast %257 : vector<16x16xf32> to vector<2x8x16xf32>
    %259 = vector.extract_strided_slice %254 {offsets = [0, 32], sizes = [16, 16], strides = [1, 1]} : vector<16x128xf32> to vector<16x16xf32>
    %260 = vector.shape_cast %259 : vector<16x16xf32> to vector<2x8x16xf32>
    %261 = vector.extract_strided_slice %254 {offsets = [0, 48], sizes = [16, 16], strides = [1, 1]} : vector<16x128xf32> to vector<16x16xf32>
    %262 = vector.shape_cast %261 : vector<16x16xf32> to vector<2x8x16xf32>
    %263 = tpu.concatenate %256, %258, %260, %262 in 0 : vector<2x8x16xf32>, vector<2x8x16xf32>, vector<2x8x16xf32>, vector<2x8x16xf32> -> vector<8x8x16xf32>
    %264 = vector.extract_strided_slice %254 {offsets = [0, 64], sizes = [16, 16], strides = [1, 1]} : vector<16x128xf32> to vector<16x16xf32>
    %265 = vector.shape_cast %264 : vector<16x16xf32> to vector<2x8x16xf32>
    %266 = vector.extract_strided_slice %254 {offsets = [0, 80], sizes = [16, 16], strides = [1, 1]} : vector<16x128xf32> to vector<16x16xf32>
    %267 = vector.shape_cast %266 : vector<16x16xf32> to vector<2x8x16xf32>
    %268 = vector.extract_strided_slice %254 {offsets = [0, 96], sizes = [16, 16], strides = [1, 1]} : vector<16x128xf32> to vector<16x16xf32>
    %269 = vector.shape_cast %268 : vector<16x16xf32> to vector<2x8x16xf32>
    %270 = vector.extract_strided_slice %254 {offsets = [0, 112], sizes = [16, 16], strides = [1, 1]} : vector<16x128xf32> to vector<16x16xf32>
    %271 = vector.shape_cast %270 : vector<16x16xf32> to vector<2x8x16xf32>
    %272 = tpu.concatenate %265, %267, %269, %271 in 0 : vector<2x8x16xf32>, vector<2x8x16xf32>, vector<2x8x16xf32>, vector<2x8x16xf32> -> vector<8x8x16xf32>
    %273 = vector.extract_strided_slice %248 {offsets = [0, 128], sizes = [16, 16], strides = [1, 1]} : vector<16x192xf32> to vector<16x16xf32>
    %274 = vector.shape_cast %273 : vector<16x16xf32> to vector<2x8x16xf32>
    %275 = vector.extract_strided_slice %248 {offsets = [0, 144], sizes = [16, 16], strides = [1, 1]} : vector<16x192xf32> to vector<16x16xf32>
    %276 = vector.shape_cast %275 : vector<16x16xf32> to vector<2x8x16xf32>
    %277 = vector.extract_strided_slice %248 {offsets = [0, 160], sizes = [16, 16], strides = [1, 1]} : vector<16x192xf32> to vector<16x16xf32>
    %278 = vector.shape_cast %277 : vector<16x16xf32> to vector<2x8x16xf32>
    %279 = vector.extract_strided_slice %248 {offsets = [0, 176], sizes = [16, 16], strides = [1, 1]} : vector<16x192xf32> to vector<16x16xf32>
    %280 = vector.shape_cast %279 : vector<16x16xf32> to vector<2x8x16xf32>
    %281 = tpu.concatenate %274, %276, %278, %280 in 0 : vector<2x8x16xf32>, vector<2x8x16xf32>, vector<2x8x16xf32>, vector<2x8x16xf32> -> vector<8x8x16xf32>
    %282 = arith.truncf %263 : vector<8x8x16xf32> to vector<8x8x16xbf16>
    %283 = arith.truncf %272 : vector<8x8x16xf32> to vector<8x8x16xbf16>
    "tpu.trace_start"() <{level = 10 : i32, message = "hqd,hkd->hqk"}> : () -> ()
    %cst_95 = arith.constant dense<0.000000e+00> : vector<8x8x8xf32>
    %284 = tpu.matmul %282, %283, %cst_95 {dimension_numbers = #tpu.dot_dimension_numbers<[2], [2], [1], [1], [0, 0, 0, 1, 1, 1], [0], [0]>} : vector<8x8x16xbf16>, vector<8x8x16xbf16>, vector<8x8x8xf32> -> vector<8x8x8xf32>
    "tpu.trace_stop"() : () -> ()
    %cst_96 = arith.constant 2.500000e-01 : f32
    %285 = vector.broadcast %cst_96 : f32 to vector<8x8x8xf32>
    %286 = arith.mulf %284, %285 : vector<8x8x8xf32>
    %287 = vector.shape_cast %10 : vector<8x8xf32> to vector<1x8x8xf32>
    %288 = vector.broadcast %287 : vector<1x8x8xf32> to vector<8x8x8xf32>
    %289 = arith.addf %286, %288 : vector<8x8x8xf32>
    %cst_97 = arith.constant dense<0xFF800000> : vector<8x8xf32>
    %290 = vector.multi_reduction <maximumf>, %289, %cst_97 [2] : vector<8x8x8xf32> to vector<8x8xf32>
    %291 = vector.shape_cast %290 : vector<8x8xf32> to vector<8x8x1xf32>
    %292 = vector.broadcast %291 : vector<8x8x1xf32> to vector<8x8x8xf32>
    %293 = arith.subf %289, %292 : vector<8x8x8xf32>
    %294 = math.exp %293 : vector<8x8x8xf32>
    %cst_98 = arith.constant dense<0.000000e+00> : vector<8x8xf32>
    %295 = vector.multi_reduction <add>, %294, %cst_98 [2] : vector<8x8x8xf32> to vector<8x8xf32>
    %296 = vector.shape_cast %295 : vector<8x8xf32> to vector<8x8x1xf32>
    %297 = tpu.reciprocal %296 {approx = true} : vector<8x8x1xf32> -> vector<8x8x1xf32>
    %298 = vector.broadcast %297 : vector<8x8x1xf32> to vector<8x8x8xf32>
    %299 = arith.mulf %294, %298 : vector<8x8x8xf32>
    %300 = arith.truncf %299 : vector<8x8x8xf32> to vector<8x8x8xbf16>
    %301 = arith.truncf %281 : vector<8x8x16xf32> to vector<8x8x16xbf16>
    "tpu.trace_start"() <{level = 10 : i32, message = "hqk,hkd->hqd"}> : () -> ()
    %cst_99 = arith.constant dense<0.000000e+00> : vector<8x8x16xf32>
    %302 = tpu.matmul %300, %301, %cst_99 {dimension_numbers = #tpu.dot_dimension_numbers<[2], [1], [1], [2], [0, 0, 0, 1, 1, 2], [0], [0]>} : vector<8x8x8xbf16>, vector<8x8x16xbf16>, vector<8x8x16xf32> -> vector<8x8x16xf32>
    "tpu.trace_stop"() : () -> ()
    %303 = vector.extract_strided_slice %302 {offsets = [0, 0, 0], sizes = [2, 8, 16], strides = [1, 1, 1]} : vector<8x8x16xf32> to vector<2x8x16xf32>
    %304 = vector.shape_cast %303 : vector<2x8x16xf32> to vector<16x16xf32>
    %c0_100 = arith.constant 0 : index
    %c0_101 = arith.constant 0 : index
    %305 = vector.load %arg16[%c0_100, %c0_101] : memref<16x64xf32, #tpu.memory_space<vmem>>, vector<16x16xf32>
    tpu.vector_store %arg16[%c0_100, %c0_101], %304 {strides = array<i32>} : memref<16x64xf32, #tpu.memory_space<vmem>>, vector<16x16xf32>,
    %306 = vector.extract_strided_slice %302 {offsets = [2, 0, 0], sizes = [2, 8, 16], strides = [1, 1, 1]} : vector<8x8x16xf32> to vector<2x8x16xf32>
    %307 = vector.shape_cast %306 : vector<2x8x16xf32> to vector<16x16xf32>
    %c0_102 = arith.constant 0 : index
    %c16_103 = arith.constant 16 : index
    %308 = vector.load %arg16[%c0_102, %c16_103] : memref<16x64xf32, #tpu.memory_space<vmem>>, vector<16x16xf32>
    tpu.vector_store %arg16[%c0_102, %c16_103], %307 {strides = array<i32>} : memref<16x64xf32, #tpu.memory_space<vmem>>, vector<16x16xf32>,
    %309 = vector.extract_strided_slice %302 {offsets = [4, 0, 0], sizes = [2, 8, 16], strides = [1, 1, 1]} : vector<8x8x16xf32> to vector<2x8x16xf32>
    %310 = vector.shape_cast %309 : vector<2x8x16xf32> to vector<16x16xf32>
    %c0_104 = arith.constant 0 : index
    %c32_105 = arith.constant 32 : index
    %311 = vector.load %arg16[%c0_104, %c32_105] : memref<16x64xf32, #tpu.memory_space<vmem>>, vector<16x16xf32>
    tpu.vector_store %arg16[%c0_104, %c32_105], %310 {strides = array<i32>} : memref<16x64xf32, #tpu.memory_space<vmem>>, vector<16x16xf32>,
    %312 = vector.extract_strided_slice %302 {offsets = [6, 0, 0], sizes = [2, 8, 16], strides = [1, 1, 1]} : vector<8x8x16xf32> to vector<2x8x16xf32>
    %313 = vector.shape_cast %312 : vector<2x8x16xf32> to vector<16x16xf32>
    %c0_106 = arith.constant 0 : index
    %c48_107 = arith.constant 48 : index
    %314 = vector.load %arg16[%c0_106, %c48_107] : memref<16x64xf32, #tpu.memory_space<vmem>>, vector<16x16xf32>
    tpu.vector_store %arg16[%c0_106, %c48_107], %313 {strides = array<i32>} : memref<16x64xf32, #tpu.memory_space<vmem>>, vector<16x16xf32>,
    %c0_108 = arith.constant 0 : index
    %c0_109 = arith.constant 0 : index
    %315 = vector.load %arg16[%c0_108, %c0_109] : memref<16x64xf32, #tpu.memory_space<vmem>>, vector<16x64xf32>
    %c1_110 = arith.constant 1 : index
    %c0_111 = arith.constant 0 : index
    %c0_112 = arith.constant 0 : index
    %316 = vector.load %arg8[%c1_110, %c0_111, %c0_112] : memref<2x64x64xbf16, #tpu.memory_space<vmem>>, vector<1x64x64xbf16>
    %317 = vector.shape_cast %316 : vector<1x64x64xbf16> to vector<64x64xbf16>
    %318 = arith.truncf %315 : vector<16x64xf32> to vector<16x64xbf16>
    %cst_113 = arith.constant dense<0.000000e+00> : vector<16x64xf32>
    %319 = tpu.matmul %318, %317, %cst_113 {dimension_numbers = #tpu.dot_dimension_numbers<[1], [0], [0], [1], [0, 0, 1, 1], [], []>} : vector<16x64xbf16>, vector<64x64xbf16>, vector<16x64xf32> -> vector<16x64xf32>
    %320 = arith.addf %228, %319 : vector<16x64xf32>
    %321 = arith.mulf %320, %320 : vector<16x64xf32>
    %cst_114 = arith.constant dense<0.000000e+00> : vector<16xf32>
    %322 = vector.multi_reduction <add>, %321, %cst_114 [1] : vector<16x64xf32> to vector<16xf32>
    %323 = vector.shape_cast %322 : vector<16xf32> to vector<16x1xf32>
    %cst_115 = arith.constant 6.400000e+01 : f32
    %324 = vector.broadcast %cst_115 : f32 to vector<16x1xf32>
    %325 = arith.divf %323, %324 : vector<16x1xf32>
    %cst_116 = arith.constant 9.99999997E-7 : f32
    %326 = vector.broadcast %cst_116 : f32 to vector<16x1xf32>
    %327 = arith.addf %325, %326 : vector<16x1xf32>
    %328 = math.rsqrt %327 : vector<16x1xf32>
    %329 = vector.broadcast %328 : vector<16x1xf32> to vector<16x64xf32>
    %330 = arith.mulf %320, %329 : vector<16x64xf32>
    %331 = vector.broadcast %230 : vector<1x64xf32> to vector<16x64xf32>
    %332 = arith.mulf %330, %331 : vector<16x64xf32>
    %c1_117 = arith.constant 1 : index
    %c0_118 = arith.constant 0 : index
    %c0_119 = arith.constant 0 : index
    %333 = vector.load %arg1[%c1_117, %c0_118, %c0_119] : memref<2x16x64xf32, #tpu.memory_space<vmem>>, vector<1x16x64xf32>
    %334 = vector.shape_cast %333 : vector<1x16x64xf32> to vector<16x64xf32>
    %335 = tpu.concatenate %332, %334 in 0 : vector<16x64xf32>, vector<16x64xf32> -> vector<32x64xf32>
    %c1_120 = arith.constant 1 : index
    %c0_121 = arith.constant 0 : index
    %c0_122 = arith.constant 0 : index
    %336 = vector.load %arg9[%c1_120, %c0_121, %c0_122] : memref<2x64x192xbf16, #tpu.memory_space<vmem>>, vector<1x64x192xbf16>
    %337 = vector.shape_cast %336 : vector<1x64x192xbf16> to vector<64x192xbf16>
    %338 = arith.truncf %335 : vector<32x64xf32> to vector<32x64xbf16>
    %cst_123 = arith.constant dense<0.000000e+00> : vector<32x192xf32>
    %339 = tpu.matmul %338, %337, %cst_123 {dimension_numbers = #tpu.dot_dimension_numbers<[1], [0], [0], [1], [0, 0, 1, 1], [], []>} : vector<32x64xbf16>, vector<64x192xbf16>, vector<32x192xf32> -> vector<32x192xf32>
    %340 = vector.extract_strided_slice %339 {offsets = [0, 0], sizes = [16, 192], strides = [1, 1]} : vector<32x192xf32> to vector<16x192xf32>
    %341 = vector.extract_strided_slice %339 {offsets = [16, 0], sizes = [16, 192], strides = [1, 1]} : vector<32x192xf32> to vector<16x192xf32>
    %342 = vector.extract_strided_slice %340 {offsets = [0, 0], sizes = [16, 16], strides = [1, 1]} : vector<16x192xf32> to vector<16x16xf32>
    %343 = vector.shape_cast %342 : vector<16x16xf32> to vector<2x8x16xf32>
    %344 = vector.extract_strided_slice %340 {offsets = [0, 16], sizes = [16, 16], strides = [1, 1]} : vector<16x192xf32> to vector<16x16xf32>
    %345 = vector.shape_cast %344 : vector<16x16xf32> to vector<2x8x16xf32>
    %346 = vector.extract_strided_slice %340 {offsets = [0, 32], sizes = [16, 16], strides = [1, 1]} : vector<16x192xf32> to vector<16x16xf32>
    %347 = vector.shape_cast %346 : vector<16x16xf32> to vector<2x8x16xf32>
    %348 = vector.extract_strided_slice %340 {offsets = [0, 48], sizes = [16, 16], strides = [1, 1]} : vector<16x192xf32> to vector<16x16xf32>
    %349 = vector.shape_cast %348 : vector<16x16xf32> to vector<2x8x16xf32>
    %350 = tpu.concatenate %343, %345, %347, %349 in 0 : vector<2x8x16xf32>, vector<2x8x16xf32>, vector<2x8x16xf32>, vector<2x8x16xf32> -> vector<8x8x16xf32>
    %351 = vector.extract_strided_slice %341 {offsets = [0, 64], sizes = [16, 16], strides = [1, 1]} : vector<16x192xf32> to vector<16x16xf32>
    %352 = vector.shape_cast %351 : vector<16x16xf32> to vector<2x8x16xf32>
    %353 = vector.extract_strided_slice %341 {offsets = [0, 80], sizes = [16, 16], strides = [1, 1]} : vector<16x192xf32> to vector<16x16xf32>
    %354 = vector.shape_cast %353 : vector<16x16xf32> to vector<2x8x16xf32>
    %355 = vector.extract_strided_slice %341 {offsets = [0, 96], sizes = [16, 16], strides = [1, 1]} : vector<16x192xf32> to vector<16x16xf32>
    %356 = vector.shape_cast %355 : vector<16x16xf32> to vector<2x8x16xf32>
    %357 = vector.extract_strided_slice %341 {offsets = [0, 112], sizes = [16, 16], strides = [1, 1]} : vector<16x192xf32> to vector<16x16xf32>
    %358 = vector.shape_cast %357 : vector<16x16xf32> to vector<2x8x16xf32>
    %359 = tpu.concatenate %352, %354, %356, %358 in 0 : vector<2x8x16xf32>, vector<2x8x16xf32>, vector<2x8x16xf32>, vector<2x8x16xf32> -> vector<8x8x16xf32>
    %360 = vector.extract_strided_slice %341 {offsets = [0, 128], sizes = [16, 16], strides = [1, 1]} : vector<16x192xf32> to vector<16x16xf32>
    %361 = vector.shape_cast %360 : vector<16x16xf32> to vector<2x8x16xf32>
    %362 = vector.extract_strided_slice %341 {offsets = [0, 144], sizes = [16, 16], strides = [1, 1]} : vector<16x192xf32> to vector<16x16xf32>
    %363 = vector.shape_cast %362 : vector<16x16xf32> to vector<2x8x16xf32>
    %364 = vector.extract_strided_slice %341 {offsets = [0, 160], sizes = [16, 16], strides = [1, 1]} : vector<16x192xf32> to vector<16x16xf32>
    %365 = vector.shape_cast %364 : vector<16x16xf32> to vector<2x8x16xf32>
    %366 = vector.extract_strided_slice %341 {offsets = [0, 176], sizes = [16, 16], strides = [1, 1]} : vector<16x192xf32> to vector<16x16xf32>
    %367 = vector.shape_cast %366 : vector<16x16xf32> to vector<2x8x16xf32>
    %368 = tpu.concatenate %361, %363, %365, %367 in 0 : vector<2x8x16xf32>, vector<2x8x16xf32>, vector<2x8x16xf32>, vector<2x8x16xf32> -> vector<8x8x16xf32>
    %369 = arith.truncf %350 : vector<8x8x16xf32> to vector<8x8x16xbf16>
    %370 = arith.truncf %359 : vector<8x8x16xf32> to vector<8x8x16xbf16>
    "tpu.trace_start"() <{level = 10 : i32, message = "hqd,hkd->hqk"}> : () -> ()
    %cst_124 = arith.constant dense<0.000000e+00> : vector<8x8x8xf32>
    %371 = tpu.matmul %369, %370, %cst_124 {dimension_numbers = #tpu.dot_dimension_numbers<[2], [2], [1], [1], [0, 0, 0, 1, 1, 1], [0], [0]>} : vector<8x8x16xbf16>, vector<8x8x16xbf16>, vector<8x8x8xf32> -> vector<8x8x8xf32>
    "tpu.trace_stop"() : () -> ()
    %cst_125 = arith.constant 2.500000e-01 : f32
    %372 = vector.broadcast %cst_125 : f32 to vector<8x8x8xf32>
    %373 = arith.mulf %371, %372 : vector<8x8x8xf32>
    %374 = vector.shape_cast %18 : vector<8x8xf32> to vector<1x8x8xf32>
    %375 = vector.broadcast %374 : vector<1x8x8xf32> to vector<8x8x8xf32>
    %376 = arith.addf %373, %375 : vector<8x8x8xf32>
    %cst_126 = arith.constant dense<0xFF800000> : vector<8x8xf32>
    %377 = vector.multi_reduction <maximumf>, %376, %cst_126 [2] : vector<8x8x8xf32> to vector<8x8xf32>
    %378 = vector.shape_cast %377 : vector<8x8xf32> to vector<8x8x1xf32>
    %379 = vector.broadcast %378 : vector<8x8x1xf32> to vector<8x8x8xf32>
    %380 = arith.subf %376, %379 : vector<8x8x8xf32>
    %381 = math.exp %380 : vector<8x8x8xf32>
    %cst_127 = arith.constant dense<0.000000e+00> : vector<8x8xf32>
    %382 = vector.multi_reduction <add>, %381, %cst_127 [2] : vector<8x8x8xf32> to vector<8x8xf32>
    %383 = vector.shape_cast %382 : vector<8x8xf32> to vector<8x8x1xf32>
    %384 = tpu.reciprocal %383 {approx = true} : vector<8x8x1xf32> -> vector<8x8x1xf32>
    %385 = vector.broadcast %384 : vector<8x8x1xf32> to vector<8x8x8xf32>
    %386 = arith.mulf %381, %385 : vector<8x8x8xf32>
    %387 = arith.truncf %386 : vector<8x8x8xf32> to vector<8x8x8xbf16>
    %388 = arith.truncf %368 : vector<8x8x16xf32> to vector<8x8x16xbf16>
    "tpu.trace_start"() <{level = 10 : i32, message = "hqk,hkd->hqd"}> : () -> ()
    %cst_128 = arith.constant dense<0.000000e+00> : vector<8x8x16xf32>
    %389 = tpu.matmul %387, %388, %cst_128 {dimension_numbers = #tpu.dot_dimension_numbers<[2], [1], [1], [2], [0, 0, 0, 1, 1, 2], [0], [0]>} : vector<8x8x8xbf16>, vector<8x8x16xbf16>, vector<8x8x16xf32> -> vector<8x8x16xf32>
    "tpu.trace_stop"() : () -> ()
    %390 = vector.extract_strided_slice %389 {offsets = [0, 0, 0], sizes = [2, 8, 16], strides = [1, 1, 1]} : vector<8x8x16xf32> to vector<2x8x16xf32>
    %391 = vector.shape_cast %390 : vector<2x8x16xf32> to vector<16x16xf32>
    %c0_129 = arith.constant 0 : index
    %c0_130 = arith.constant 0 : index
    %392 = vector.load %arg16[%c0_129, %c0_130] : memref<16x64xf32, #tpu.memory_space<vmem>>, vector<16x16xf32>
    tpu.vector_store %arg16[%c0_129, %c0_130], %391 {strides = array<i32>} : memref<16x64xf32, #tpu.memory_space<vmem>>, vector<16x16xf32>,
    %393 = vector.extract_strided_slice %389 {offsets = [2, 0, 0], sizes = [2, 8, 16], strides = [1, 1, 1]} : vector<8x8x16xf32> to vector<2x8x16xf32>
    %394 = vector.shape_cast %393 : vector<2x8x16xf32> to vector<16x16xf32>
    %c0_131 = arith.constant 0 : index
    %c16_132 = arith.constant 16 : index
    %395 = vector.load %arg16[%c0_131, %c16_132] : memref<16x64xf32, #tpu.memory_space<vmem>>, vector<16x16xf32>
    tpu.vector_store %arg16[%c0_131, %c16_132], %394 {strides = array<i32>} : memref<16x64xf32, #tpu.memory_space<vmem>>, vector<16x16xf32>,
    %396 = vector.extract_strided_slice %389 {offsets = [4, 0, 0], sizes = [2, 8, 16], strides = [1, 1, 1]} : vector<8x8x16xf32> to vector<2x8x16xf32>
    %397 = vector.shape_cast %396 : vector<2x8x16xf32> to vector<16x16xf32>
    %c0_133 = arith.constant 0 : index
    %c32_134 = arith.constant 32 : index
    %398 = vector.load %arg16[%c0_133, %c32_134] : memref<16x64xf32, #tpu.memory_space<vmem>>, vector<16x16xf32>
    tpu.vector_store %arg16[%c0_133, %c32_134], %397 {strides = array<i32>} : memref<16x64xf32, #tpu.memory_space<vmem>>, vector<16x16xf32>,
    %399 = vector.extract_strided_slice %389 {offsets = [6, 0, 0], sizes = [2, 8, 16], strides = [1, 1, 1]} : vector<8x8x16xf32> to vector<2x8x16xf32>
    %400 = vector.shape_cast %399 : vector<2x8x16xf32> to vector<16x16xf32>
    %c0_135 = arith.constant 0 : index
    %c48_136 = arith.constant 48 : index
    %401 = vector.load %arg16[%c0_135, %c48_136] : memref<16x64xf32, #tpu.memory_space<vmem>>, vector<16x16xf32>
    tpu.vector_store %arg16[%c0_135, %c48_136], %400 {strides = array<i32>} : memref<16x64xf32, #tpu.memory_space<vmem>>, vector<16x16xf32>,
    %c0_137 = arith.constant 0 : index
    %c0_138 = arith.constant 0 : index
    %402 = vector.load %arg16[%c0_137, %c0_138] : memref<16x64xf32, #tpu.memory_space<vmem>>, vector<16x64xf32>
    %c1_139 = arith.constant 1 : index
    %c0_140 = arith.constant 0 : index
    %c0_141 = arith.constant 0 : index
    %403 = vector.load %arg10[%c1_139, %c0_140, %c0_141] : memref<2x64x64xbf16, #tpu.memory_space<vmem>>, vector<1x64x64xbf16>
    %404 = vector.shape_cast %403 : vector<1x64x64xbf16> to vector<64x64xbf16>
    %405 = arith.truncf %402 : vector<16x64xf32> to vector<16x64xbf16>
    %cst_142 = arith.constant dense<0.000000e+00> : vector<16x64xf32>
    %406 = tpu.matmul %405, %404, %cst_142 {dimension_numbers = #tpu.dot_dimension_numbers<[1], [0], [0], [1], [0, 0, 1, 1], [], []>} : vector<16x64xbf16>, vector<64x64xbf16>, vector<16x64xf32> -> vector<16x64xf32>
    %407 = arith.addf %320, %406 : vector<16x64xf32>
    %408 = arith.mulf %407, %407 : vector<16x64xf32>
    %cst_143 = arith.constant dense<0.000000e+00> : vector<16xf32>
    %409 = vector.multi_reduction <add>, %408, %cst_143 [1] : vector<16x64xf32> to vector<16xf32>
    %410 = vector.shape_cast %409 : vector<16xf32> to vector<16x1xf32>
    %cst_144 = arith.constant 6.400000e+01 : f32
    %411 = vector.broadcast %cst_144 : f32 to vector<16x1xf32>
    %412 = arith.divf %410, %411 : vector<16x1xf32>
    %cst_145 = arith.constant 9.99999997E-7 : f32
    %413 = vector.broadcast %cst_145 : f32 to vector<16x1xf32>
    %414 = arith.addf %412, %413 : vector<16x1xf32>
    %415 = math.rsqrt %414 : vector<16x1xf32>
    %416 = vector.broadcast %415 : vector<16x1xf32> to vector<16x64xf32>
    %417 = arith.mulf %407, %416 : vector<16x64xf32>
    %418 = vector.broadcast %232 : vector<1x64xf32> to vector<16x64xf32>
    %419 = arith.mulf %417, %418 : vector<16x64xf32>
    %c1_146 = arith.constant 1 : index
    %c0_147 = arith.constant 0 : index
    %c0_148 = arith.constant 0 : index
    %420 = vector.load %arg11[%c1_146, %c0_147, %c0_148] : memref<2x64x256xbf16, #tpu.memory_space<vmem>>, vector<1x64x256xbf16>
    %421 = vector.shape_cast %420 : vector<1x64x256xbf16> to vector<64x256xbf16>
    %422 = arith.truncf %419 : vector<16x64xf32> to vector<16x64xbf16>
    %cst_149 = arith.constant dense<0.000000e+00> : vector<16x256xf32>
    %423 = tpu.matmul %422, %421, %cst_149 {dimension_numbers = #tpu.dot_dimension_numbers<[1], [0], [0], [1], [0, 0, 1, 1], [], []>} : vector<16x64xbf16>, vector<64x256xbf16>, vector<16x256xf32> -> vector<16x256xf32>
    %424 = vector.extract_strided_slice %423 {offsets = [0, 0], sizes = [16, 128], strides = [1, 1]} : vector<16x256xf32> to vector<16x128xf32>
    %425 = vector.extract_strided_slice %423 {offsets = [0, 128], sizes = [16, 128], strides = [1, 1]} : vector<16x256xf32> to vector<16x128xf32>
    %426 = arith.negf %424 : vector<16x128xf32>
    %427 = math.exp %426 : vector<16x128xf32>
    %cst_150 = arith.constant 1.000000e+00 : f32
    %428 = vector.broadcast %cst_150 : f32 to vector<16x128xf32>
    %429 = arith.addf %428, %427 : vector<16x128xf32>
    %430 = arith.divf %428, %429 : vector<16x128xf32>
    %431 = arith.mulf %424, %430 : vector<16x128xf32>
    %432 = arith.mulf %431, %425 : vector<16x128xf32>
    %c1_151 = arith.constant 1 : index
    %c0_152 = arith.constant 0 : index
    %c0_153 = arith.constant 0 : index
    %433 = vector.load %arg12[%c1_151, %c0_152, %c0_153] : memref<2x128x64xbf16, #tpu.memory_space<vmem>>, vector<1x128x64xbf16>
    %434 = vector.shape_cast %433 : vector<1x128x64xbf16> to vector<128x64xbf16>
    %435 = arith.truncf %432 : vector<16x128xf32> to vector<16x128xbf16>
    %cst_154 = arith.constant dense<0.000000e+00> : vector<16x64xf32>
    %436 = tpu.matmul %435, %434, %cst_154 {dimension_numbers = #tpu.dot_dimension_numbers<[1], [0], [0], [1], [0, 0, 1, 1], [], []>} : vector<16x128xbf16>, vector<128x64xbf16>, vector<16x64xf32> -> vector<16x64xf32>
    %437 = arith.addf %407, %436 : vector<16x64xf32>
    %c0_155 = arith.constant 0 : index
    %c0_156 = arith.constant 0 : index
    %438 = vector.load %arg13[%c0_155, %c0_156] : memref<1x64xf32, #tpu.memory_space<vmem>>, vector<1x64xf32>
    %439 = arith.mulf %437, %437 : vector<16x64xf32>
    %cst_157 = arith.constant dense<0.000000e+00> : vector<16xf32>
    %440 = vector.multi_reduction <add>, %439, %cst_157 [1] : vector<16x64xf32> to vector<16xf32>
    %441 = vector.shape_cast %440 : vector<16xf32> to vector<16x1xf32>
    %cst_158 = arith.constant 6.400000e+01 : f32
    %442 = vector.broadcast %cst_158 : f32 to vector<16x1xf32>
    %443 = arith.divf %441, %442 : vector<16x1xf32>
    %cst_159 = arith.constant 9.99999997E-7 : f32
    %444 = vector.broadcast %cst_159 : f32 to vector<16x1xf32>
    %445 = arith.addf %443, %444 : vector<16x1xf32>
    %446 = math.rsqrt %445 : vector<16x1xf32>
    %447 = vector.broadcast %446 : vector<16x1xf32> to vector<16x64xf32>
    %448 = arith.mulf %437, %447 : vector<16x64xf32>
    %449 = vector.broadcast %438 : vector<1x64xf32> to vector<16x64xf32>
    %450 = arith.mulf %448, %449 : vector<16x64xf32>
    %c0_160 = arith.constant 0 : index
    %c0_161 = arith.constant 0 : index
    %451 = vector.load %arg14[%c0_160, %c0_161] : memref<64x128xbf16, #tpu.memory_space<vmem>>, vector<64x128xbf16>
    %452 = arith.truncf %450 : vector<16x64xf32> to vector<16x64xbf16>
    %cst_162 = arith.constant dense<0.000000e+00> : vector<16x128xf32>
    %453 = tpu.matmul %452, %451, %cst_162 {dimension_numbers = #tpu.dot_dimension_numbers<[1], [0], [0], [1], [0, 0, 1, 1], [], []>} : vector<16x64xbf16>, vector<64x128xbf16>, vector<16x128xf32> -> vector<16x128xf32>
    %c0_163 = arith.constant 0 : index
    %c0_164 = arith.constant 0 : index
    %454 = vector.load %arg15[%c0_163, %c0_164] : memref<16x128xf32, #tpu.memory_space<vmem>>, vector<16x128xf32>
    tpu.vector_store %arg15[%c0_163, %c0_164], %453 {strides = array<i32>} : memref<16x128xf32, #tpu.memory_space<vmem>>, vector<16x128xf32>,
    return
  }
}

</mosaic_0001>

<llo_original>
// kernel: tile.13
$region0: #{tile.13}
  #allocation0 [shape = 's32[1]{0}', space=sflag, size = 0x4, scoped, tag = 'scoped memory for tile.13']
  %s0 = inlined_call_operand.vmem [shape: f32[8,16], index: 0, kind: input, shape index: {}]
  %s1 = inlined_call_operand.vmem [shape: f32[2,8,8,16], index: 1, kind: output, shape index: {}]
  // Predicated region
  $region2: #{tile.13} parent=0 // pred_check
    _
  $region3: #{tile.13} parent=0 // pred_check_branch
    %3 = sbr.rel (0) target = $region5
  $region4: #{tile.13} parent=0 // pred_region
    _
  $region5: #{tile.13} parent=0 // pred_fallthru
    _
  %v4 = vld [vmem:[%s0] ss:$0 sm:$0xff]
  %5 = vst [vmem:[%s1] sm:$0xff] %v4
  %s6 = scalar_lea.vmem %s1, 64
  %7 = vst [vmem:[%s6] sm:$0xff] %v4
  %s8 = scalar_lea.vmem %s0, 1
  %v9 = vld [vmem:[%s8] ss:$0 sm:$0xff]
  %s10 = scalar_lea.vmem %s1, 8
  %11 = vst [vmem:[%s10] sm:$0xff] %v9
  %s12 = scalar_lea.vmem %s1, 72
  %13 = vst [vmem:[%s12] sm:$0xff] %v9
  %s14 = scalar_lea.vmem %s0, 2
  %v15 = vld [vmem:[%s14] ss:$0 sm:$0xff]
  %s16 = scalar_lea.vmem %s1, 16
  %17 = vst [vmem:[%s16] sm:$0xff] %v15
  %s18 = scalar_lea.vmem %s1, 80
  %19 = vst [vmem:[%s18] sm:$0xff] %v15
  %s20 = scalar_lea.vmem %s0, 3
  %v21 = vld [vmem:[%s20] ss:$0 sm:$0xff]
  %s22 = scalar_lea.vmem %s1, 24
  %23 = vst [vmem:[%s22] sm:$0xff] %v21
  %s24 = scalar_lea.vmem %s1, 88
  %25 = vst [vmem:[%s24] sm:$0xff] %v21
  %s26 = scalar_lea.vmem %s0, 4
  %v27 = vld [vmem:[%s26] ss:$0 sm:$0xff]
  %s28 = scalar_lea.vmem %s1, 32
  %29 = vst [vmem:[%s28] sm:$0xff] %v27
  %s30 = scalar_lea.vmem %s1, 96
  %31 = vst [vmem:[%s30] sm:$0xff] %v27
  %s32 = scalar_lea.vmem %s0, 5
  %v33 = vld [vmem:[%s32] ss:$0 sm:$0xff]
  %s34 = scalar_lea.vmem %s1, 40
  %35 = vst [vmem:[%s34] sm:$0xff] %v33
  %s36 = scalar_lea.vmem %s1, 104
  %37 = vst [vmem:[%s36] sm:$0xff] %v33
  %s38 = scalar_lea.vmem %s0, 6
  %v39 = vld [vmem:[%s38] ss:$0 sm:$0xff]
  %s40 = scalar_lea.vmem %s1, 48
  %41 = vst [vmem:[%s40] sm:$0xff] %v39
  %s42 = scalar_lea.vmem %s1, 112
  %43 = vst [vmem:[%s42] sm:$0xff] %v39
  %s44 = scalar_lea.vmem %s0, 7
  %v45 = vld [vmem:[%s44] ss:$0 sm:$0xff]
  %s46 = scalar_lea.vmem %s1, 56
  %47 = vst [vmem:[%s46] sm:$0xff] %v45
  %s48 = scalar_lea.vmem %s1, 120
  %49 = vst [vmem:[%s48] sm:$0xff] %v45

// kernel: tile.14
$region0: #{tile.14}
  %s0 = inlined_call_operand.vmem [shape: f32[2,8,8,16], index: 0, kind: input, shape index: {}]
  %s1 = inlined_call_operand.vmem [shape: f32[16,128], index: 1, kind: output, shape index: {}]
  %v2 = vld [vmem:[%s0] ss:$8 sm:$0xf]
  %v3 = vld [vmem:[%s0] ss:$8 sm:$0xf0]
  %vm4 = vcmask 1047556
  %v5 = vsel %vm4, %v3, %v2
  %vm6 = vcmask 130048
  %7 = vst.msk [vmem:[%s1] sm:$0xff] %vm6, %v5
  %s8 = scalar_lea.vmem %s0, 64
  %v9 = vld [vmem:[%s8] ss:$8 sm:$0xf]
  %s10 = scalar_lea.vmem %s0, 64
  %v11 = vld [vmem:[%s10] ss:$8 sm:$0xf0]
  %vm12 = vcmask 1047556
  %v13 = vsel %vm12, %v11, %v9
  %vm14 = vcmask 130048
  %s15 = scalar_lea.vmem %s1, 8
  %16 = vst.msk [vmem:[%s15] sm:$0xff] %vm14, %v13
  %s17 = scalar_lea.vmem %s0, 7
  %v18 = vld [vmem:[%s17] ss:$8 sm:$0xf]
  %s19 = scalar_lea.vmem %s0, 7
  %v20 = vld [vmem:[%s19] ss:$8 sm:$0xf0]
  %vm21 = vcmask 1047556
  %v22 = vsel %vm21, %v20, %v18
  %23 = vrot.lane.b32.xlu0 %v22, 112
  %v24 = vpop.permute.xlu0 %23
  %vm25 = vcmask 1048448
  %26 = vst.msk [vmem:[%s1] sm:$0xff] %vm25, %v24
  %s27 = scalar_lea.vmem %s0, 71
  %v28 = vld [vmem:[%s27] ss:$8 sm:$0xf]
  %s29 = scalar_lea.vmem %s0, 71
  %v30 = vld [vmem:[%s29] ss:$8 sm:$0xf0]
  %vm31 = vcmask 1047556
  %v32 = vsel %vm31, %v30, %v28
  %33 = vrot.lane.b32.xlu0 %v32, 112
  %v34 = vpop.permute.xlu0 %33
  %vm35 = vcmask 1048448
  %s36 = scalar_lea.vmem %s1, 8
  %37 = vst.msk [vmem:[%s36] sm:$0xff] %vm35, %v34
  %s38 = scalar_lea.vmem %s0, 6
  %v39 = vld [vmem:[%s38] ss:$8 sm:$0xf]
  %s40 = scalar_lea.vmem %s0, 6
  %v41 = vld [vmem:[%s40] ss:$8 sm:$0xf0]
  %vm42 = vcmask 1047556
  %v43 = vsel %vm42, %v41, %v39
  %44 = vrot.lane.b32.xlu0 %v43, 96
  %v45 = vpop.permute.xlu0 %44
  %vm46 = vcmask 917248
  %47 = vst.msk [vmem:[%s1] sm:$0xff] %vm46, %v45
  %s48 = scalar_lea.vmem %s0, 70
  %v49 = vld [vmem:[%s48] ss:$8 sm:$0xf]
  %s50 = scalar_lea.vmem %s0, 70
  %v51 = vld [vmem:[%s50] ss:$8 sm:$0xf0]
  %vm52 = vcmask 1047556
  %v53 = vsel %vm52, %v51, %v49
  %54 = vrot.lane.b32.xlu0 %v53, 96
  %v55 = vpop.permute.xlu0 %54
  %vm56 = vcmask 917248
  %s57 = scalar_lea.vmem %s1, 8
  %58 = vst.msk [vmem:[%s57] sm:$0xff] %vm56, %v55
  %s59 = scalar_lea.vmem %s0, 5
  %v60 = vld [vmem:[%s59] ss:$8 sm:$0xf]
  %s61 = scalar_lea.vmem %s0, 5
  %v62 = vld [vmem:[%s61] ss:$8 sm:$0xf0]
  %vm63 = vcmask 1047556
  %v64 = vsel %vm63, %v62, %v60
  %65 = vrot.lane.b32.xlu0 %v64, 80
  %v66 = vpop.permute.xlu0 %65
  %vm67 = vcmask 786048
  %68 = vst.msk [vmem:[%s1] sm:$0xff] %vm67, %v66
  %s69 = scalar_lea.vmem %s0, 69
  %v70 = vld [vmem:[%s69] ss:$8 sm:$0xf]
  %s71 = scalar_lea.vmem %s0, 69
  %v72 = vld [vmem:[%s71] ss:$8 sm:$0xf0]
  %vm73 = vcmask 1047556
  %v74 = vsel %vm73, %v72, %v70
  %75 = vrot.lane.b32.xlu0 %v74, 80
  %v76 = vpop.permute.xlu0 %75
  %vm77 = vcmask 786048
  %s78 = scalar_lea.vmem %s1, 8
  %79 = vst.msk [vmem:[%s78] sm:$0xff] %vm77, %v76
  %s80 = scalar_lea.vmem %s0, 4
  %v81 = vld [vmem:[%s80] ss:$8 sm:$0xf]
  %s82 = scalar_lea.vmem %s0, 4
  %v83 = vld [vmem:[%s82] ss:$8 sm:$0xf0]
  %vm84 = vcmask 1047556
  %v85 = vsel %vm84, %v83, %v81
  %86 = vrot.lane.b32.xlu0 %v85, 64
  %v87 = vpop.permute.xlu0 %86
  %vm88 = vcmask 654848
  %89 = vst.msk [vmem:[%s1] sm:$0xff] %vm88, %v87
  %s90 = scalar_lea.vmem %s0, 68
  %v91 = vld [vmem:[%s90] ss:$8 sm:$0xf]
  %s92 = scalar_lea.vmem %s0, 68
  %v93 = vld [vmem:[%s92] ss:$8 sm:$0xf0]
  %vm94 = vcmask 1047556
  %v95 = vsel %vm94, %v93, %v91
  %96 = vrot.lane.b32.xlu0 %v95, 64
  %v97 = vpop.permute.xlu0 %96
  %vm98 = vcmask 654848
  %s99 = scalar_lea.vmem %s1, 8
  %100 = vst.msk [vmem:[%s99] sm:$0xff] %vm98, %v97
  %s101 = scalar_lea.vmem %s0, 3
  %v102 = vld [vmem:[%s101] ss:$8 sm:$0xf]
  %s103 = scalar_lea.vmem %s0, 3
  %v104 = vld [vmem:[%s103] ss:$8 sm:$0xf0]
  %vm105 = vcmask 1047556
  %v106 = vsel %vm105, %v104, %v102
  %107 = vrot.lane.b32.xlu0 %v106, 48
  %v108 = vpop.permute.xlu0 %107
  %vm109 = vcmask 523648
  %110 = vst.msk [vmem:[%s1] sm:$0xff] %vm109, %v108
  %s111 = scalar_lea.vmem %s0, 67
  %v112 = vld [vmem:[%s111] ss:$8 sm:$0xf]
  %s113 = scalar_lea.vmem %s0, 67
  %v114 = vld [vmem:[%s113] ss:$8 sm:$0xf0]
  %vm115 = vcmask 1047556
  %v116 = vsel %vm115, %v114, %v112
  %117 = vrot.lane.b32.xlu0 %v116, 48
  %v118 = vpop.permute.xlu0 %117
  %vm119 = vcmask 523648
  %s120 = scalar_lea.vmem %s1, 8
  %121 = vst.msk [vmem:[%s120] sm:$0xff] %vm119, %v118
  %s122 = scalar_lea.vmem %s0, 2
  %v123 = vld [vmem:[%s122] ss:$8 sm:$0xf]
  %s124 = scalar_lea.vmem %s0, 2
  %v125 = vld [vmem:[%s124] ss:$8 sm:$0xf0]
  %vm126 = vcmask 1047556
  %v127 = vsel %vm126, %v125, %v123
  %128 = vrot.lane.b32.xlu0 %v127, 32
  %v129 = vpop.permute.xlu0 %128
  %vm130 = vcmask 392448
  %131 = vst.msk [vmem:[%s1] sm:$0xff] %vm130, %v129
  %s132 = scalar_lea.vmem %s0, 66
  %v133 = vld [vmem:[%s132] ss:$8 sm:$0xf]
  %s134 = scalar_lea.vmem %s0, 66
  %v135 = vld [vmem:[%s134] ss:$8 sm:$0xf0]
  %vm136 = vcmask 1047556
  %v137 = vsel %vm136, %v135, %v133
  %138 = vrot.lane.b32.xlu0 %v137, 32
  %v139 = vpop.permute.xlu0 %138
  %vm140 = vcmask 392448
  %s141 = scalar_lea.vmem %s1, 8
  %142 = vst.msk [vmem:[%s141] sm:$0xff] %vm140, %v139
  %s143 = scalar_lea.vmem %s0, 1
  %v144 = vld [vmem:[%s143] ss:$8 sm:$0xf]
  %s145 = scalar_lea.vmem %s0, 1
  %v146 = vld [vmem:[%s145] ss:$8 sm:$0xf0]
  %vm147 = vcmask 1047556
  %v148 = vsel %vm147, %v146, %v144
  %149 = vrot.lane.b32.xlu0 %v148, 16
  %v150 = vpop.permute.xlu0 %149
  %vm151 = vcmask 261248
  %152 = vst.msk [vmem:[%s1] sm:$0xff] %vm151, %v150
  %s153 = scalar_lea.vmem %s0, 65
  %v154 = vld [vmem:[%s153] ss:$8 sm:$0xf]
  %s155 = scalar_lea.vmem %s0, 65
  %v156 = vld [vmem:[%s155] ss:$8 sm:$0xf0]
  %vm157 = vcmask 1047556
  %v158 = vsel %vm157, %v156, %v154
  %159 = vrot.lane.b32.xlu0 %v158, 16
  %v160 = vpop.permute.xlu0 %159
  %vm161 = vcmask 261248
  %s162 = scalar_lea.vmem %s1, 8
  %163 = vst.msk [vmem:[%s162] sm:$0xff] %vm161, %v160

// kernel: decoder_forward.1
$region0: #{decoder_forward.1}
  #allocation0 [shape = 'u32[]', space=smem, size = 0x4, offset = 0x4, fixed_abs, tag = 'smem constant byte address 0x4 - core index']
  #allocation1 [shape = 'u32[72,128]{1,0:T(1,128)}', space=vmem, size = 0x9000, scoped, tag = 'internal scratch']
  #allocation2 [shape = 'f32[16,64]{1,0:T(8,128)}', space=vmem, size = 0x2000, scoped, tag = 'scratch operand']
  %s0 = inlined_call_operand.vmem [shape: f32[16,64], index: 0, kind: input, shape index: {}]
  %s1 = inlined_call_operand.vmem [shape: f32[2,16,64], index: 1, kind: input, shape index: {}]
  %s2 = inlined_call_operand.vmem [shape: f32[16,128], index: 2, kind: input, shape index: {}]
  %s3 = inlined_call_operand.vmem [shape: f32[16,128], index: 3, kind: input, shape index: {}]
  %s4 = inlined_call_operand.vmem [shape: bf16[128,128], index: 4, kind: input, shape index: {}]
  %s5 = inlined_call_operand.vmem [shape: f32[2,1,64], index: 5, kind: input, shape index: {}]
  %s6 = inlined_call_operand.vmem [shape: f32[2,1,64], index: 6, kind: input, shape index: {}]
  %s7 = inlined_call_operand.vmem [shape: bf16[2,64,192], index: 7, kind: input, shape index: {}]
  %s8 = inlined_call_operand.vmem [shape: bf16[2,64,64], index: 8, kind: input, shape index: {}]
  %s9 = inlined_call_operand.vmem [shape: bf16[2,64,192], index: 9, kind: input, shape index: {}]
  %s10 = inlined_call_operand.vmem [shape: bf16[2,64,64], index: 10, kind: input, shape index: {}]
  %s11 = inlined_call_operand.vmem [shape: bf16[2,64,256], index: 11, kind: input, shape index: {}]
  %s12 = inlined_call_operand.vmem [shape: bf16[2,128,64], index: 12, kind: input, shape index: {}]
  %s13 = inlined_call_operand.vmem [shape: f32[1,64], index: 13, kind: input, shape index: {}]
  %s14 = inlined_call_operand.vmem [shape: bf16[64,128], index: 14, kind: input, shape index: {}]
  %s15 = inlined_call_operand.vmem [shape: f32[16,128], index: 15, kind: output, shape index: {}]
  %s16 = sld [smem:[#allocation0]]
  $region70: #{decoder_forward.1} parent=0
    _
  %s18 = ssub.s32 1, %s16
  %s19 = scalar_select 0, %s18, %s16
  // Predicated region
  $region2: #{decoder_forward.1} parent=0 // pred_check
    _
  $region3: #{decoder_forward.1} parent=0 // pred_check_branch
    %21 = sbr.rel (0) target = $region5
  $region4: #{decoder_forward.1} parent=0 // pred_region
    _
  $region5: #{decoder_forward.1} parent=0 // pred_fallthru
    _
  // Predicated region
  $region6: #{decoder_forward.1} parent=0 // pred_check
    _
  $region7: #{decoder_forward.1} parent=0 // pred_check_branch
    %23 = sbr.rel (0) target = $region9
  $region8: #{decoder_forward.1} parent=0 // pred_region
    _
  $region9: #{decoder_forward.1} parent=0 // pred_fallthru
    _
  // Predicated region
  $region10: #{decoder_forward.1} parent=0 // pred_check
    _
  $region11: #{decoder_forward.1} parent=0 // pred_check_branch
    %25 = sbr.rel (0) target = $region13
  $region12: #{decoder_forward.1} parent=0 // pred_region
    _
  $region13: #{decoder_forward.1} parent=0 // pred_fallthru
    _
  // Predicated region
  $region14: #{decoder_forward.1} parent=0 // pred_check
    _
  $region15: #{decoder_forward.1} parent=0 // pred_check_branch
    %27 = sbr.rel (0) target = $region17
  $region16: #{decoder_forward.1} parent=0 // pred_region
    _
  $region17: #{decoder_forward.1} parent=0 // pred_fallthru
    _
  // Predicated region
  $region18: #{decoder_forward.1} parent=0 // pred_check
    _
  $region19: #{decoder_forward.1} parent=0 // pred_check_branch
    %29 = sbr.rel (0) target = $region21
  $region20: #{decoder_forward.1} parent=0 // pred_region
    _
  $region21: #{decoder_forward.1} parent=0 // pred_fallthru
    _
  // Predicated region
  $region22: #{decoder_forward.1} parent=0 // pred_check
    _
  $region23: #{decoder_forward.1} parent=0 // pred_check_branch
    %31 = sbr.rel (0) target = $region25
  $region24: #{decoder_forward.1} parent=0 // pred_region
    _
  $region25: #{decoder_forward.1} parent=0 // pred_fallthru
    _
  // Predicated region
  $region26: #{decoder_forward.1} parent=0 // pred_check
    _
  $region27: #{decoder_forward.1} parent=0 // pred_check_branch
    %33 = sbr.rel (0) target = $region29
  $region28: #{decoder_forward.1} parent=0 // pred_region
    _
  $region29: #{decoder_forward.1} parent=0 // pred_fallthru
    _
  // Predicated region
  $region30: #{decoder_forward.1} parent=0 // pred_check
    _
  $region31: #{decoder_forward.1} parent=0 // pred_check_branch
    %35 = sbr.rel (0) target = $region33
  $region32: #{decoder_forward.1} parent=0 // pred_region
    _
  $region33: #{decoder_forward.1} parent=0 // pred_fallthru
    _
  // Predicated region
  $region34: #{decoder_forward.1} parent=0 // pred_check
    _
  $region35: #{decoder_forward.1} parent=0 // pred_check_branch
    %37 = sbr.rel (0) target = $region37
  $region36: #{decoder_forward.1} parent=0 // pred_region
    _
  $region37: #{decoder_forward.1} parent=0 // pred_fallthru
    _
  // Predicated region
  $region38: #{decoder_forward.1} parent=0 // pred_check
    _
  $region39: #{decoder_forward.1} parent=0 // pred_check_branch
    %39 = sbr.rel (0) target = $region41
  $region40: #{decoder_forward.1} parent=0 // pred_region
    _
  $region41: #{decoder_forward.1} parent=0 // pred_fallthru
    _
  // Predicated region
  $region42: #{decoder_forward.1} parent=0 // pred_check
    _
  $region43: #{decoder_forward.1} parent=0 // pred_check_branch
    %41 = sbr.rel (0) target = $region45
  $region44: #{decoder_forward.1} parent=0 // pred_region
    _
  $region45: #{decoder_forward.1} parent=0 // pred_fallthru
    _
  // Predicated region
  $region46: #{decoder_forward.1} parent=0 // pred_check
    _
  $region47: #{decoder_forward.1} parent=0 // pred_check_branch
    %43 = sbr.rel (0) target = $region49
  $region48: #{decoder_forward.1} parent=0 // pred_region
    _
  $region49: #{decoder_forward.1} parent=0 // pred_fallthru
    _
  // Predicated region
  $region50: #{decoder_forward.1} parent=0 // pred_check
    _
  $region51: #{decoder_forward.1} parent=0 // pred_check_branch
    %45 = sbr.rel (0) target = $region53
  $region52: #{decoder_forward.1} parent=0 // pred_region
    _
  $region53: #{decoder_forward.1} parent=0 // pred_fallthru
    _
  // Predicated region
  $region54: #{decoder_forward.1} parent=0 // pred_check
    _
  $region55: #{decoder_forward.1} parent=0 // pred_check_branch
    %47 = sbr.rel (0) target = $region57
  $region56: #{decoder_forward.1} parent=0 // pred_region
    _
  $region57: #{decoder_forward.1} parent=0 // pred_fallthru
    _
  // Predicated region
  $region58: #{decoder_forward.1} parent=0 // pred_check
    _
  $region59: #{decoder_forward.1} parent=0 // pred_check_branch
    %49 = sbr.rel (0) target = $region61
  $region60: #{decoder_forward.1} parent=0 // pred_region
    _
  $region61: #{decoder_forward.1} parent=0 // pred_fallthru
    _
  %v51 = vld [vmem:[%s2] sm:$0xff]
  %v52 = vld [vmem:[%s2 + $0x8] sm:$0xff]
  %v53 = vld [vmem:[%s3] sm:$0xff]
  %v54 = vld [vmem:[%s3 + $0x8] sm:$0xff]
  %v55 = vld [vmem:[%s4] sm:$0xf]
  %v56 = vld [vmem:[%s4 + $0x4] sm:$0xf]
  %v57 = vld [vmem:[%s4 + $0x8] sm:$0xf]
  %v58 = vld [vmem:[%s4 + $0xc] sm:$0xf]
  %v59 = vld [vmem:[%s4 + $0x10] sm:$0xf]
  %v60 = vld [vmem:[%s4 + $0x14] sm:$0xf]
  %v61 = vld [vmem:[%s4 + $0x18] sm:$0xf]
  %v62 = vld [vmem:[%s4 + $0x1c] sm:$0xf]
  %v63 = vld [vmem:[%s4 + $0x20] sm:$0xf]
  %v64 = vld [vmem:[%s4 + $0x24] sm:$0xf]
  %v65 = vld [vmem:[%s4 + $0x28] sm:$0xf]
  %v66 = vld [vmem:[%s4 + $0x2c] sm:$0xf]
  %v67 = vld [vmem:[%s4 + $0x30] sm:$0xf]
  %v68 = vld [vmem:[%s4 + $0x34] sm:$0xf]
  %v69 = vld [vmem:[%s4 + $0x38] sm:$0xf]
  %v70 = vld [vmem:[%s4 + $0x3c] sm:$0xf]
  %v71 = vlaneseq
  %v72 = vshrl.u32 %v71, 7
  %v73 = vlaneseq
  %v74 = vand.u32 %v73, 127
  %vm75 = vcmp.le.s32.totalorder %v74, %v72
  %v76 = vsel %vm75, 0.0, -1e+30
  %v77 = vld [vmem:[%s0] sm:$0xff]
  %v78 = vld [vmem:[%s0 + $0x8] sm:$0xff]
  %v79 = vld [vmem:[%s5] sm:$0x1]
  %v80 = vld [vmem:[%s6] sm:$0x1]
  %v81 = vmul.f32 %v77, %v77
  %v82 = vmul.f32 %v78, %v78
  %vm83 = vcmask 523264
  %v84 = vsel %vm83, %v81, 0.0
  %85 = vadd.xlane.f32.xlu0 %v84
  %v86 = vpop.xlane.xlu0 %85
  %v87 = vsel %vm83, %v82, 0.0
  %88 = vadd.xlane.f32.xlu0 %v87
  %v89 = vpop.xlane.xlu0 %88
  %v90 = vrcp.pop 64.0
  %v91 = vmul.f32 64.0, %v90
  %v92 = vsub.f32 1.0, %v91
  %v93 = vmul.f32 %v90, %v92
  %v94 = vadd.f32 %v90, %v93
  %vm95 = vweird.f32 %v90
  %v96 = vsel %vm95, %v90, %v94
  %v97 = vmul.f32 %v86, %v96
  %v98 = vmul.f32 %v89, %v96
  %v99 = vadd.f32 %v97, 1e-06
  %v100 = vadd.f32 %v98, 1e-06
  %v101 = vrsqrt.pop %v99
  %v102 = vmul.f32 %v101, %v99
  %v103 = vmul.f32 %v102, %v101
  %v104 = vmul.f32 0.5, %v103
  %v105 = vsub.f32 1.5, %v104
  %v106 = vmul.f32 %v101, %v105
  %vm107 = vweird.f32 %v99
  %vm108 = vweird.f32 %v101
  %vm109 = vmor %vm107, %vm108
  %v110 = vsel %vm109, %v101, %v106
  %v111 = vrsqrt.pop %v100
  %v112 = vmul.f32 %v111, %v100
  %v113 = vmul.f32 %v112, %v111
  %v114 = vmul.f32 0.5, %v113
  %v115 = vsub.f32 1.5, %v114
  %v116 = vmul.f32 %v111, %v115
  %vm117 = vweird.f32 %v100
  %vm118 = vweird.f32 %v111
  %vm119 = vmor %vm117, %vm118
  %v120 = vsel %vm119, %v111, %v116
  %v121 = vmul.f32 %v77, %v110
  %v122 = vmul.f32 %v78, %v120
  %v124 = vperm.slane %v79, 0
  %v126 = vmul.f32 %v121, %v124
  %v127 = vmul.f32 %v122, %v124
  %v128 = vld [vmem:[%s7] sm:$0xff]
  %v129 = vld [vmem:[%s7 + $0x8] sm:$0xff]
  %v130 = vld [vmem:[%s7 + $0x10] sm:$0xff]
  %v131 = vld [vmem:[%s7 + $0x18] sm:$0xff]
  %v132 = vld [vmem:[%s7 + $0x20] sm:$0xff]
  %v133 = vld [vmem:[%s7 + $0x28] sm:$0xff]
  %v134 = vld [vmem:[%s7 + $0x30] sm:$0xff]
  %v135 = vld [vmem:[%s7 + $0x38] sm:$0xff]
  %v136 = vpack.c.bf16 %v127, %v126
  %v145 = vunpack.c.l.b16 %v128
  %v146 = vunpack.c.h.b16 %v128
  %v147 = vunpack.c.l.b16 %v129
  %v148 = vunpack.c.h.b16 %v129
  %v149 = vunpack.c.l.b16 %v130
  %v150 = vunpack.c.h.b16 %v130
  %v151 = vunpack.c.l.b16 %v131
  %v152 = vunpack.c.h.b16 %v131
  %v153 = vunpack.c.l.b16 %v132
  %v154 = vunpack.c.h.b16 %v132
  %v155 = vunpack.c.l.b16 %v133
  %v156 = vunpack.c.h.b16 %v133
  %v157 = vunpack.c.l.b16 %v134
  %v158 = vunpack.c.h.b16 %v134
  %v159 = vunpack.c.l.b16 %v135
  %v160 = vunpack.c.h.b16 %v135
  %v161 = vpack.c.b16 %v147, %v145
  %v162 = vpack.c.b16 %v148, %v146
  %v163 = vpack.c.b16 %v151, %v149
  %v164 = vpack.c.b16 %v152, %v150
  %v165 = vpack.c.b16 %v155, %v153
  %v166 = vpack.c.b16 %v156, %v154
  %v167 = vpack.c.b16 %v159, %v157
  %v168 = vpack.c.b16 %v160, %v158
  %v178 = vsel %vm83, %v136, 0
  %180 = vmatpush.bf16.msra.mxu0 0
  %181 = vmatpush.bf16.msra.mxu0 0
  %182 = vmatpush.bf16.msra.mxu0 0
  %183 = vmatpush.bf16.msra.mxu0 0
  %184 = vmatpush.bf16.msra.mxu0 %v167
  %185 = vmatpush.bf16.msra.mxu0 %v165
  %186 = vmatpush.bf16.msra.mxu0 %v163
  %187 = vmatpush.bf16.msra.mxu0 %v161
  %188 = vmatmul.bf16.gmra.mxu0 %v178
  %v189 = vpop.f32.mrf.mxu0
  %v190 = vadd.f32 0.0, %v189
  %v191 = vpop.f32.mrf.mxu0
  %v192 = vadd.f32 0.0, %v191
  %193 = vdwg.mxu0
  %194 = vmatpush.bf16.msra.mxu0 0
  %195 = vmatpush.bf16.msra.mxu0 0
  %196 = vmatpush.bf16.msra.mxu0 0
  %197 = vmatpush.bf16.msra.mxu0 0
  %198 = vmatpush.bf16.msra.mxu0 %v168
  %199 = vmatpush.bf16.msra.mxu0 %v166
  %200 = vmatpush.bf16.msra.mxu0 %v164
  %201 = vmatpush.bf16.msra.mxu0 %v162
  %202 = vmatmul.bf16.gmra.mxu0 %v178
  %v203 = vpop.f32.mrf.mxu0
  %v204 = vadd.f32 0.0, %v203
  %v205 = vpop.f32.mrf.mxu0
  %v206 = vadd.f32 0.0, %v205
  %207 = vdwg.mxu0
  %v208 = vmul.f32 %v190, %v51
  %v209 = vmul.f32 %v192, %v52
  %v210 = vpack.c.bf16 %v192, %v190
  %v227 = vunpack.c.l.b16 %v55
  %v228 = vunpack.c.l.b16 %v56
  %v229 = vunpack.c.l.b16 %v57
  %v230 = vunpack.c.l.b16 %v58
  %v231 = vunpack.c.l.b16 %v59
  %v232 = vunpack.c.l.b16 %v60
  %v233 = vunpack.c.l.b16 %v61
  %v234 = vunpack.c.l.b16 %v62
  %v235 = vunpack.c.l.b16 %v63
  %v236 = vunpack.c.l.b16 %v64
  %v237 = vunpack.c.l.b16 %v65
  %v238 = vunpack.c.l.b16 %v66
  %v239 = vunpack.c.l.b16 %v67
  %v240 = vunpack.c.l.b16 %v68
  %v241 = vunpack.c.l.b16 %v69
  %v242 = vunpack.c.l.b16 %v70
  %v243 = vpack.c.b16 %v228, %v227
  %v244 = vpack.c.b16 %v230, %v229
  %v245 = vpack.c.b16 %v232, %v231
  %v246 = vpack.c.b16 %v234, %v233
  %v247 = vpack.c.b16 %v236, %v235
  %v248 = vpack.c.b16 %v238, %v237
  %v249 = vpack.c.b16 %v240, %v239
  %v250 = vpack.c.b16 %v242, %v241
  %259 = vmatpush.bf16.msra.mxu0 %v250
  %260 = vmatpush.bf16.msra.mxu0 %v249
  %261 = vmatpush.bf16.msra.mxu0 %v248
  %262 = vmatpush.bf16.msra.mxu0 %v247
  %263 = vmatpush.bf16.msra.mxu0 %v246
  %264 = vmatpush.bf16.msra.mxu0 %v245
  %265 = vmatpush.bf16.msra.mxu0 %v244
  %266 = vmatpush.bf16.msra.mxu0 %v243
  %267 = vmatmul.bf16.gmra.mxu0 %v210
  %v268 = vpop.f32.mrf.mxu0
  %v269 = vadd.f32 0.0, %v268
  %v270 = vpop.f32.mrf.mxu0
  %v271 = vadd.f32 0.0, %v270
  %272 = vdwg.mxu0
  %v273 = vmul.f32 %v269, %v53
  %v274 = vmul.f32 %v271, %v54
  %v275 = vadd.f32 %v208, %v273
  %v276 = vadd.f32 %v209, %v274
  %279 = vrot.lane.b32.xlu0 %v275, 112
  %v280 = vpop.permute.xlu0 %279
  %281 = vrot.lane.b32.xlu0 %v276, 112
  %v282 = vpop.permute.xlu0 %281
  %285 = vrot.lane.b32.xlu0 %v275, 96
  %v286 = vpop.permute.xlu0 %285
  %287 = vrot.lane.b32.xlu0 %v276, 96
  %v288 = vpop.permute.xlu0 %287
  %291 = vrot.lane.b32.xlu0 %v275, 80
  %v292 = vpop.permute.xlu0 %291
  %293 = vrot.lane.b32.xlu0 %v276, 80
  %v294 = vpop.permute.xlu0 %293
  %299 = vrot.lane.b32.xlu0 %v204, 112
  %v300 = vpop.permute.xlu0 %299
  %301 = vrot.lane.b32.xlu0 %v206, 112
  %v302 = vpop.permute.xlu0 %301
  %305 = vrot.lane.b32.xlu0 %v204, 96
  %v306 = vpop.permute.xlu0 %305
  %307 = vrot.lane.b32.xlu0 %v206, 96
  %v308 = vpop.permute.xlu0 %307
  %311 = vrot.lane.b32.xlu0 %v204, 80
  %v312 = vpop.permute.xlu0 %311
  %313 = vrot.lane.b32.xlu0 %v206, 80
  %v314 = vpop.permute.xlu0 %313
  %v317 = vpack.c.bf16 %v275, %v275
  %v318 = vpack.c.bf16 %v276, %v276
  %v319 = vpack.c.bf16 %v280, %v280
  %v320 = vpack.c.bf16 %v282, %v282
  %v321 = vpack.c.bf16 %v286, %v286
  %v322 = vpack.c.bf16 %v288, %v288
  %v323 = vpack.c.bf16 %v292, %v292
  %v324 = vpack.c.bf16 %v294, %v294
  %v326 = vunpack.c.l.b16 %v317
  %v327 = vpack.c.b16 %v326, %v326
  %328 = vrot.lane.b32.xlu0 %v327, 64
  %v329 = vpop.permute.xlu0 %328
  %vm330 = vcmask 130048
  %v332 = vsel %vm330, %v317, 0
  %v335 = vsel %vm330, %v329, 0
  %337 = vmatpush.bf16.xpose.msra.mxu0 0
  %338 = vmatpush.bf16.xpose.msra.mxu0 0
  %339 = vmatpush.bf16.xpose.msra.mxu0 0
  %340 = vmatpush.bf16.xpose.msra.mxu0 0
  %341 = vmatpush.bf16.xpose.msra.mxu0 0
  %342 = vmatpush.bf16.xpose.msra.mxu0 0
  %343 = vmatpush.bf16.xpose.msra.mxu0 0
  %344 = vmatpush.bf16.xpose.msra.mxu0 %v335
  %345 = vmatmul.bf16.gmra.mxu0 %v332
  %v346 = vpop.f32.mrf.mxu0
  %v347 = vadd.f32 0.0, %v346
  %v348 = vpop.f32.mrf.mxu0
  %349 = vdwg.mxu0
  %v351 = vunpack.c.l.b16 %v318
  %v352 = vpack.c.b16 %v351, %v351
  %353 = vrot.lane.b32.xlu0 %v352, 64
  %v354 = vpop.permute.xlu0 %353
  %v356 = vsel %vm330, %v318, 0
  %v359 = vsel %vm330, %v354, 0
  %361 = vmatpush.bf16.xpose.msra.mxu0 0
  %362 = vmatpush.bf16.xpose.msra.mxu0 0
  %363 = vmatpush.bf16.xpose.msra.mxu0 0
  %364 = vmatpush.bf16.xpose.msra.mxu0 0
  %365 = vmatpush.bf16.xpose.msra.mxu0 0
  %366 = vmatpush.bf16.xpose.msra.mxu0 0
  %367 = vmatpush.bf16.xpose.msra.mxu0 0
  %368 = vmatpush.bf16.xpose.msra.mxu0 %v359
  %369 = vmatmul.bf16.gmra.mxu0 %v356
  %v370 = vpop.f32.mrf.mxu0
  %v371 = vadd.f32 0.0, %v370
  %v372 = vpop.f32.mrf.mxu0
  %373 = vdwg.mxu0
  %v375 = vunpack.c.l.b16 %v319
  %v376 = vpack.c.b16 %v375, %v375
  %377 = vrot.lane.b32.xlu0 %v376, 64
  %v378 = vpop.permute.xlu0 %377
  %v380 = vsel %vm330, %v319, 0
  %v383 = vsel %vm330, %v378, 0
  %385 = vmatpush.bf16.xpose.msra.mxu0 0
  %386 = vmatpush.bf16.xpose.msra.mxu0 0
  %387 = vmatpush.bf16.xpose.msra.mxu0 0
  %388 = vmatpush.bf16.xpose.msra.mxu0 0
  %389 = vmatpush.bf16.xpose.msra.mxu0 0
  %390 = vmatpush.bf16.xpose.msra.mxu0 0
  %391 = vmatpush.bf16.xpose.msra.mxu0 0
  %392 = vmatpush.bf16.xpose.msra.mxu0 %v383
  %393 = vmatmul.bf16.gmra.mxu0 %v380
  %v394 = vpop.f32.mrf.mxu0
  %v395 = vadd.f32 0.0, %v394
  %v396 = vpop.f32.mrf.mxu0
  %397 = vdwg.mxu0
  %v399 = vunpack.c.l.b16 %v320
  %v400 = vpack.c.b16 %v399, %v399
  %401 = vrot.lane.b32.xlu0 %v400, 64
  %v402 = vpop.permute.xlu0 %401
  %v404 = vsel %vm330, %v320, 0
  %v407 = vsel %vm330, %v402, 0
  %409 = vmatpush.bf16.xpose.msra.mxu0 0
  %410 = vmatpush.bf16.xpose.msra.mxu0 0
  %411 = vmatpush.bf16.xpose.msra.mxu0 0
  %412 = vmatpush.bf16.xpose.msra.mxu0 0
  %413 = vmatpush.bf16.xpose.msra.mxu0 0
  %414 = vmatpush.bf16.xpose.msra.mxu0 0
  %415 = vmatpush.bf16.xpose.msra.mxu0 0
  %416 = vmatpush.bf16.xpose.msra.mxu0 %v407
  %417 = vmatmul.bf16.gmra.mxu0 %v404
  %v418 = vpop.f32.mrf.mxu0
  %v419 = vadd.f32 0.0, %v418
  %v420 = vpop.f32.mrf.mxu0
  %421 = vdwg.mxu0
  %v423 = vunpack.c.l.b16 %v321
  %v424 = vpack.c.b16 %v423, %v423
  %425 = vrot.lane.b32.xlu0 %v424, 64
  %v426 = vpop.permute.xlu0 %425
  %v428 = vsel %vm330, %v321, 0
  %v431 = vsel %vm330, %v426, 0
  %433 = vmatpush.bf16.xpose.msra.mxu0 0
  %434 = vmatpush.bf16.xpose.msra.mxu0 0
  %435 = vmatpush.bf16.xpose.msra.mxu0 0
  %436 = vmatpush.bf16.xpose.msra.mxu0 0
  %437 = vmatpush.bf16.xpose.msra.mxu0 0
  %438 = vmatpush.bf16.xpose.msra.mxu0 0
  %439 = vmatpush.bf16.xpose.msra.mxu0 0
  %440 = vmatpush.bf16.xpose.msra.mxu0 %v431
  %441 = vmatmul.bf16.gmra.mxu0 %v428
  %v442 = vpop.f32.mrf.mxu0
  %v443 = vadd.f32 0.0, %v442
  %v444 = vpop.f32.mrf.mxu0
  %445 = vdwg.mxu0
  %v447 = vunpack.c.l.b16 %v322
  %v448 = vpack.c.b16 %v447, %v447
  %449 = vrot.lane.b32.xlu0 %v448, 64
  %v450 = vpop.permute.xlu0 %449
  %v452 = vsel %vm330, %v322, 0
  %v455 = vsel %vm330, %v450, 0
  %457 = vmatpush.bf16.xpose.msra.mxu0 0
  %458 = vmatpush.bf16.xpose.msra.mxu0 0
  %459 = vmatpush.bf16.xpose.msra.mxu0 0
  %460 = vmatpush.bf16.xpose.msra.mxu0 0
  %461 = vmatpush.bf16.xpose.msra.mxu0 0
  %462 = vmatpush.bf16.xpose.msra.mxu0 0
  %463 = vmatpush.bf16.xpose.msra.mxu0 0
  %464 = vmatpush.bf16.xpose.msra.mxu0 %v455
  %465 = vmatmul.bf16.gmra.mxu0 %v452
  %v466 = vpop.f32.mrf.mxu0
  %v467 = vadd.f32 0.0, %v466
  %v468 = vpop.f32.mrf.mxu0
  %469 = vdwg.mxu0
  %v471 = vunpack.c.l.b16 %v323
  %v472 = vpack.c.b16 %v471, %v471
  %473 = vrot.lane.b32.xlu0 %v472, 64
  %v474 = vpop.permute.xlu0 %473
  %v476 = vsel %vm330, %v323, 0
  %v479 = vsel %vm330, %v474, 0
  %481 = vmatpush.bf16.xpose.msra.mxu0 0
  %482 = vmatpush.bf16.xpose.msra.mxu0 0
  %483 = vmatpush.bf16.xpose.msra.mxu0 0
  %484 = vmatpush.bf16.xpose.msra.mxu0 0
  %485 = vmatpush.bf16.xpose.msra.mxu0 0
  %486 = vmatpush.bf16.xpose.msra.mxu0 0
  %487 = vmatpush.bf16.xpose.msra.mxu0 0
  %488 = vmatpush.bf16.xpose.msra.mxu0 %v479
  %489 = vmatmul.bf16.gmra.mxu0 %v476
  %v490 = vpop.f32.mrf.mxu0
  %v491 = vadd.f32 0.0, %v490
  %v492 = vpop.f32.mrf.mxu0
  %493 = vdwg.mxu0
  %v495 = vunpack.c.l.b16 %v324
  %v496 = vpack.c.b16 %v495, %v495
  %497 = vrot.lane.b32.xlu0 %v496, 64
  %v498 = vpop.permute.xlu0 %497
  %v500 = vsel %vm330, %v324, 0
  %v503 = vsel %vm330, %v498, 0
  %505 = vmatpush.bf16.xpose.msra.mxu0 0
  %506 = vmatpush.bf16.xpose.msra.mxu0 0
  %507 = vmatpush.bf16.xpose.msra.mxu0 0
  %508 = vmatpush.bf16.xpose.msra.mxu0 0
  %509 = vmatpush.bf16.xpose.msra.mxu0 0
  %510 = vmatpush.bf16.xpose.msra.mxu0 0
  %511 = vmatpush.bf16.xpose.msra.mxu0 0
  %512 = vmatpush.bf16.xpose.msra.mxu0 %v503
  %513 = vmatmul.bf16.gmra.mxu0 %v500
  %v514 = vpop.f32.mrf.mxu0
  %v515 = vadd.f32 0.0, %v514
  %v516 = vpop.f32.mrf.mxu0
  %517 = vdwg.mxu0
  %v518 = vmul.f32 %v347, 0.25
  %v519 = vmul.f32 %v371, 0.25
  %v520 = vmul.f32 %v395, 0.25
  %v521 = vmul.f32 %v419, 0.25
  %v522 = vmul.f32 %v443, 0.25
  %v523 = vmul.f32 %v467, 0.25
  %v524 = vmul.f32 %v491, 0.25
  %v525 = vmul.f32 %v515, 0.25
  %v526 = vadd.f32 %v518, %v76
  %v527 = vadd.f32 %v519, %v76
  %v528 = vadd.f32 %v520, %v76
  %v529 = vadd.f32 %v521, %v76
  %v530 = vadd.f32 %v522, %v76
  %v531 = vadd.f32 %v523, %v76
  %v532 = vadd.f32 %v524, %v76
  %v533 = vadd.f32 %v525, %v76
  %vm534 = vcmask 64512
  %v535 = vsel %vm534, %v526, -inf
  %536 = vmax.xlane.f32.xlu0 %v535
  %v537 = vpop.xlane.xlu0 %536
  %v538 = vsel %vm534, %v527, -inf
  %539 = vmax.xlane.f32.xlu0 %v538
  %v540 = vpop.xlane.xlu0 %539
  %v541 = vsel %vm534, %v528, -inf
  %542 = vmax.xlane.f32.xlu0 %v541
  %v543 = vpop.xlane.xlu0 %542
  %v544 = vsel %vm534, %v529, -inf
  %545 = vmax.xlane.f32.xlu0 %v544
  %v546 = vpop.xlane.xlu0 %545
  %v547 = vsel %vm534, %v530, -inf
  %548 = vmax.xlane.f32.xlu0 %v547
  %v549 = vpop.xlane.xlu0 %548
  %v550 = vsel %vm534, %v531, -inf
  %551 = vmax.xlane.f32.xlu0 %v550
  %v552 = vpop.xlane.xlu0 %551
  %v553 = vsel %vm534, %v532, -inf
  %554 = vmax.xlane.f32.xlu0 %v553
  %v555 = vpop.xlane.xlu0 %554
  %v556 = vsel %vm534, %v533, -inf
  %557 = vmax.xlane.f32.xlu0 %v556
  %v558 = vpop.xlane.xlu0 %557
  %v559 = vsub.f32 %v526, %v537
  %v560 = vsub.f32 %v527, %v540
  %v561 = vsub.f32 %v528, %v543
  %v562 = vsub.f32 %v529, %v546
  %v563 = vsub.f32 %v530, %v549
  %v564 = vsub.f32 %v531, %v552
  %v565 = vsub.f32 %v532, %v555
  %v566 = vsub.f32 %v533, %v558
  %v567 = vmul.f32 %v559, 1.442695
  %v568 = vpow.pop %v567
  %v569 = vmul.f32 %v560, 1.442695
  %v570 = vpow.pop %v569
  %v571 = vmul.f32 %v561, 1.442695
  %v572 = vpow.pop %v571
  %v573 = vmul.f32 %v562, 1.442695
  %v574 = vpow.pop %v573
  %v575 = vmul.f32 %v563, 1.442695
  %v576 = vpow.pop %v575
  %v577 = vmul.f32 %v564, 1.442695
  %v578 = vpow.pop %v577
  %v579 = vmul.f32 %v565, 1.442695
  %v580 = vpow.pop %v579
  %v581 = vmul.f32 %v566, 1.442695
  %v582 = vpow.pop %v581
  %v583 = vsel %vm534, %v568, 0.0
  %584 = vadd.xlane.f32.xlu0 %v583
  %v585 = vpop.xlane.xlu0 %584
  %v586 = vsel %vm534, %v570, 0.0
  %587 = vadd.xlane.f32.xlu0 %v586
  %v588 = vpop.xlane.xlu0 %587
  %v589 = vsel %vm534, %v572, 0.0
  %590 = vadd.xlane.f32.xlu0 %v589
  %v591 = vpop.xlane.xlu0 %590
  %v592 = vsel %vm534, %v574, 0.0
  %593 = vadd.xlane.f32.xlu0 %v592
  %v594 = vpop.xlane.xlu0 %593
  %v595 = vsel %vm534, %v576, 0.0
  %596 = vadd.xlane.f32.xlu0 %v595
  %v597 = vpop.xlane.xlu0 %596
  %v598 = vsel %vm534, %v578, 0.0
  %599 = vadd.xlane.f32.xlu0 %v598
  %v600 = vpop.xlane.xlu0 %599
  %v601 = vsel %vm534, %v580, 0.0
  %602 = vadd.xlane.f32.xlu0 %v601
  %v603 = vpop.xlane.xlu0 %602
  %v604 = vsel %vm534, %v582, 0.0
  %605 = vadd.xlane.f32.xlu0 %v604
  %v606 = vpop.xlane.xlu0 %605
  %v607 = vrcp.pop %v585
  %v608 = vrcp.pop %v588
  %v609 = vrcp.pop %v591
  %v610 = vrcp.pop %v594
  %v611 = vrcp.pop %v597
  %v612 = vrcp.pop %v600
  %v613 = vrcp.pop %v603
  %v614 = vrcp.pop %v606
  %v615 = vmul.f32 %v568, %v607
  %v616 = vmul.f32 %v570, %v608
  %v617 = vmul.f32 %v572, %v609
  %v618 = vmul.f32 %v574, %v610
  %v619 = vmul.f32 %v576, %v611
  %v620 = vmul.f32 %v578, %v612
  %v621 = vmul.f32 %v580, %v613
  %v622 = vmul.f32 %v582, %v614
  %v623 = vpack.c.bf16 %v615, %v615
  %v624 = vpack.c.bf16 %v616, %v616
  %v625 = vpack.c.bf16 %v617, %v617
  %v626 = vpack.c.bf16 %v618, %v618
  %v627 = vpack.c.bf16 %v619, %v619
  %v628 = vpack.c.bf16 %v620, %v620
  %v629 = vpack.c.bf16 %v621, %v621
  %v630 = vpack.c.bf16 %v622, %v622
  %v631 = vpack.c.bf16 %v204, %v204
  %v632 = vpack.c.bf16 %v206, %v206
  %v633 = vpack.c.bf16 %v300, %v300
  %v634 = vpack.c.bf16 %v302, %v302
  %v635 = vpack.c.bf16 %v306, %v306
  %v636 = vpack.c.bf16 %v308, %v308
  %v637 = vpack.c.bf16 %v312, %v312
  %v638 = vpack.c.bf16 %v314, %v314
  %v640 = vsel %vm534, %v623, 0
  %vm642 = vcmask 1043456
  %v644 = vsel %vm642, %v631, 0
  %646 = vmatpush.bf16.msra.mxu0 0
  %647 = vmatpush.bf16.msra.mxu0 0
  %648 = vmatpush.bf16.msra.mxu0 0
  %649 = vmatpush.bf16.msra.mxu0 0
  %650 = vmatpush.bf16.msra.mxu0 0
  %651 = vmatpush.bf16.msra.mxu0 0
  %652 = vmatpush.bf16.msra.mxu0 0
  %653 = vmatpush.bf16.msra.mxu0 %v644
  %654 = vmatmul.bf16.gmra.mxu0 %v640
  %v655 = vpop.f32.mrf.mxu0
  %v656 = vadd.f32 0.0, %v655
  %v657 = vpop.f32.mrf.mxu0
  %658 = vdwg.mxu0
  %v660 = vsel %vm534, %v624, 0
  %v663 = vsel %vm642, %v632, 0
  %665 = vmatpush.bf16.msra.mxu0 0
  %666 = vmatpush.bf16.msra.mxu0 0
  %667 = vmatpush.bf16.msra.mxu0 0
  %668 = vmatpush.bf16.msra.mxu0 0
  %669 = vmatpush.bf16.msra.mxu0 0
  %670 = vmatpush.bf16.msra.mxu0 0
  %671 = vmatpush.bf16.msra.mxu0 0
  %672 = vmatpush.bf16.msra.mxu0 %v663
  %673 = vmatmul.bf16.gmra.mxu0 %v660
  %v674 = vpop.f32.mrf.mxu0
  %v675 = vadd.f32 0.0, %v674
  %v676 = vpop.f32.mrf.mxu0
  %677 = vdwg.mxu0
  %v679 = vsel %vm534, %v625, 0
  %v682 = vsel %vm642, %v633, 0
  %684 = vmatpush.bf16.msra.mxu0 0
  %685 = vmatpush.bf16.msra.mxu0 0
  %686 = vmatpush.bf16.msra.mxu0 0
  %687 = vmatpush.bf16.msra.mxu0 0
  %688 = vmatpush.bf16.msra.mxu0 0
  %689 = vmatpush.bf16.msra.mxu0 0
  %690 = vmatpush.bf16.msra.mxu0 0
  %691 = vmatpush.bf16.msra.mxu0 %v682
  %692 = vmatmul.bf16.gmra.mxu0 %v679
  %v693 = vpop.f32.mrf.mxu0
  %v694 = vadd.f32 0.0, %v693
  %v695 = vpop.f32.mrf.mxu0
  %696 = vdwg.mxu0
  %v698 = vsel %vm534, %v626, 0
  %v701 = vsel %vm642, %v634, 0
  %703 = vmatpush.bf16.msra.mxu0 0
  %704 = vmatpush.bf16.msra.mxu0 0
  %705 = vmatpush.bf16.msra.mxu0 0
  %706 = vmatpush.bf16.msra.mxu0 0
  %707 = vmatpush.bf16.msra.mxu0 0
  %708 = vmatpush.bf16.msra.mxu0 0
  %709 = vmatpush.bf16.msra.mxu0 0
  %710 = vmatpush.bf16.msra.mxu0 %v701
  %711 = vmatmul.bf16.gmra.mxu0 %v698
  %v712 = vpop.f32.mrf.mxu0
  %v713 = vadd.f32 0.0, %v712
  %v714 = vpop.f32.mrf.mxu0
  %715 = vdwg.mxu0
  %v717 = vsel %vm534, %v627, 0
  %v720 = vsel %vm642, %v635, 0
  %722 = vmatpush.bf16.msra.mxu0 0
  %723 = vmatpush.bf16.msra.mxu0 0
  %724 = vmatpush.bf16.msra.mxu0 0
  %725 = vmatpush.bf16.msra.mxu0 0
  %726 = vmatpush.bf16.msra.mxu0 0
  %727 = vmatpush.bf16.msra.mxu0 0
  %728 = vmatpush.bf16.msra.mxu0 0
  %729 = vmatpush.bf16.msra.mxu0 %v720
  %730 = vmatmul.bf16.gmra.mxu0 %v717
  %v731 = vpop.f32.mrf.mxu0
  %v732 = vadd.f32 0.0, %v731
  %v733 = vpop.f32.mrf.mxu0
  %734 = vdwg.mxu0
  %v736 = vsel %vm534, %v628, 0
  %v739 = vsel %vm642, %v636, 0
  %741 = vmatpush.bf16.msra.mxu0 0
  %742 = vmatpush.bf16.msra.mxu0 0
  %743 = vmatpush.bf16.msra.mxu0 0
  %744 = vmatpush.bf16.msra.mxu0 0
  %745 = vmatpush.bf16.msra.mxu0 0
  %746 = vmatpush.bf16.msra.mxu0 0
  %747 = vmatpush.bf16.msra.mxu0 0
  %748 = vmatpush.bf16.msra.mxu0 %v739
  %749 = vmatmul.bf16.gmra.mxu0 %v736
  %v750 = vpop.f32.mrf.mxu0
  %v751 = vadd.f32 0.0, %v750
  %v752 = vpop.f32.mrf.mxu0
  %753 = vdwg.mxu0
  %v755 = vsel %vm534, %v629, 0
  %v758 = vsel %vm642, %v637, 0
  %760 = vmatpush.bf16.msra.mxu0 0
  %761 = vmatpush.bf16.msra.mxu0 0
  %762 = vmatpush.bf16.msra.mxu0 0
  %763 = vmatpush.bf16.msra.mxu0 0
  %764 = vmatpush.bf16.msra.mxu0 0
  %765 = vmatpush.bf16.msra.mxu0 0
  %766 = vmatpush.bf16.msra.mxu0 0
  %767 = vmatpush.bf16.msra.mxu0 %v758
  %768 = vmatmul.bf16.gmra.mxu0 %v755
  %v769 = vpop.f32.mrf.mxu0
  %v770 = vadd.f32 0.0, %v769
  %v771 = vpop.f32.mrf.mxu0
  %772 = vdwg.mxu0
  %v774 = vsel %vm534, %v630, 0
  %v777 = vsel %vm642, %v638, 0
  %779 = vmatpush.bf16.msra.mxu0 0
  %780 = vmatpush.bf16.msra.mxu0 0
  %781 = vmatpush.bf16.msra.mxu0 0
  %782 = vmatpush.bf16.msra.mxu0 0
  %783 = vmatpush.bf16.msra.mxu0 0
  %784 = vmatpush.bf16.msra.mxu0 0
  %785 = vmatpush.bf16.msra.mxu0 0
  %786 = vmatpush.bf16.msra.mxu0 %v777
  %787 = vmatmul.bf16.gmra.mxu0 %v774
  %v788 = vpop.f32.mrf.mxu0
  %v789 = vadd.f32 0.0, %v788
  %v790 = vpop.f32.mrf.mxu0
  %791 = vdwg.mxu0
  %792 = vst.msk [vmem:[#allocation2] sm:$0xff] %vm330, %v656
  %793 = vst.msk [vmem:[#allocation2 + $0x8] sm:$0xff] %vm330, %v675
  %796 = vrot.lane.b32.xlu0 %v694, 16
  %v797 = vpop.permute.xlu0 %796
  %798 = vrot.lane.b32.xlu0 %v713, 16
  %v799 = vpop.permute.xlu0 %798
  %vm802 = vcmask 261248
  %803 = vst.msk [vmem:[#allocation2] sm:$0xff] %vm802, %v797
  %804 = vst.msk [vmem:[#allocation2 + $0x8] sm:$0xff] %vm802, %v799
  %807 = vrot.lane.b32.xlu0 %v732, 32
  %v808 = vpop.permute.xlu0 %807
  %809 = vrot.lane.b32.xlu0 %v751, 32
  %v810 = vpop.permute.xlu0 %809
  %vm813 = vcmask 392448
  %814 = vst.msk [vmem:[#allocation2] sm:$0xff] %vm813, %v808
  %815 = vst.msk [vmem:[#allocation2 + $0x8] sm:$0xff] %vm813, %v810
  %818 = vrot.lane.b32.xlu0 %v770, 48
  %v819 = vpop.permute.xlu0 %818
  %820 = vrot.lane.b32.xlu0 %v789, 48
  %v821 = vpop.permute.xlu0 %820
  %vm824 = vcmask 523648
  %825 = vst.msk [vmem:[#allocation2] sm:$0xff] %vm824, %v819
  %826 = vst.msk [vmem:[#allocation2 + $0x8] sm:$0xff] %vm824, %v821
  %v827 = vld [vmem:[#allocation2] sm:$0xff]
  %v828 = vld [vmem:[#allocation2 + $0x8] sm:$0xff]
  %v829 = vld [vmem:[%s8] sm:$0xf]
  %v830 = vld [vmem:[%s8 + $0x4] sm:$0xf]
  %v831 = vld [vmem:[%s8 + $0x8] sm:$0xf]
  %v832 = vld [vmem:[%s8 + $0xc] sm:$0xf]
  %v833 = vld [vmem:[%s8 + $0x10] sm:$0xf]
  %v834 = vld [vmem:[%s8 + $0x14] sm:$0xf]
  %v835 = vld [vmem:[%s8 + $0x18] sm:$0xf]
  %v836 = vld [vmem:[%s8 + $0x1c] sm:$0xf]
  %v837 = vpack.c.bf16 %v828, %v827
  %v846 = vunpack.c.l.b16 %v829
  %v847 = vunpack.c.l.b16 %v830
  %v848 = vunpack.c.l.b16 %v831
  %v849 = vunpack.c.l.b16 %v832
  %v850 = vunpack.c.l.b16 %v833
  %v851 = vunpack.c.l.b16 %v834
  %v852 = vunpack.c.l.b16 %v835
  %v853 = vunpack.c.l.b16 %v836
  %v854 = vpack.c.b16 %v847, %v846
  %v855 = vpack.c.b16 %v849, %v848
  %v856 = vpack.c.b16 %v851, %v850
  %v857 = vpack.c.b16 %v853, %v852
  %v863 = vsel %vm83, %v837, 0
  %865 = vmatpush.bf16.msra.mxu0 0
  %866 = vmatpush.bf16.msra.mxu0 0
  %867 = vmatpush.bf16.msra.mxu0 0
  %868 = vmatpush.bf16.msra.mxu0 0
  %869 = vmatpush.bf16.msra.mxu0 %v857
  %870 = vmatpush.bf16.msra.mxu0 %v856
  %871 = vmatpush.bf16.msra.mxu0 %v855
  %872 = vmatpush.bf16.msra.mxu0 %v854
  %873 = vmatmul.bf16.gmra.mxu0 %v863
  %v874 = vpop.f32.mrf.mxu0
  %v875 = vadd.f32 0.0, %v874
  %v876 = vpop.f32.mrf.mxu0
  %v877 = vadd.f32 0.0, %v876
  %878 = vdwg.mxu0
  %v879 = vadd.f32 %v77, %v875
  %v880 = vadd.f32 %v78, %v877
  %v881 = vmul.f32 %v879, %v879
  %v882 = vmul.f32 %v880, %v880
  %v883 = vsel %vm83, %v881, 0.0
  %884 = vadd.xlane.f32.xlu0 %v883
  %v885 = vpop.xlane.xlu0 %884
  %v886 = vsel %vm83, %v882, 0.0
  %887 = vadd.xlane.f32.xlu0 %v886
  %v888 = vpop.xlane.xlu0 %887
  %v889 = vmul.f32 %v885, %v96
  %v890 = vmul.f32 %v888, %v96
  %v891 = vadd.f32 %v889, 1e-06
  %v892 = vadd.f32 %v890, 1e-06
  %v893 = vrsqrt.pop %v891
  %v894 = vmul.f32 %v893, %v891
  %v895 = vmul.f32 %v894, %v893
  %v896 = vmul.f32 0.5, %v895
  %v897 = vsub.f32 1.5, %v896
  %v898 = vmul.f32 %v893, %v897
  %vm899 = vweird.f32 %v891
  %vm900 = vweird.f32 %v893
  %vm901 = vmor %vm899, %vm900
  %v902 = vsel %vm901, %v893, %v898
  %v903 = vrsqrt.pop %v892
  %v904 = vmul.f32 %v903, %v892
  %v905 = vmul.f32 %v904, %v903
  %v906 = vmul.f32 0.5, %v905
  %v907 = vsub.f32 1.5, %v906
  %v908 = vmul.f32 %v903, %v907
  %vm909 = vweird.f32 %v892
  %vm910 = vweird.f32 %v903
  %vm911 = vmor %vm909, %vm910
  %v912 = vsel %vm911, %v903, %v908
  %v913 = vmul.f32 %v879, %v902
  %v914 = vmul.f32 %v880, %v912
  %v915 = vmul.f32 %v913, %v124
  %v916 = vmul.f32 %v914, %v124
  %v917 = vld [vmem:[%s1] sm:$0xff]
  %v918 = vld [vmem:[%s1 + $0x8] sm:$0xff]
  %v919 = vld [vmem:[%s9] sm:$0xff]
  %v920 = vld [vmem:[%s9 + $0x8] sm:$0xff]
  %v921 = vld [vmem:[%s9 + $0x10] sm:$0xff]
  %v922 = vld [vmem:[%s9 + $0x18] sm:$0xff]
  %v923 = vld [vmem:[%s9 + $0x20] sm:$0xff]
  %v924 = vld [vmem:[%s9 + $0x28] sm:$0xff]
  %v925 = vld [vmem:[%s9 + $0x30] sm:$0xff]
  %v926 = vld [vmem:[%s9 + $0x38] sm:$0xff]
  %v927 = vpack.c.bf16 %v916, %v915
  %v928 = vpack.c.bf16 %v918, %v917
  %v937 = vunpack.c.l.b16 %v919
  %v938 = vunpack.c.h.b16 %v919
  %v939 = vunpack.c.l.b16 %v920
  %v940 = vunpack.c.h.b16 %v920
  %v941 = vunpack.c.l.b16 %v921
  %v942 = vunpack.c.h.b16 %v921
  %v943 = vunpack.c.l.b16 %v922
  %v944 = vunpack.c.h.b16 %v922
  %v945 = vunpack.c.l.b16 %v923
  %v946 = vunpack.c.h.b16 %v923
  %v947 = vunpack.c.l.b16 %v924
  %v948 = vunpack.c.h.b16 %v924
  %v949 = vunpack.c.l.b16 %v925
  %v950 = vunpack.c.h.b16 %v925
  %v951 = vunpack.c.l.b16 %v926
  %v952 = vunpack.c.h.b16 %v926
  %v953 = vpack.c.b16 %v939, %v937
  %v954 = vpack.c.b16 %v940, %v938
  %v955 = vpack.c.b16 %v943, %v941
  %v956 = vpack.c.b16 %v944, %v942
  %v957 = vpack.c.b16 %v947, %v945
  %v958 = vpack.c.b16 %v948, %v946
  %v959 = vpack.c.b16 %v951, %v949
  %v960 = vpack.c.b16 %v952, %v950
  %v970 = vsel %vm83, %v927, 0
  %v973 = vsel %vm83, %v928, 0
  %975 = vmatpush.bf16.msra.mxu0 0
  %976 = vmatpush.bf16.msra.mxu0 0
  %977 = vmatpush.bf16.msra.mxu0 0
  %978 = vmatpush.bf16.msra.mxu0 0
  %979 = vmatpush.bf16.msra.mxu0 %v959
  %980 = vmatpush.bf16.msra.mxu0 %v957
  %981 = vmatpush.bf16.msra.mxu0 %v955
  %982 = vmatpush.bf16.msra.mxu0 %v953
  %983 = vmatmul.bf16.gmra.mxu0 %v970
  %v984 = vpop.f32.mrf.mxu0
  %v985 = vadd.f32 0.0, %v984
  %v986 = vpop.f32.mrf.mxu0
  %v987 = vadd.f32 0.0, %v986
  %988 = vmatmul.bf16.gmra.mxu0 %v973
  %v989 = vpop.f32.mrf.mxu0
  %v990 = vadd.f32 0.0, %v989
  %v991 = vpop.f32.mrf.mxu0
  %v992 = vadd.f32 0.0, %v991
  %993 = vdwg.mxu0
  %994 = vmatpush.bf16.msra.mxu0 0
  %995 = vmatpush.bf16.msra.mxu0 0
  %996 = vmatpush.bf16.msra.mxu0 0
  %997 = vmatpush.bf16.msra.mxu0 0
  %998 = vmatpush.bf16.msra.mxu0 %v960
  %999 = vmatpush.bf16.msra.mxu0 %v958
  %1000 = vmatpush.bf16.msra.mxu0 %v956
  %1001 = vmatpush.bf16.msra.mxu0 %v954
  %1002 = vmatmul.bf16.gmra.mxu0 %v970
  %v1003 = vpop.f32.mrf.mxu0
  %v1004 = vpop.f32.mrf.mxu0
  %1005 = vmatmul.bf16.gmra.mxu0 %v973
  %v1006 = vpop.f32.mrf.mxu0
  %v1007 = vadd.f32 0.0, %v1006
  %v1008 = vpop.f32.mrf.mxu0
  %v1009 = vadd.f32 0.0, %v1008
  %1010 = vdwg.mxu0
  %1013 = vrot.lane.b32.xlu0 %v985, 112
  %v1014 = vpop.permute.xlu0 %1013
  %1015 = vrot.lane.b32.xlu0 %v987, 112
  %v1016 = vpop.permute.xlu0 %1015
  %1019 = vrot.lane.b32.xlu0 %v985, 96
  %v1020 = vpop.permute.xlu0 %1019
  %1021 = vrot.lane.b32.xlu0 %v987, 96
  %v1022 = vpop.permute.xlu0 %1021
  %1025 = vrot.lane.b32.xlu0 %v985, 80
  %v1026 = vpop.permute.xlu0 %1025
  %1027 = vrot.lane.b32.xlu0 %v987, 80
  %v1028 = vpop.permute.xlu0 %1027
  %1033 = vrot.lane.b32.xlu0 %v990, 112
  %v1034 = vpop.permute.xlu0 %1033
  %1035 = vrot.lane.b32.xlu0 %v992, 112
  %v1036 = vpop.permute.xlu0 %1035
  %1039 = vrot.lane.b32.xlu0 %v990, 96
  %v1040 = vpop.permute.xlu0 %1039
  %1041 = vrot.lane.b32.xlu0 %v992, 96
  %v1042 = vpop.permute.xlu0 %1041
  %1045 = vrot.lane.b32.xlu0 %v990, 80
  %v1046 = vpop.permute.xlu0 %1045
  %1047 = vrot.lane.b32.xlu0 %v992, 80
  %v1048 = vpop.permute.xlu0 %1047
  %1053 = vrot.lane.b32.xlu0 %v1007, 112
  %v1054 = vpop.permute.xlu0 %1053
  %1055 = vrot.lane.b32.xlu0 %v1009, 112
  %v1056 = vpop.permute.xlu0 %1055
  %1059 = vrot.lane.b32.xlu0 %v1007, 96
  %v1060 = vpop.permute.xlu0 %1059
  %1061 = vrot.lane.b32.xlu0 %v1009, 96
  %v1062 = vpop.permute.xlu0 %1061
  %1065 = vrot.lane.b32.xlu0 %v1007, 80
  %v1066 = vpop.permute.xlu0 %1065
  %1067 = vrot.lane.b32.xlu0 %v1009, 80
  %v1068 = vpop.permute.xlu0 %1067
  %v1071 = vpack.c.bf16 %v985, %v985
  %v1072 = vpack.c.bf16 %v987, %v987
  %v1073 = vpack.c.bf16 %v1014, %v1014
  %v1074 = vpack.c.bf16 %v1016, %v1016
  %v1075 = vpack.c.bf16 %v1020, %v1020
  %v1076 = vpack.c.bf16 %v1022, %v1022
  %v1077 = vpack.c.bf16 %v1026, %v1026
  %v1078 = vpack.c.bf16 %v1028, %v1028
  %v1079 = vpack.c.bf16 %v990, %v990
  %v1080 = vpack.c.bf16 %v992, %v992
  %v1081 = vpack.c.bf16 %v1034, %v1034
  %v1082 = vpack.c.bf16 %v1036, %v1036
  %v1083 = vpack.c.bf16 %v1040, %v1040
  %v1084 = vpack.c.bf16 %v1042, %v1042
  %v1085 = vpack.c.bf16 %v1046, %v1046
  %v1086 = vpack.c.bf16 %v1048, %v1048
  %v1088 = vunpack.c.l.b16 %v1079
  %v1089 = vpack.c.b16 %v1088, %v1088
  %1090 = vrot.lane.b32.xlu0 %v1089, 64
  %v1091 = vpop.permute.xlu0 %1090
  %v1093 = vsel %vm330, %v1071, 0
  %v1096 = vsel %vm330, %v1091, 0
  %1098 = vmatpush.bf16.xpose.msra.mxu0 0
  %1099 = vmatpush.bf16.xpose.msra.mxu0 0
  %1100 = vmatpush.bf16.xpose.msra.mxu0 0
  %1101 = vmatpush.bf16.xpose.msra.mxu0 0
  %1102 = vmatpush.bf16.xpose.msra.mxu0 0
  %1103 = vmatpush.bf16.xpose.msra.mxu0 0
  %1104 = vmatpush.bf16.xpose.msra.mxu0 0
  %1105 = vmatpush.bf16.xpose.msra.mxu0 %v1096
  %1106 = vmatmul.bf16.gmra.mxu0 %v1093
  %v1107 = vpop.f32.mrf.mxu0
  %v1108 = vadd.f32 0.0, %v1107
  %v1109 = vpop.f32.mrf.mxu0
  %1110 = vdwg.mxu0
  %v1112 = vunpack.c.l.b16 %v1080
  %v1113 = vpack.c.b16 %v1112, %v1112
  %1114 = vrot.lane.b32.xlu0 %v1113, 64
  %v1115 = vpop.permute.xlu0 %1114
  %v1117 = vsel %vm330, %v1072, 0
  %v1120 = vsel %vm330, %v1115, 0
  %1122 = vmatpush.bf16.xpose.msra.mxu0 0
  %1123 = vmatpush.bf16.xpose.msra.mxu0 0
  %1124 = vmatpush.bf16.xpose.msra.mxu0 0
  %1125 = vmatpush.bf16.xpose.msra.mxu0 0
  %1126 = vmatpush.bf16.xpose.msra.mxu0 0
  %1127 = vmatpush.bf16.xpose.msra.mxu0 0
  %1128 = vmatpush.bf16.xpose.msra.mxu0 0
  %1129 = vmatpush.bf16.xpose.msra.mxu0 %v1120
  %1130 = vmatmul.bf16.gmra.mxu0 %v1117
  %v1131 = vpop.f32.mrf.mxu0
  %v1132 = vadd.f32 0.0, %v1131
  %v1133 = vpop.f32.mrf.mxu0
  %1134 = vdwg.mxu0
  %v1136 = vunpack.c.l.b16 %v1081
  %v1137 = vpack.c.b16 %v1136, %v1136
  %1138 = vrot.lane.b32.xlu0 %v1137, 64
  %v1139 = vpop.permute.xlu0 %1138
  %v1141 = vsel %vm330, %v1073, 0
  %v1144 = vsel %vm330, %v1139, 0
  %1146 = vmatpush.bf16.xpose.msra.mxu0 0
  %1147 = vmatpush.bf16.xpose.msra.mxu0 0
  %1148 = vmatpush.bf16.xpose.msra.mxu0 0
  %1149 = vmatpush.bf16.xpose.msra.mxu0 0
  %1150 = vmatpush.bf16.xpose.msra.mxu0 0
  %1151 = vmatpush.bf16.xpose.msra.mxu0 0
  %1152 = vmatpush.bf16.xpose.msra.mxu0 0
  %1153 = vmatpush.bf16.xpose.msra.mxu0 %v1144
  %1154 = vmatmul.bf16.gmra.mxu0 %v1141
  %v1155 = vpop.f32.mrf.mxu0
  %v1156 = vadd.f32 0.0, %v1155
  %v1157 = vpop.f32.mrf.mxu0
  %1158 = vdwg.mxu0
  %v1160 = vunpack.c.l.b16 %v1082
  %v1161 = vpack.c.b16 %v1160, %v1160
  %1162 = vrot.lane.b32.xlu0 %v1161, 64
  %v1163 = vpop.permute.xlu0 %1162
  %v1165 = vsel %vm330, %v1074, 0
  %v1168 = vsel %vm330, %v1163, 0
  %1170 = vmatpush.bf16.xpose.msra.mxu0 0
  %1171 = vmatpush.bf16.xpose.msra.mxu0 0
  %1172 = vmatpush.bf16.xpose.msra.mxu0 0
  %1173 = vmatpush.bf16.xpose.msra.mxu0 0
  %1174 = vmatpush.bf16.xpose.msra.mxu0 0
  %1175 = vmatpush.bf16.xpose.msra.mxu0 0
  %1176 = vmatpush.bf16.xpose.msra.mxu0 0
  %1177 = vmatpush.bf16.xpose.msra.mxu0 %v1168
  %1178 = vmatmul.bf16.gmra.mxu0 %v1165
  %v1179 = vpop.f32.mrf.mxu0
  %v1180 = vadd.f32 0.0, %v1179
  %v1181 = vpop.f32.mrf.mxu0
  %1182 = vdwg.mxu0
  %v1184 = vunpack.c.l.b16 %v1083
  %v1185 = vpack.c.b16 %v1184, %v1184
  %1186 = vrot.lane.b32.xlu0 %v1185, 64
  %v1187 = vpop.permute.xlu0 %1186
  %v1189 = vsel %vm330, %v1075, 0
  %v1192 = vsel %vm330, %v1187, 0
  %1194 = vmatpush.bf16.xpose.msra.mxu0 0
  %1195 = vmatpush.bf16.xpose.msra.mxu0 0
  %1196 = vmatpush.bf16.xpose.msra.mxu0 0
  %1197 = vmatpush.bf16.xpose.msra.mxu0 0
  %1198 = vmatpush.bf16.xpose.msra.mxu0 0
  %1199 = vmatpush.bf16.xpose.msra.mxu0 0
  %1200 = vmatpush.bf16.xpose.msra.mxu0 0
  %1201 = vmatpush.bf16.xpose.msra.mxu0 %v1192
  %1202 = vmatmul.bf16.gmra.mxu0 %v1189
  %v1203 = vpop.f32.mrf.mxu0
  %v1204 = vadd.f32 0.0, %v1203
  %v1205 = vpop.f32.mrf.mxu0
  %1206 = vdwg.mxu0
  %v1208 = vunpack.c.l.b16 %v1084
  %v1209 = vpack.c.b16 %v1208, %v1208
  %1210 = vrot.lane.b32.xlu0 %v1209, 64
  %v1211 = vpop.permute.xlu0 %1210
  %v1213 = vsel %vm330, %v1076, 0
  %v1216 = vsel %vm330, %v1211, 0
  %1218 = vmatpush.bf16.xpose.msra.mxu0 0
  %1219 = vmatpush.bf16.xpose.msra.mxu0 0
  %1220 = vmatpush.bf16.xpose.msra.mxu0 0
  %1221 = vmatpush.bf16.xpose.msra.mxu0 0
  %1222 = vmatpush.bf16.xpose.msra.mxu0 0
  %1223 = vmatpush.bf16.xpose.msra.mxu0 0
  %1224 = vmatpush.bf16.xpose.msra.mxu0 0
  %1225 = vmatpush.bf16.xpose.msra.mxu0 %v1216
  %1226 = vmatmul.bf16.gmra.mxu0 %v1213
  %v1227 = vpop.f32.mrf.mxu0
  %v1228 = vadd.f32 0.0, %v1227
  %v1229 = vpop.f32.mrf.mxu0
  %1230 = vdwg.mxu0
  %v1232 = vunpack.c.l.b16 %v1085
  %v1233 = vpack.c.b16 %v1232, %v1232
  %1234 = vrot.lane.b32.xlu0 %v1233, 64
  %v1235 = vpop.permute.xlu0 %1234
  %v1237 = vsel %vm330, %v1077, 0
  %v1240 = vsel %vm330, %v1235, 0
  %1242 = vmatpush.bf16.xpose.msra.mxu0 0
  %1243 = vmatpush.bf16.xpose.msra.mxu0 0
  %1244 = vmatpush.bf16.xpose.msra.mxu0 0
  %1245 = vmatpush.bf16.xpose.msra.mxu0 0
  %1246 = vmatpush.bf16.xpose.msra.mxu0 0
  %1247 = vmatpush.bf16.xpose.msra.mxu0 0
  %1248 = vmatpush.bf16.xpose.msra.mxu0 0
  %1249 = vmatpush.bf16.xpose.msra.mxu0 %v1240
  %1250 = vmatmul.bf16.gmra.mxu0 %v1237
  %v1251 = vpop.f32.mrf.mxu0
  %v1252 = vadd.f32 0.0, %v1251
  %v1253 = vpop.f32.mrf.mxu0
  %1254 = vdwg.mxu0
  %v1256 = vunpack.c.l.b16 %v1086
  %v1257 = vpack.c.b16 %v1256, %v1256
  %1258 = vrot.lane.b32.xlu0 %v1257, 64
  %v1259 = vpop.permute.xlu0 %1258
  %v1261 = vsel %vm330, %v1078, 0
  %v1264 = vsel %vm330, %v1259, 0
  %1266 = vmatpush.bf16.xpose.msra.mxu0 0
  %1267 = vmatpush.bf16.xpose.msra.mxu0 0
  %1268 = vmatpush.bf16.xpose.msra.mxu0 0
  %1269 = vmatpush.bf16.xpose.msra.mxu0 0
  %1270 = vmatpush.bf16.xpose.msra.mxu0 0
  %1271 = vmatpush.bf16.xpose.msra.mxu0 0
  %1272 = vmatpush.bf16.xpose.msra.mxu0 0
  %1273 = vmatpush.bf16.xpose.msra.mxu0 %v1264
  %1274 = vmatmul.bf16.gmra.mxu0 %v1261
  %v1275 = vpop.f32.mrf.mxu0
  %v1276 = vadd.f32 0.0, %v1275
  %v1277 = vpop.f32.mrf.mxu0
  %1278 = vdwg.mxu0
  %v1279 = vmul.f32 %v1108, 0.25
  %v1280 = vmul.f32 %v1132, 0.25
  %v1281 = vmul.f32 %v1156, 0.25
  %v1282 = vmul.f32 %v1180, 0.25
  %v1283 = vmul.f32 %v1204, 0.25
  %v1284 = vmul.f32 %v1228, 0.25
  %v1285 = vmul.f32 %v1252, 0.25
  %v1286 = vmul.f32 %v1276, 0.25
  %v1287 = vadd.f32 %v1279, %v76
  %v1288 = vadd.f32 %v1280, %v76
  %v1289 = vadd.f32 %v1281, %v76
  %v1290 = vadd.f32 %v1282, %v76
  %v1291 = vadd.f32 %v1283, %v76
  %v1292 = vadd.f32 %v1284, %v76
  %v1293 = vadd.f32 %v1285, %v76
  %v1294 = vadd.f32 %v1286, %v76
  %v1295 = vsel %vm534, %v1287, -inf
  %1296 = vmax.xlane.f32.xlu0 %v1295
  %v1297 = vpop.xlane.xlu0 %1296
  %v1298 = vsel %vm534, %v1288, -inf
  %1299 = vmax.xlane.f32.xlu0 %v1298
  %v1300 = vpop.xlane.xlu0 %1299
  %v1301 = vsel %vm534, %v1289, -inf
  %1302 = vmax.xlane.f32.xlu0 %v1301
  %v1303 = vpop.xlane.xlu0 %1302
  %v1304 = vsel %vm534, %v1290, -inf
  %1305 = vmax.xlane.f32.xlu0 %v1304
  %v1306 = vpop.xlane.xlu0 %1305
  %v1307 = vsel %vm534, %v1291, -inf
  %1308 = vmax.xlane.f32.xlu0 %v1307
  %v1309 = vpop.xlane.xlu0 %1308
  %v1310 = vsel %vm534, %v1292, -inf
  %1311 = vmax.xlane.f32.xlu0 %v1310
  %v1312 = vpop.xlane.xlu0 %1311
  %v1313 = vsel %vm534, %v1293, -inf
  %1314 = vmax.xlane.f32.xlu0 %v1313
  %v1315 = vpop.xlane.xlu0 %1314
  %v1316 = vsel %vm534, %v1294, -inf
  %1317 = vmax.xlane.f32.xlu0 %v1316
  %v1318 = vpop.xlane.xlu0 %1317
  %v1319 = vsub.f32 %v1287, %v1297
  %v1320 = vsub.f32 %v1288, %v1300
  %v1321 = vsub.f32 %v1289, %v1303
  %v1322 = vsub.f32 %v1290, %v1306
  %v1323 = vsub.f32 %v1291, %v1309
  %v1324 = vsub.f32 %v1292, %v1312
  %v1325 = vsub.f32 %v1293, %v1315
  %v1326 = vsub.f32 %v1294, %v1318
  %v1327 = vmul.f32 %v1319, 1.442695
  %v1328 = vpow.pop %v1327
  %v1329 = vmul.f32 %v1320, 1.442695
  %v1330 = vpow.pop %v1329
  %v1331 = vmul.f32 %v1321, 1.442695
  %v1332 = vpow.pop %v1331
  %v1333 = vmul.f32 %v1322, 1.442695
  %v1334 = vpow.pop %v1333
  %v1335 = vmul.f32 %v1323, 1.442695
  %v1336 = vpow.pop %v1335
  %v1337 = vmul.f32 %v1324, 1.442695
  %v1338 = vpow.pop %v1337
  %v1339 = vmul.f32 %v1325, 1.442695
  %v1340 = vpow.pop %v1339
  %v1341 = vmul.f32 %v1326, 1.442695
  %v1342 = vpow.pop %v1341
  %v1343 = vsel %vm534, %v1328, 0.0
  %1344 = vadd.xlane.f32.xlu0 %v1343
  %v1345 = vpop.xlane.xlu0 %1344
  %v1346 = vsel %vm534, %v1330, 0.0
  %1347 = vadd.xlane.f32.xlu0 %v1346
  %v1348 = vpop.xlane.xlu0 %1347
  %v1349 = vsel %vm534, %v1332, 0.0
  %1350 = vadd.xlane.f32.xlu0 %v1349
  %v1351 = vpop.xlane.xlu0 %1350
  %v1352 = vsel %vm534, %v1334, 0.0
  %1353 = vadd.xlane.f32.xlu0 %v1352
  %v1354 = vpop.xlane.xlu0 %1353
  %v1355 = vsel %vm534, %v1336, 0.0
  %1356 = vadd.xlane.f32.xlu0 %v1355
  %v1357 = vpop.xlane.xlu0 %1356
  %v1358 = vsel %vm534, %v1338, 0.0
  %1359 = vadd.xlane.f32.xlu0 %v1358
  %v1360 = vpop.xlane.xlu0 %1359
  %v1361 = vsel %vm534, %v1340, 0.0
  %1362 = vadd.xlane.f32.xlu0 %v1361
  %v1363 = vpop.xlane.xlu0 %1362
  %v1364 = vsel %vm534, %v1342, 0.0
  %1365 = vadd.xlane.f32.xlu0 %v1364
  %v1366 = vpop.xlane.xlu0 %1365
  %v1367 = vrcp.pop %v1345
  %v1368 = vrcp.pop %v1348
  %v1369 = vrcp.pop %v1351
  %v1370 = vrcp.pop %v1354
  %v1371 = vrcp.pop %v1357
  %v1372 = vrcp.pop %v1360
  %v1373 = vrcp.pop %v1363
  %v1374 = vrcp.pop %v1366
  %v1375 = vmul.f32 %v1328, %v1367
  %v1376 = vmul.f32 %v1330, %v1368
  %v1377 = vmul.f32 %v1332, %v1369
  %v1378 = vmul.f32 %v1334, %v1370
  %v1379 = vmul.f32 %v1336, %v1371
  %v1380 = vmul.f32 %v1338, %v1372
  %v1381 = vmul.f32 %v1340, %v1373
  %v1382 = vmul.f32 %v1342, %v1374
  %v1383 = vpack.c.bf16 %v1375, %v1375
  %v1384 = vpack.c.bf16 %v1376, %v1376
  %v1385 = vpack.c.bf16 %v1377, %v1377
  %v1386 = vpack.c.bf16 %v1378, %v1378
  %v1387 = vpack.c.bf16 %v1379, %v1379
  %v1388 = vpack.c.bf16 %v1380, %v1380
  %v1389 = vpack.c.bf16 %v1381, %v1381
  %v1390 = vpack.c.bf16 %v1382, %v1382
  %v1391 = vpack.c.bf16 %v1007, %v1007
  %v1392 = vpack.c.bf16 %v1009, %v1009
  %v1393 = vpack.c.bf16 %v1054, %v1054
  %v1394 = vpack.c.bf16 %v1056, %v1056
  %v1395 = vpack.c.bf16 %v1060, %v1060
  %v1396 = vpack.c.bf16 %v1062, %v1062
  %v1397 = vpack.c.bf16 %v1066, %v1066
  %v1398 = vpack.c.bf16 %v1068, %v1068
  %v1400 = vsel %vm534, %v1383, 0
  %v1403 = vsel %vm642, %v1391, 0
  %1405 = vmatpush.bf16.msra.mxu0 0
  %1406 = vmatpush.bf16.msra.mxu0 0
  %1407 = vmatpush.bf16.msra.mxu0 0
  %1408 = vmatpush.bf16.msra.mxu0 0
  %1409 = vmatpush.bf16.msra.mxu0 0
  %1410 = vmatpush.bf16.msra.mxu0 0
  %1411 = vmatpush.bf16.msra.mxu0 0
  %1412 = vmatpush.bf16.msra.mxu0 %v1403
  %1413 = vmatmul.bf16.gmra.mxu0 %v1400
  %v1414 = vpop.f32.mrf.mxu0
  %v1415 = vadd.f32 0.0, %v1414
  %v1416 = vpop.f32.mrf.mxu0
  %1417 = vdwg.mxu0
  %v1419 = vsel %vm534, %v1384, 0
  %v1422 = vsel %vm642, %v1392, 0
  %1424 = vmatpush.bf16.msra.mxu0 0
  %1425 = vmatpush.bf16.msra.mxu0 0
  %1426 = vmatpush.bf16.msra.mxu0 0
  %1427 = vmatpush.bf16.msra.mxu0 0
  %1428 = vmatpush.bf16.msra.mxu0 0
  %1429 = vmatpush.bf16.msra.mxu0 0
  %1430 = vmatpush.bf16.msra.mxu0 0
  %1431 = vmatpush.bf16.msra.mxu0 %v1422
  %1432 = vmatmul.bf16.gmra.mxu0 %v1419
  %v1433 = vpop.f32.mrf.mxu0
  %v1434 = vadd.f32 0.0, %v1433
  %v1435 = vpop.f32.mrf.mxu0
  %1436 = vdwg.mxu0
  %v1438 = vsel %vm534, %v1385, 0
  %v1441 = vsel %vm642, %v1393, 0
  %1443 = vmatpush.bf16.msra.mxu0 0
  %1444 = vmatpush.bf16.msra.mxu0 0
  %1445 = vmatpush.bf16.msra.mxu0 0
  %1446 = vmatpush.bf16.msra.mxu0 0
  %1447 = vmatpush.bf16.msra.mxu0 0
  %1448 = vmatpush.bf16.msra.mxu0 0
  %1449 = vmatpush.bf16.msra.mxu0 0
  %1450 = vmatpush.bf16.msra.mxu0 %v1441
  %1451 = vmatmul.bf16.gmra.mxu0 %v1438
  %v1452 = vpop.f32.mrf.mxu0
  %v1453 = vadd.f32 0.0, %v1452
  %v1454 = vpop.f32.mrf.mxu0
  %1455 = vdwg.mxu0
  %v1457 = vsel %vm534, %v1386, 0
  %v1460 = vsel %vm642, %v1394, 0
  %1462 = vmatpush.bf16.msra.mxu0 0
  %1463 = vmatpush.bf16.msra.mxu0 0
  %1464 = vmatpush.bf16.msra.mxu0 0
  %1465 = vmatpush.bf16.msra.mxu0 0
  %1466 = vmatpush.bf16.msra.mxu0 0
  %1467 = vmatpush.bf16.msra.mxu0 0
  %1468 = vmatpush.bf16.msra.mxu0 0
  %1469 = vmatpush.bf16.msra.mxu0 %v1460
  %1470 = vmatmul.bf16.gmra.mxu0 %v1457
  %v1471 = vpop.f32.mrf.mxu0
  %v1472 = vadd.f32 0.0, %v1471
  %v1473 = vpop.f32.mrf.mxu0
  %1474 = vdwg.mxu0
  %v1476 = vsel %vm534, %v1387, 0
  %v1479 = vsel %vm642, %v1395, 0
  %1481 = vmatpush.bf16.msra.mxu0 0
  %1482 = vmatpush.bf16.msra.mxu0 0
  %1483 = vmatpush.bf16.msra.mxu0 0
  %1484 = vmatpush.bf16.msra.mxu0 0
  %1485 = vmatpush.bf16.msra.mxu0 0
  %1486 = vmatpush.bf16.msra.mxu0 0
  %1487 = vmatpush.bf16.msra.mxu0 0
  %1488 = vmatpush.bf16.msra.mxu0 %v1479
  %1489 = vmatmul.bf16.gmra.mxu0 %v1476
  %v1490 = vpop.f32.mrf.mxu0
  %v1491 = vadd.f32 0.0, %v1490
  %v1492 = vpop.f32.mrf.mxu0
  %1493 = vdwg.mxu0
  %v1495 = vsel %vm534, %v1388, 0
  %v1498 = vsel %vm642, %v1396, 0
  %1500 = vmatpush.bf16.msra.mxu0 0
  %1501 = vmatpush.bf16.msra.mxu0 0
  %1502 = vmatpush.bf16.msra.mxu0 0
  %1503 = vmatpush.bf16.msra.mxu0 0
  %1504 = vmatpush.bf16.msra.mxu0 0
  %1505 = vmatpush.bf16.msra.mxu0 0
  %1506 = vmatpush.bf16.msra.mxu0 0
  %1507 = vmatpush.bf16.msra.mxu0 %v1498
  %1508 = vmatmul.bf16.gmra.mxu0 %v1495
  %v1509 = vpop.f32.mrf.mxu0
  %v1510 = vadd.f32 0.0, %v1509
  %v1511 = vpop.f32.mrf.mxu0
  %1512 = vdwg.mxu0
  %v1514 = vsel %vm534, %v1389, 0
  %v1517 = vsel %vm642, %v1397, 0
  %1519 = vmatpush.bf16.msra.mxu0 0
  %1520 = vmatpush.bf16.msra.mxu0 0
  %1521 = vmatpush.bf16.msra.mxu0 0
  %1522 = vmatpush.bf16.msra.mxu0 0
  %1523 = vmatpush.bf16.msra.mxu0 0
  %1524 = vmatpush.bf16.msra.mxu0 0
  %1525 = vmatpush.bf16.msra.mxu0 0
  %1526 = vmatpush.bf16.msra.mxu0 %v1517
  %1527 = vmatmul.bf16.gmra.mxu0 %v1514
  %v1528 = vpop.f32.mrf.mxu0
  %v1529 = vadd.f32 0.0, %v1528
  %v1530 = vpop.f32.mrf.mxu0
  %1531 = vdwg.mxu0
  %v1533 = vsel %vm534, %v1390, 0
  %v1536 = vsel %vm642, %v1398, 0
  %1538 = vmatpush.bf16.msra.mxu0 0
  %1539 = vmatpush.bf16.msra.mxu0 0
  %1540 = vmatpush.bf16.msra.mxu0 0
  %1541 = vmatpush.bf16.msra.mxu0 0
  %1542 = vmatpush.bf16.msra.mxu0 0
  %1543 = vmatpush.bf16.msra.mxu0 0
  %1544 = vmatpush.bf16.msra.mxu0 0
  %1545 = vmatpush.bf16.msra.mxu0 %v1536
  %1546 = vmatmul.bf16.gmra.mxu0 %v1533
  %v1547 = vpop.f32.mrf.mxu0
  %v1548 = vadd.f32 0.0, %v1547
  %v1549 = vpop.f32.mrf.mxu0
  %1550 = vdwg.mxu0
  %1551 = vst.msk [vmem:[#allocation2] sm:$0xff] %vm330, %v1415
  %1552 = vst.msk [vmem:[#allocation2 + $0x8] sm:$0xff] %vm330, %v1434
  %1555 = vrot.lane.b32.xlu0 %v1453, 16
  %v1556 = vpop.permute.xlu0 %1555
  %1557 = vrot.lane.b32.xlu0 %v1472, 16
  %v1558 = vpop.permute.xlu0 %1557
  %1561 = vst.msk [vmem:[#allocation2] sm:$0xff] %vm802, %v1556
  %1562 = vst.msk [vmem:[#allocation2 + $0x8] sm:$0xff] %vm802, %v1558
  %1565 = vrot.lane.b32.xlu0 %v1491, 32
  %v1566 = vpop.permute.xlu0 %1565
  %1567 = vrot.lane.b32.xlu0 %v1510, 32
  %v1568 = vpop.permute.xlu0 %1567
  %1571 = vst.msk [vmem:[#allocation2] sm:$0xff] %vm813, %v1566
  %1572 = vst.msk [vmem:[#allocation2 + $0x8] sm:$0xff] %vm813, %v1568
  %1575 = vrot.lane.b32.xlu0 %v1529, 48
  %v1576 = vpop.permute.xlu0 %1575
  %1577 = vrot.lane.b32.xlu0 %v1548, 48
  %v1578 = vpop.permute.xlu0 %1577
  %1581 = vst.msk [vmem:[#allocation2] sm:$0xff] %vm824, %v1576
  %1582 = vst.msk [vmem:[#allocation2 + $0x8] sm:$0xff] %vm824, %v1578
  %v1583 = vld [vmem:[#allocation2] sm:$0xff]
  %v1584 = vld [vmem:[#allocation2 + $0x8] sm:$0xff]
  %v1585 = vld [vmem:[%s10] sm:$0xf]
  %v1586 = vld [vmem:[%s10 + $0x4] sm:$0xf]
  %v1587 = vld [vmem:[%s10 + $0x8] sm:$0xf]
  %v1588 = vld [vmem:[%s10 + $0xc] sm:$0xf]
  %v1589 = vld [vmem:[%s10 + $0x10] sm:$0xf]
  %v1590 = vld [vmem:[%s10 + $0x14] sm:$0xf]
  %v1591 = vld [vmem:[%s10 + $0x18] sm:$0xf]
  %v1592 = vld [vmem:[%s10 + $0x1c] sm:$0xf]
  %v1593 = vpack.c.bf16 %v1584, %v1583
  %v1602 = vunpack.c.l.b16 %v1585
  %v1603 = vunpack.c.l.b16 %v1586
  %v1604 = vunpack.c.l.b16 %v1587
  %v1605 = vunpack.c.l.b16 %v1588
  %v1606 = vunpack.c.l.b16 %v1589
  %v1607 = vunpack.c.l.b16 %v1590
  %v1608 = vunpack.c.l.b16 %v1591
  %v1609 = vunpack.c.l.b16 %v1592
  %v1610 = vpack.c.b16 %v1603, %v1602
  %v1611 = vpack.c.b16 %v1605, %v1604
  %v1612 = vpack.c.b16 %v1607, %v1606
  %v1613 = vpack.c.b16 %v1609, %v1608
  %v1619 = vsel %vm83, %v1593, 0
  %1621 = vmatpush.bf16.msra.mxu0 0
  %1622 = vmatpush.bf16.msra.mxu0 0
  %1623 = vmatpush.bf16.msra.mxu0 0
  %1624 = vmatpush.bf16.msra.mxu0 0
  %1625 = vmatpush.bf16.msra.mxu0 %v1613
  %1626 = vmatpush.bf16.msra.mxu0 %v1612
  %1627 = vmatpush.bf16.msra.mxu0 %v1611
  %1628 = vmatpush.bf16.msra.mxu0 %v1610
  %1629 = vmatmul.bf16.gmra.mxu0 %v1619
  %v1630 = vpop.f32.mrf.mxu0
  %v1631 = vadd.f32 0.0, %v1630
  %v1632 = vpop.f32.mrf.mxu0
  %v1633 = vadd.f32 0.0, %v1632
  %1634 = vdwg.mxu0
  %v1635 = vadd.f32 %v879, %v1631
  %v1636 = vadd.f32 %v880, %v1633
  %v1637 = vmul.f32 %v1635, %v1635
  %v1638 = vmul.f32 %v1636, %v1636
  %v1639 = vsel %vm83, %v1637, 0.0
  %1640 = vadd.xlane.f32.xlu0 %v1639
  %v1641 = vpop.xlane.xlu0 %1640
  %v1642 = vsel %vm83, %v1638, 0.0
  %1643 = vadd.xlane.f32.xlu0 %v1642
  %v1644 = vpop.xlane.xlu0 %1643
  %v1645 = vmul.f32 %v1641, %v96
  %v1646 = vmul.f32 %v1644, %v96
  %v1647 = vadd.f32 %v1645, 1e-06
  %v1648 = vadd.f32 %v1646, 1e-06
  %v1649 = vrsqrt.pop %v1647
  %v1650 = vmul.f32 %v1649, %v1647
  %v1651 = vmul.f32 %v1650, %v1649
  %v1652 = vmul.f32 0.5, %v1651
  %v1653 = vsub.f32 1.5, %v1652
  %v1654 = vmul.f32 %v1649, %v1653
  %vm1655 = vweird.f32 %v1647
  %vm1656 = vweird.f32 %v1649
  %vm1657 = vmor %vm1655, %vm1656
  %v1658 = vsel %vm1657, %v1649, %v1654
  %v1659 = vrsqrt.pop %v1648
  %v1660 = vmul.f32 %v1659, %v1648
  %v1661 = vmul.f32 %v1660, %v1659
  %v1662 = vmul.f32 0.5, %v1661
  %v1663 = vsub.f32 1.5, %v1662
  %v1664 = vmul.f32 %v1659, %v1663
  %vm1665 = vweird.f32 %v1648
  %vm1666 = vweird.f32 %v1659
  %vm1667 = vmor %vm1665, %vm1666
  %v1668 = vsel %vm1667, %v1659, %v1664
  %v1669 = vmul.f32 %v1635, %v1658
  %v1670 = vmul.f32 %v1636, %v1668
  %v1672 = vperm.slane %v80, 0
  %v1674 = vmul.f32 %v1669, %v1672
  %v1675 = vmul.f32 %v1670, %v1672
  %v1676 = vld [vmem:[%s11] sm:$0xff]
  %v1677 = vld [vmem:[%s11 + $0x8] sm:$0xff]
  %v1678 = vld [vmem:[%s11 + $0x10] sm:$0xff]
  %v1679 = vld [vmem:[%s11 + $0x18] sm:$0xff]
  %v1680 = vld [vmem:[%s11 + $0x20] sm:$0xff]
  %v1681 = vld [vmem:[%s11 + $0x28] sm:$0xff]
  %v1682 = vld [vmem:[%s11 + $0x30] sm:$0xff]
  %v1683 = vld [vmem:[%s11 + $0x38] sm:$0xff]
  %v1684 = vpack.c.bf16 %v1675, %v1674
  %v1693 = vunpack.c.l.b16 %v1676
  %v1694 = vunpack.c.h.b16 %v1676
  %v1695 = vunpack.c.l.b16 %v1677
  %v1696 = vunpack.c.h.b16 %v1677
  %v1697 = vunpack.c.l.b16 %v1678
  %v1698 = vunpack.c.h.b16 %v1678
  %v1699 = vunpack.c.l.b16 %v1679
  %v1700 = vunpack.c.h.b16 %v1679
  %v1701 = vunpack.c.l.b16 %v1680
  %v1702 = vunpack.c.h.b16 %v1680
  %v1703 = vunpack.c.l.b16 %v1681
  %v1704 = vunpack.c.h.b16 %v1681
  %v1705 = vunpack.c.l.b16 %v1682
  %v1706 = vunpack.c.h.b16 %v1682
  %v1707 = vunpack.c.l.b16 %v1683
  %v1708 = vunpack.c.h.b16 %v1683
  %v1709 = vpack.c.b16 %v1695, %v1693
  %v1710 = vpack.c.b16 %v1696, %v1694
  %v1711 = vpack.c.b16 %v1699, %v1697
  %v1712 = vpack.c.b16 %v1700, %v1698
  %v1713 = vpack.c.b16 %v1703, %v1701
  %v1714 = vpack.c.b16 %v1704, %v1702
  %v1715 = vpack.c.b16 %v1707, %v1705
  %v1716 = vpack.c.b16 %v1708, %v1706
  %v1726 = vsel %vm83, %v1684, 0
  %1728 = vmatpush.bf16.msra.mxu0 0
  %1729 = vmatpush.bf16.msra.mxu0 0
  %1730 = vmatpush.bf16.msra.mxu0 0
  %1731 = vmatpush.bf16.msra.mxu0 0
  %1732 = vmatpush.bf16.msra.mxu0 %v1715
  %1733 = vmatpush.bf16.msra.mxu0 %v1713
  %1734 = vmatpush.bf16.msra.mxu0 %v1711
  %1735 = vmatpush.bf16.msra.mxu0 %v1709
  %1736 = vmatmul.bf16.gmra.mxu0 %v1726
  %v1737 = vpop.f32.mrf.mxu0
  %v1738 = vadd.f32 0.0, %v1737
  %v1739 = vpop.f32.mrf.mxu0
  %v1740 = vadd.f32 0.0, %v1739
  %1741 = vdwg.mxu0
  %1742 = vmatpush.bf16.msra.mxu0 0
  %1743 = vmatpush.bf16.msra.mxu0 0
  %1744 = vmatpush.bf16.msra.mxu0 0
  %1745 = vmatpush.bf16.msra.mxu0 0
  %1746 = vmatpush.bf16.msra.mxu0 %v1716
  %1747 = vmatpush.bf16.msra.mxu0 %v1714
  %1748 = vmatpush.bf16.msra.mxu0 %v1712
  %1749 = vmatpush.bf16.msra.mxu0 %v1710
  %1750 = vmatmul.bf16.gmra.mxu0 %v1726
  %v1751 = vpop.f32.mrf.mxu0
  %v1752 = vadd.f32 0.0, %v1751
  %v1753 = vpop.f32.mrf.mxu0
  %v1754 = vadd.f32 0.0, %v1753
  %1755 = vdwg.mxu0
  %v1756 = vxor.u32 %v1738, 2147483648
  %v1757 = vxor.u32 %v1740, 2147483648
  %v1758 = vmul.f32 %v1756, 1.442695
  %v1759 = vpow.pop %v1758
  %v1760 = vmul.f32 %v1757, 1.442695
  %v1761 = vpow.pop %v1760
  %v1762 = vadd.f32 %v1759, 1.0
  %v1763 = vadd.f32 %v1761, 1.0
  %v1764 = vrcp.pop %v1762
  %v1765 = vmul.f32 %v1762, %v1764
  %v1766 = vsub.f32 1.0, %v1765
  %v1767 = vmul.f32 %v1764, %v1766
  %v1768 = vadd.f32 %v1764, %v1767
  %vm1769 = vweird.f32 %v1762
  %vm1770 = vweird.f32 %v1764
  %vm1771 = vmor %vm1769, %vm1770
  %v1772 = vsel %vm1771, %v1764, %v1768
  %v1773 = vand.u32 2147483647, %v1762
  %vm1774 = vcmp.eq.f32.partialorder %v1773, 8.507059e+37
  %v1775 = vand.u32 %v1762, 2147483648
  %v1776 = vor.u32 1.1754944e-38, %v1775
  %v1777 = vsel %vm1774, %v1776, %v1772
  %v1778 = vmul.f32 1.0, %v1777
  %v1779 = vrcp.pop %v1763
  %v1780 = vmul.f32 %v1763, %v1779
  %v1781 = vsub.f32 1.0, %v1780
  %v1782 = vmul.f32 %v1779, %v1781
  %v1783 = vadd.f32 %v1779, %v1782
  %vm1784 = vweird.f32 %v1763
  %vm1785 = vweird.f32 %v1779
  %vm1786 = vmor %vm1784, %vm1785
  %v1787 = vsel %vm1786, %v1779, %v1783
  %v1788 = vand.u32 2147483647, %v1763
  %vm1789 = vcmp.eq.f32.partialorder %v1788, 8.507059e+37
  %v1790 = vand.u32 %v1763, 2147483648
  %v1791 = vor.u32 1.1754944e-38, %v1790
  %v1792 = vsel %vm1789, %v1791, %v1787
  %v1793 = vmul.f32 1.0, %v1792
  %v1794 = vmul.f32 %v1738, %v1778
  %v1795 = vmul.f32 %v1740, %v1793
  %v1796 = vmul.f32 %v1794, %v1752
  %v1797 = vmul.f32 %v1795, %v1754
  %v1798 = vld [vmem:[%s12] sm:$0xf]
  %v1799 = vld [vmem:[%s12 + $0x4] sm:$0xf]
  %v1800 = vld [vmem:[%s12 + $0x8] sm:$0xf]
  %v1801 = vld [vmem:[%s12 + $0xc] sm:$0xf]
  %v1802 = vld [vmem:[%s12 + $0x10] sm:$0xf]
  %v1803 = vld [vmem:[%s12 + $0x14] sm:$0xf]
  %v1804 = vld [vmem:[%s12 + $0x18] sm:$0xf]
  %v1805 = vld [vmem:[%s12 + $0x1c] sm:$0xf]
  %v1806 = vld [vmem:[%s12 + $0x20] sm:$0xf]
  %v1807 = vld [vmem:[%s12 + $0x24] sm:$0xf]
  %v1808 = vld [vmem:[%s12 + $0x28] sm:$0xf]
  %v1809 = vld [vmem:[%s12 + $0x2c] sm:$0xf]
  %v1810 = vld [vmem:[%s12 + $0x30] sm:$0xf]
  %v1811 = vld [vmem:[%s12 + $0x34] sm:$0xf]
  %v1812 = vld [vmem:[%s12 + $0x38] sm:$0xf]
  %v1813 = vld [vmem:[%s12 + $0x3c] sm:$0xf]
  %v1814 = vpack.c.bf16 %v1797, %v1796
  %v1831 = vunpack.c.l.b16 %v1798
  %v1832 = vunpack.c.l.b16 %v1799
  %v1833 = vunpack.c.l.b16 %v1800
  %v1834 = vunpack.c.l.b16 %v1801
  %v1835 = vunpack.c.l.b16 %v1802
  %v1836 = vunpack.c.l.b16 %v1803
  %v1837 = vunpack.c.l.b16 %v1804
  %v1838 = vunpack.c.l.b16 %v1805
  %v1839 = vunpack.c.l.b16 %v1806
  %v1840 = vunpack.c.l.b16 %v1807
  %v1841 = vunpack.c.l.b16 %v1808
  %v1842 = vunpack.c.l.b16 %v1809
  %v1843 = vunpack.c.l.b16 %v1810
  %v1844 = vunpack.c.l.b16 %v1811
  %v1845 = vunpack.c.l.b16 %v1812
  %v1846 = vunpack.c.l.b16 %v1813
  %v1847 = vpack.c.b16 %v1832, %v1831
  %v1848 = vpack.c.b16 %v1834, %v1833
  %v1849 = vpack.c.b16 %v1836, %v1835
  %v1850 = vpack.c.b16 %v1838, %v1837
  %v1851 = vpack.c.b16 %v1840, %v1839
  %v1852 = vpack.c.b16 %v1842, %v1841
  %v1853 = vpack.c.b16 %v1844, %v1843
  %v1854 = vpack.c.b16 %v1846, %v1845
  %1863 = vmatpush.bf16.msra.mxu0 %v1854
  %1864 = vmatpush.bf16.msra.mxu0 %v1853
  %1865 = vmatpush.bf16.msra.mxu0 %v1852
  %1866 = vmatpush.bf16.msra.mxu0 %v1851
  %1867 = vmatpush.bf16.msra.mxu0 %v1850
  %1868 = vmatpush.bf16.msra.mxu0 %v1849
  %1869 = vmatpush.bf16.msra.mxu0 %v1848
  %1870 = vmatpush.bf16.msra.mxu0 %v1847
  %1871 = vmatmul.bf16.gmra.mxu0 %v1814
  %v1872 = vpop.f32.mrf.mxu0
  %v1873 = vadd.f32 0.0, %v1872
  %v1874 = vpop.f32.mrf.mxu0
  %v1875 = vadd.f32 0.0, %v1874
  %1876 = vdwg.mxu0
  %v1877 = vadd.f32 %v1635, %v1873
  %v1878 = vadd.f32 %v1636, %v1875
  %s1879 = scalar_lea.vmem %s5, 1
  %v1880 = vld [vmem:[%s1879] sm:$0x1]
  %s1881 = scalar_lea.vmem %s6, 1
  %v1882 = vld [vmem:[%s1881] sm:$0x1]
  %v1883 = vmul.f32 %v1877, %v1877
  %v1884 = vmul.f32 %v1878, %v1878
  %v1885 = vsel %vm83, %v1883, 0.0
  %1886 = vadd.xlane.f32.xlu0 %v1885
  %v1887 = vpop.xlane.xlu0 %1886
  %v1888 = vsel %vm83, %v1884, 0.0
  %1889 = vadd.xlane.f32.xlu0 %v1888
  %v1890 = vpop.xlane.xlu0 %1889
  %v1891 = vmul.f32 %v1887, %v96
  %v1892 = vmul.f32 %v1890, %v96
  %v1893 = vadd.f32 %v1891, 1e-06
  %v1894 = vadd.f32 %v1892, 1e-06
  %v1895 = vrsqrt.pop %v1893
  %v1896 = vmul.f32 %v1895, %v1893
  %v1897 = vmul.f32 %v1896, %v1895
  %v1898 = vmul.f32 0.5, %v1897
  %v1899 = vsub.f32 1.5, %v1898
  %v1900 = vmul.f32 %v1895, %v1899
  %vm1901 = vweird.f32 %v1893
  %vm1902 = vweird.f32 %v1895
  %vm1903 = vmor %vm1901, %vm1902
  %v1904 = vsel %vm1903, %v1895, %v1900
  %v1905 = vrsqrt.pop %v1894
  %v1906 = vmul.f32 %v1905, %v1894
  %v1907 = vmul.f32 %v1906, %v1905
  %v1908 = vmul.f32 0.5, %v1907
  %v1909 = vsub.f32 1.5, %v1908
  %v1910 = vmul.f32 %v1905, %v1909
  %vm1911 = vweird.f32 %v1894
  %vm1912 = vweird.f32 %v1905
  %vm1913 = vmor %vm1911, %vm1912
  %v1914 = vsel %vm1913, %v1905, %v1910
  %v1915 = vmul.f32 %v1877, %v1904
  %v1916 = vmul.f32 %v1878, %v1914
  %v1918 = vperm.slane %v1880, 0
  %v1920 = vmul.f32 %v1915, %v1918
  %v1921 = vmul.f32 %v1916, %v1918
  %s1922 = scalar_lea.vmem %s7, 64
  %v1923 = vld [vmem:[%s1922] sm:$0xff]
  %v1924 = vld [vmem:[%s1922 + $0x8] sm:$0xff]
  %v1925 = vld [vmem:[%s1922 + $0x10] sm:$0xff]
  %v1926 = vld [vmem:[%s1922 + $0x18] sm:$0xff]
  %v1927 = vld [vmem:[%s1922 + $0x20] sm:$0xff]
  %v1928 = vld [vmem:[%s1922 + $0x28] sm:$0xff]
  %v1929 = vld [vmem:[%s1922 + $0x30] sm:$0xff]
  %v1930 = vld [vmem:[%s1922 + $0x38] sm:$0xff]
  %v1931 = vpack.c.bf16 %v1921, %v1920
  %v1940 = vunpack.c.l.b16 %v1923
  %v1941 = vunpack.c.h.b16 %v1923
  %v1942 = vunpack.c.l.b16 %v1924
  %v1943 = vunpack.c.h.b16 %v1924
  %v1944 = vunpack.c.l.b16 %v1925
  %v1945 = vunpack.c.h.b16 %v1925
  %v1946 = vunpack.c.l.b16 %v1926
  %v1947 = vunpack.c.h.b16 %v1926
  %v1948 = vunpack.c.l.b16 %v1927
  %v1949 = vunpack.c.h.b16 %v1927
  %v1950 = vunpack.c.l.b16 %v1928
  %v1951 = vunpack.c.h.b16 %v1928
  %v1952 = vunpack.c.l.b16 %v1929
  %v1953 = vunpack.c.h.b16 %v1929
  %v1954 = vunpack.c.l.b16 %v1930
  %v1955 = vunpack.c.h.b16 %v1930
  %v1956 = vpack.c.b16 %v1942, %v1940
  %v1957 = vpack.c.b16 %v1943, %v1941
  %v1958 = vpack.c.b16 %v1946, %v1944
  %v1959 = vpack.c.b16 %v1947, %v1945
  %v1960 = vpack.c.b16 %v1950, %v1948
  %v1961 = vpack.c.b16 %v1951, %v1949
  %v1962 = vpack.c.b16 %v1954, %v1952
  %v1963 = vpack.c.b16 %v1955, %v1953
  %v1973 = vsel %vm83, %v1931, 0
  %1975 = vmatpush.bf16.msra.mxu0 0
  %1976 = vmatpush.bf16.msra.mxu0 0
  %1977 = vmatpush.bf16.msra.mxu0 0
  %1978 = vmatpush.bf16.msra.mxu0 0
  %1979 = vmatpush.bf16.msra.mxu0 %v1962
  %1980 = vmatpush.bf16.msra.mxu0 %v1960
  %1981 = vmatpush.bf16.msra.mxu0 %v1958
  %1982 = vmatpush.bf16.msra.mxu0 %v1956
  %1983 = vmatmul.bf16.gmra.mxu0 %v1973
  %v1984 = vpop.f32.mrf.mxu0
  %v1985 = vadd.f32 0.0, %v1984
  %v1986 = vpop.f32.mrf.mxu0
  %v1987 = vadd.f32 0.0, %v1986
  %1988 = vdwg.mxu0
  %1989 = vmatpush.bf16.msra.mxu0 0
  %1990 = vmatpush.bf16.msra.mxu0 0
  %1991 = vmatpush.bf16.msra.mxu0 0
  %1992 = vmatpush.bf16.msra.mxu0 0
  %1993 = vmatpush.bf16.msra.mxu0 %v1963
  %1994 = vmatpush.bf16.msra.mxu0 %v1961
  %1995 = vmatpush.bf16.msra.mxu0 %v1959
  %1996 = vmatpush.bf16.msra.mxu0 %v1957
  %1997 = vmatmul.bf16.gmra.mxu0 %v1973
  %v1998 = vpop.f32.mrf.mxu0
  %v1999 = vadd.f32 0.0, %v1998
  %v2000 = vpop.f32.mrf.mxu0
  %v2001 = vadd.f32 0.0, %v2000
  %2002 = vdwg.mxu0
  %v2003 = vmul.f32 %v1985, %v51
  %v2004 = vmul.f32 %v1987, %v52
  %v2005 = vpack.c.bf16 %v1987, %v1985
  %2006 = vmatpush.bf16.msra.mxu0 %v250
  %2007 = vmatpush.bf16.msra.mxu0 %v249
  %2008 = vmatpush.bf16.msra.mxu0 %v248
  %2009 = vmatpush.bf16.msra.mxu0 %v247
  %2010 = vmatpush.bf16.msra.mxu0 %v246
  %2011 = vmatpush.bf16.msra.mxu0 %v245
  %2012 = vmatpush.bf16.msra.mxu0 %v244
  %2013 = vmatpush.bf16.msra.mxu0 %v243
  %2014 = vmatmul.bf16.gmra.mxu0 %v2005
  %v2015 = vpop.f32.mrf.mxu0
  %v2016 = vadd.f32 0.0, %v2015
  %v2017 = vpop.f32.mrf.mxu0
  %v2018 = vadd.f32 0.0, %v2017
  %2019 = vdwg.mxu0
  %v2020 = vmul.f32 %v2016, %v53
  %v2021 = vmul.f32 %v2018, %v54
  %v2022 = vadd.f32 %v2003, %v2020
  %v2023 = vadd.f32 %v2004, %v2021
  %2026 = vrot.lane.b32.xlu0 %v2022, 112
  %v2027 = vpop.permute.xlu0 %2026
  %2028 = vrot.lane.b32.xlu0 %v2023, 112
  %v2029 = vpop.permute.xlu0 %2028
  %2032 = vrot.lane.b32.xlu0 %v2022, 96
  %v2033 = vpop.permute.xlu0 %2032
  %2034 = vrot.lane.b32.xlu0 %v2023, 96
  %v2035 = vpop.permute.xlu0 %2034
  %2038 = vrot.lane.b32.xlu0 %v2022, 80
  %v2039 = vpop.permute.xlu0 %2038
  %2040 = vrot.lane.b32.xlu0 %v2023, 80
  %v2041 = vpop.permute.xlu0 %2040
  %2046 = vrot.lane.b32.xlu0 %v1999, 112
  %v2047 = vpop.permute.xlu0 %2046
  %2048 = vrot.lane.b32.xlu0 %v2001, 112
  %v2049 = vpop.permute.xlu0 %2048
  %2052 = vrot.lane.b32.xlu0 %v1999, 96
  %v2053 = vpop.permute.xlu0 %2052
  %2054 = vrot.lane.b32.xlu0 %v2001, 96
  %v2055 = vpop.permute.xlu0 %2054
  %2058 = vrot.lane.b32.xlu0 %v1999, 80
  %v2059 = vpop.permute.xlu0 %2058
  %2060 = vrot.lane.b32.xlu0 %v2001, 80
  %v2061 = vpop.permute.xlu0 %2060
  %v2064 = vpack.c.bf16 %v2022, %v2022
  %v2065 = vpack.c.bf16 %v2023, %v2023
  %v2066 = vpack.c.bf16 %v2027, %v2027
  %v2067 = vpack.c.bf16 %v2029, %v2029
  %v2068 = vpack.c.bf16 %v2033, %v2033
  %v2069 = vpack.c.bf16 %v2035, %v2035
  %v2070 = vpack.c.bf16 %v2039, %v2039
  %v2071 = vpack.c.bf16 %v2041, %v2041
  %v2073 = vunpack.c.l.b16 %v2064
  %v2074 = vpack.c.b16 %v2073, %v2073
  %2075 = vrot.lane.b32.xlu0 %v2074, 64
  %v2076 = vpop.permute.xlu0 %2075
  %v2078 = vsel %vm330, %v2064, 0
  %v2081 = vsel %vm330, %v2076, 0
  %2083 = vmatpush.bf16.xpose.msra.mxu0 0
  %2084 = vmatpush.bf16.xpose.msra.mxu0 0
  %2085 = vmatpush.bf16.xpose.msra.mxu0 0
  %2086 = vmatpush.bf16.xpose.msra.mxu0 0
  %2087 = vmatpush.bf16.xpose.msra.mxu0 0
  %2088 = vmatpush.bf16.xpose.msra.mxu0 0
  %2089 = vmatpush.bf16.xpose.msra.mxu0 0
  %2090 = vmatpush.bf16.xpose.msra.mxu0 %v2081
  %2091 = vmatmul.bf16.gmra.mxu0 %v2078
  %v2092 = vpop.f32.mrf.mxu0
  %v2093 = vadd.f32 0.0, %v2092
  %v2094 = vpop.f32.mrf.mxu0
  %2095 = vdwg.mxu0
  %v2097 = vunpack.c.l.b16 %v2065
  %v2098 = vpack.c.b16 %v2097, %v2097
  %2099 = vrot.lane.b32.xlu0 %v2098, 64
  %v2100 = vpop.permute.xlu0 %2099
  %v2102 = vsel %vm330, %v2065, 0
  %v2105 = vsel %vm330, %v2100, 0
  %2107 = vmatpush.bf16.xpose.msra.mxu0 0
  %2108 = vmatpush.bf16.xpose.msra.mxu0 0
  %2109 = vmatpush.bf16.xpose.msra.mxu0 0
  %2110 = vmatpush.bf16.xpose.msra.mxu0 0
  %2111 = vmatpush.bf16.xpose.msra.mxu0 0
  %2112 = vmatpush.bf16.xpose.msra.mxu0 0
  %2113 = vmatpush.bf16.xpose.msra.mxu0 0
  %2114 = vmatpush.bf16.xpose.msra.mxu0 %v2105
  %2115 = vmatmul.bf16.gmra.mxu0 %v2102
  %v2116 = vpop.f32.mrf.mxu0
  %v2117 = vadd.f32 0.0, %v2116
  %v2118 = vpop.f32.mrf.mxu0
  %2119 = vdwg.mxu0
  %v2121 = vunpack.c.l.b16 %v2066
  %v2122 = vpack.c.b16 %v2121, %v2121
  %2123 = vrot.lane.b32.xlu0 %v2122, 64
  %v2124 = vpop.permute.xlu0 %2123
  %v2126 = vsel %vm330, %v2066, 0
  %v2129 = vsel %vm330, %v2124, 0
  %2131 = vmatpush.bf16.xpose.msra.mxu0 0
  %2132 = vmatpush.bf16.xpose.msra.mxu0 0
  %2133 = vmatpush.bf16.xpose.msra.mxu0 0
  %2134 = vmatpush.bf16.xpose.msra.mxu0 0
  %2135 = vmatpush.bf16.xpose.msra.mxu0 0
  %2136 = vmatpush.bf16.xpose.msra.mxu0 0
  %2137 = vmatpush.bf16.xpose.msra.mxu0 0
  %2138 = vmatpush.bf16.xpose.msra.mxu0 %v2129
  %2139 = vmatmul.bf16.gmra.mxu0 %v2126
  %v2140 = vpop.f32.mrf.mxu0
  %v2141 = vadd.f32 0.0, %v2140
  %v2142 = vpop.f32.mrf.mxu0
  %2143 = vdwg.mxu0
  %v2145 = vunpack.c.l.b16 %v2067
  %v2146 = vpack.c.b16 %v2145, %v2145
  %2147 = vrot.lane.b32.xlu0 %v2146, 64
  %v2148 = vpop.permute.xlu0 %2147
  %v2150 = vsel %vm330, %v2067, 0
  %v2153 = vsel %vm330, %v2148, 0
  %2155 = vmatpush.bf16.xpose.msra.mxu0 0
  %2156 = vmatpush.bf16.xpose.msra.mxu0 0
  %2157 = vmatpush.bf16.xpose.msra.mxu0 0
  %2158 = vmatpush.bf16.xpose.msra.mxu0 0
  %2159 = vmatpush.bf16.xpose.msra.mxu0 0
  %2160 = vmatpush.bf16.xpose.msra.mxu0 0
  %2161 = vmatpush.bf16.xpose.msra.mxu0 0
  %2162 = vmatpush.bf16.xpose.msra.mxu0 %v2153
  %2163 = vmatmul.bf16.gmra.mxu0 %v2150
  %v2164 = vpop.f32.mrf.mxu0
  %v2165 = vadd.f32 0.0, %v2164
  %v2166 = vpop.f32.mrf.mxu0
  %2167 = vdwg.mxu0
  %v2169 = vunpack.c.l.b16 %v2068
  %v2170 = vpack.c.b16 %v2169, %v2169
  %2171 = vrot.lane.b32.xlu0 %v2170, 64
  %v2172 = vpop.permute.xlu0 %2171
  %v2174 = vsel %vm330, %v2068, 0
  %v2177 = vsel %vm330, %v2172, 0
  %2179 = vmatpush.bf16.xpose.msra.mxu0 0
  %2180 = vmatpush.bf16.xpose.msra.mxu0 0
  %2181 = vmatpush.bf16.xpose.msra.mxu0 0
  %2182 = vmatpush.bf16.xpose.msra.mxu0 0
  %2183 = vmatpush.bf16.xpose.msra.mxu0 0
  %2184 = vmatpush.bf16.xpose.msra.mxu0 0
  %2185 = vmatpush.bf16.xpose.msra.mxu0 0
  %2186 = vmatpush.bf16.xpose.msra.mxu0 %v2177
  %2187 = vmatmul.bf16.gmra.mxu0 %v2174
  %v2188 = vpop.f32.mrf.mxu0
  %v2189 = vadd.f32 0.0, %v2188
  %v2190 = vpop.f32.mrf.mxu0
  %2191 = vdwg.mxu0
  %v2193 = vunpack.c.l.b16 %v2069
  %v2194 = vpack.c.b16 %v2193, %v2193
  %2195 = vrot.lane.b32.xlu0 %v2194, 64
  %v2196 = vpop.permute.xlu0 %2195
  %v2198 = vsel %vm330, %v2069, 0
  %v2201 = vsel %vm330, %v2196, 0
  %2203 = vmatpush.bf16.xpose.msra.mxu0 0
  %2204 = vmatpush.bf16.xpose.msra.mxu0 0
  %2205 = vmatpush.bf16.xpose.msra.mxu0 0
  %2206 = vmatpush.bf16.xpose.msra.mxu0 0
  %2207 = vmatpush.bf16.xpose.msra.mxu0 0
  %2208 = vmatpush.bf16.xpose.msra.mxu0 0
  %2209 = vmatpush.bf16.xpose.msra.mxu0 0
  %2210 = vmatpush.bf16.xpose.msra.mxu0 %v2201
  %2211 = vmatmul.bf16.gmra.mxu0 %v2198
  %v2212 = vpop.f32.mrf.mxu0
  %v2213 = vadd.f32 0.0, %v2212
  %v2214 = vpop.f32.mrf.mxu0
  %2215 = vdwg.mxu0
  %v2217 = vunpack.c.l.b16 %v2070
  %v2218 = vpack.c.b16 %v2217, %v2217
  %2219 = vrot.lane.b32.xlu0 %v2218, 64
  %v2220 = vpop.permute.xlu0 %2219
  %v2222 = vsel %vm330, %v2070, 0
  %v2225 = vsel %vm330, %v2220, 0
  %2227 = vmatpush.bf16.xpose.msra.mxu0 0
  %2228 = vmatpush.bf16.xpose.msra.mxu0 0
  %2229 = vmatpush.bf16.xpose.msra.mxu0 0
  %2230 = vmatpush.bf16.xpose.msra.mxu0 0
  %2231 = vmatpush.bf16.xpose.msra.mxu0 0
  %2232 = vmatpush.bf16.xpose.msra.mxu0 0
  %2233 = vmatpush.bf16.xpose.msra.mxu0 0
  %2234 = vmatpush.bf16.xpose.msra.mxu0 %v2225
  %2235 = vmatmul.bf16.gmra.mxu0 %v2222
  %v2236 = vpop.f32.mrf.mxu0
  %v2237 = vadd.f32 0.0, %v2236
  %v2238 = vpop.f32.mrf.mxu0
  %2239 = vdwg.mxu0
  %v2241 = vunpack.c.l.b16 %v2071
  %v2242 = vpack.c.b16 %v2241, %v2241
  %2243 = vrot.lane.b32.xlu0 %v2242, 64
  %v2244 = vpop.permute.xlu0 %2243
  %v2246 = vsel %vm330, %v2071, 0
  %v2249 = vsel %vm330, %v2244, 0
  %2251 = vmatpush.bf16.xpose.msra.mxu0 0
  %2252 = vmatpush.bf16.xpose.msra.mxu0 0
  %2253 = vmatpush.bf16.xpose.msra.mxu0 0
  %2254 = vmatpush.bf16.xpose.msra.mxu0 0
  %2255 = vmatpush.bf16.xpose.msra.mxu0 0
  %2256 = vmatpush.bf16.xpose.msra.mxu0 0
  %2257 = vmatpush.bf16.xpose.msra.mxu0 0
  %2258 = vmatpush.bf16.xpose.msra.mxu0 %v2249
  %2259 = vmatmul.bf16.gmra.mxu0 %v2246
  %v2260 = vpop.f32.mrf.mxu0
  %v2261 = vadd.f32 0.0, %v2260
  %v2262 = vpop.f32.mrf.mxu0
  %2263 = vdwg.mxu0
  %v2264 = vmul.f32 %v2093, 0.25
  %v2265 = vmul.f32 %v2117, 0.25
  %v2266 = vmul.f32 %v2141, 0.25
  %v2267 = vmul.f32 %v2165, 0.25
  %v2268 = vmul.f32 %v2189, 0.25
  %v2269 = vmul.f32 %v2213, 0.25
  %v2270 = vmul.f32 %v2237, 0.25
  %v2271 = vmul.f32 %v2261, 0.25
  %v2272 = vadd.f32 %v2264, %v76
  %v2273 = vadd.f32 %v2265, %v76
  %v2274 = vadd.f32 %v2266, %v76
  %v2275 = vadd.f32 %v2267, %v76
  %v2276 = vadd.f32 %v2268, %v76
  %v2277 = vadd.f32 %v2269, %v76
  %v2278 = vadd.f32 %v2270, %v76
  %v2279 = vadd.f32 %v2271, %v76
  %v2280 = vsel %vm534, %v2272, -inf
  %2281 = vmax.xlane.f32.xlu0 %v2280
  %v2282 = vpop.xlane.xlu0 %2281
  %v2283 = vsel %vm534, %v2273, -inf
  %2284 = vmax.xlane.f32.xlu0 %v2283
  %v2285 = vpop.xlane.xlu0 %2284
  %v2286 = vsel %vm534, %v2274, -inf
  %2287 = vmax.xlane.f32.xlu0 %v2286
  %v2288 = vpop.xlane.xlu0 %2287
  %v2289 = vsel %vm534, %v2275, -inf
  %2290 = vmax.xlane.f32.xlu0 %v2289
  %v2291 = vpop.xlane.xlu0 %2290
  %v2292 = vsel %vm534, %v2276, -inf
  %2293 = vmax.xlane.f32.xlu0 %v2292
  %v2294 = vpop.xlane.xlu0 %2293
  %v2295 = vsel %vm534, %v2277, -inf
  %2296 = vmax.xlane.f32.xlu0 %v2295
  %v2297 = vpop.xlane.xlu0 %2296
  %v2298 = vsel %vm534, %v2278, -inf
  %2299 = vmax.xlane.f32.xlu0 %v2298
  %v2300 = vpop.xlane.xlu0 %2299
  %v2301 = vsel %vm534, %v2279, -inf
  %2302 = vmax.xlane.f32.xlu0 %v2301
  %v2303 = vpop.xlane.xlu0 %2302
  %v2304 = vsub.f32 %v2272, %v2282
  %v2305 = vsub.f32 %v2273, %v2285
  %v2306 = vsub.f32 %v2274, %v2288
  %v2307 = vsub.f32 %v2275, %v2291
  %v2308 = vsub.f32 %v2276, %v2294
  %v2309 = vsub.f32 %v2277, %v2297
  %v2310 = vsub.f32 %v2278, %v2300
  %v2311 = vsub.f32 %v2279, %v2303
  %v2312 = vmul.f32 %v2304, 1.442695
  %v2313 = vpow.pop %v2312
  %v2314 = vmul.f32 %v2305, 1.442695
  %v2315 = vpow.pop %v2314
  %v2316 = vmul.f32 %v2306, 1.442695
  %v2317 = vpow.pop %v2316
  %v2318 = vmul.f32 %v2307, 1.442695
  %v2319 = vpow.pop %v2318
  %v2320 = vmul.f32 %v2308, 1.442695
  %v2321 = vpow.pop %v2320
  %v2322 = vmul.f32 %v2309, 1.442695
  %v2323 = vpow.pop %v2322
  %v2324 = vmul.f32 %v2310, 1.442695
  %v2325 = vpow.pop %v2324
  %v2326 = vmul.f32 %v2311, 1.442695
  %v2327 = vpow.pop %v2326
  %v2328 = vsel %vm534, %v2313, 0.0
  %2329 = vadd.xlane.f32.xlu0 %v2328
  %v2330 = vpop.xlane.xlu0 %2329
  %v2331 = vsel %vm534, %v2315, 0.0
  %2332 = vadd.xlane.f32.xlu0 %v2331
  %v2333 = vpop.xlane.xlu0 %2332
  %v2334 = vsel %vm534, %v2317, 0.0
  %2335 = vadd.xlane.f32.xlu0 %v2334
  %v2336 = vpop.xlane.xlu0 %2335
  %v2337 = vsel %vm534, %v2319, 0.0
  %2338 = vadd.xlane.f32.xlu0 %v2337
  %v2339 = vpop.xlane.xlu0 %2338
  %v2340 = vsel %vm534, %v2321, 0.0
  %2341 = vadd.xlane.f32.xlu0 %v2340
  %v2342 = vpop.xlane.xlu0 %2341
  %v2343 = vsel %vm534, %v2323, 0.0
  %2344 = vadd.xlane.f32.xlu0 %v2343
  %v2345 = vpop.xlane.xlu0 %2344
  %v2346 = vsel %vm534, %v2325, 0.0
  %2347 = vadd.xlane.f32.xlu0 %v2346
  %v2348 = vpop.xlane.xlu0 %2347
  %v2349 = vsel %vm534, %v2327, 0.0
  %2350 = vadd.xlane.f32.xlu0 %v2349
  %v2351 = vpop.xlane.xlu0 %2350
  %v2352 = vrcp.pop %v2330
  %v2353 = vrcp.pop %v2333
  %v2354 = vrcp.pop %v2336
  %v2355 = vrcp.pop %v2339
  %v2356 = vrcp.pop %v2342
  %v2357 = vrcp.pop %v2345
  %v2358 = vrcp.pop %v2348
  %v2359 = vrcp.pop %v2351
  %v2360 = vmul.f32 %v2313, %v2352
  %v2361 = vmul.f32 %v2315, %v2353
  %v2362 = vmul.f32 %v2317, %v2354
  %v2363 = vmul.f32 %v2319, %v2355
  %v2364 = vmul.f32 %v2321, %v2356
  %v2365 = vmul.f32 %v2323, %v2357
  %v2366 = vmul.f32 %v2325, %v2358
  %v2367 = vmul.f32 %v2327, %v2359
  %v2368 = vpack.c.bf16 %v2360, %v2360
  %v2369 = vpack.c.bf16 %v2361, %v2361
  %v2370 = vpack.c.bf16 %v2362, %v2362
  %v2371 = vpack.c.bf16 %v2363, %v2363
  %v2372 = vpack.c.bf16 %v2364, %v2364
  %v2373 = vpack.c.bf16 %v2365, %v2365
  %v2374 = vpack.c.bf16 %v2366, %v2366
  %v2375 = vpack.c.bf16 %v2367, %v2367
  %v2376 = vpack.c.bf16 %v1999, %v1999
  %v2377 = vpack.c.bf16 %v2001, %v2001
  %v2378 = vpack.c.bf16 %v2047, %v2047
  %v2379 = vpack.c.bf16 %v2049, %v2049
  %v2380 = vpack.c.bf16 %v2053, %v2053
  %v2381 = vpack.c.bf16 %v2055, %v2055
  %v2382 = vpack.c.bf16 %v2059, %v2059
  %v2383 = vpack.c.bf16 %v2061, %v2061
  %v2385 = vsel %vm534, %v2368, 0
  %v2388 = vsel %vm642, %v2376, 0
  %2390 = vmatpush.bf16.msra.mxu0 0
  %2391 = vmatpush.bf16.msra.mxu0 0
  %2392 = vmatpush.bf16.msra.mxu0 0
  %2393 = vmatpush.bf16.msra.mxu0 0
  %2394 = vmatpush.bf16.msra.mxu0 0
  %2395 = vmatpush.bf16.msra.mxu0 0
  %2396 = vmatpush.bf16.msra.mxu0 0
  %2397 = vmatpush.bf16.msra.mxu0 %v2388
  %2398 = vmatmul.bf16.gmra.mxu0 %v2385
  %v2399 = vpop.f32.mrf.mxu0
  %v2400 = vadd.f32 0.0, %v2399
  %v2401 = vpop.f32.mrf.mxu0
  %2402 = vdwg.mxu0
  %v2404 = vsel %vm534, %v2369, 0
  %v2407 = vsel %vm642, %v2377, 0
  %2409 = vmatpush.bf16.msra.mxu0 0
  %2410 = vmatpush.bf16.msra.mxu0 0
  %2411 = vmatpush.bf16.msra.mxu0 0
  %2412 = vmatpush.bf16.msra.mxu0 0
  %2413 = vmatpush.bf16.msra.mxu0 0
  %2414 = vmatpush.bf16.msra.mxu0 0
  %2415 = vmatpush.bf16.msra.mxu0 0
  %2416 = vmatpush.bf16.msra.mxu0 %v2407
  %2417 = vmatmul.bf16.gmra.mxu0 %v2404
  %v2418 = vpop.f32.mrf.mxu0
  %v2419 = vadd.f32 0.0, %v2418
  %v2420 = vpop.f32.mrf.mxu0
  %2421 = vdwg.mxu0
  %v2423 = vsel %vm534, %v2370, 0
  %v2426 = vsel %vm642, %v2378, 0
  %2428 = vmatpush.bf16.msra.mxu0 0
  %2429 = vmatpush.bf16.msra.mxu0 0
  %2430 = vmatpush.bf16.msra.mxu0 0
  %2431 = vmatpush.bf16.msra.mxu0 0
  %2432 = vmatpush.bf16.msra.mxu0 0
  %2433 = vmatpush.bf16.msra.mxu0 0
  %2434 = vmatpush.bf16.msra.mxu0 0
  %2435 = vmatpush.bf16.msra.mxu0 %v2426
  %2436 = vmatmul.bf16.gmra.mxu0 %v2423
  %v2437 = vpop.f32.mrf.mxu0
  %v2438 = vadd.f32 0.0, %v2437
  %v2439 = vpop.f32.mrf.mxu0
  %2440 = vdwg.mxu0
  %v2442 = vsel %vm534, %v2371, 0
  %v2445 = vsel %vm642, %v2379, 0
  %2447 = vmatpush.bf16.msra.mxu0 0
  %2448 = vmatpush.bf16.msra.mxu0 0
  %2449 = vmatpush.bf16.msra.mxu0 0
  %2450 = vmatpush.bf16.msra.mxu0 0
  %2451 = vmatpush.bf16.msra.mxu0 0
  %2452 = vmatpush.bf16.msra.mxu0 0
  %2453 = vmatpush.bf16.msra.mxu0 0
  %2454 = vmatpush.bf16.msra.mxu0 %v2445
  %2455 = vmatmul.bf16.gmra.mxu0 %v2442
  %v2456 = vpop.f32.mrf.mxu0
  %v2457 = vadd.f32 0.0, %v2456
  %v2458 = vpop.f32.mrf.mxu0
  %2459 = vdwg.mxu0
  %v2461 = vsel %vm534, %v2372, 0
  %v2464 = vsel %vm642, %v2380, 0
  %2466 = vmatpush.bf16.msra.mxu0 0
  %2467 = vmatpush.bf16.msra.mxu0 0
  %2468 = vmatpush.bf16.msra.mxu0 0
  %2469 = vmatpush.bf16.msra.mxu0 0
  %2470 = vmatpush.bf16.msra.mxu0 0
  %2471 = vmatpush.bf16.msra.mxu0 0
  %2472 = vmatpush.bf16.msra.mxu0 0
  %2473 = vmatpush.bf16.msra.mxu0 %v2464
  %2474 = vmatmul.bf16.gmra.mxu0 %v2461
  %v2475 = vpop.f32.mrf.mxu0
  %v2476 = vadd.f32 0.0, %v2475
  %v2477 = vpop.f32.mrf.mxu0
  %2478 = vdwg.mxu0
  %v2480 = vsel %vm534, %v2373, 0
  %v2483 = vsel %vm642, %v2381, 0
  %2485 = vmatpush.bf16.msra.mxu0 0
  %2486 = vmatpush.bf16.msra.mxu0 0
  %2487 = vmatpush.bf16.msra.mxu0 0
  %2488 = vmatpush.bf16.msra.mxu0 0
  %2489 = vmatpush.bf16.msra.mxu0 0
  %2490 = vmatpush.bf16.msra.mxu0 0
  %2491 = vmatpush.bf16.msra.mxu0 0
  %2492 = vmatpush.bf16.msra.mxu0 %v2483
  %2493 = vmatmul.bf16.gmra.mxu0 %v2480
  %v2494 = vpop.f32.mrf.mxu0
  %v2495 = vadd.f32 0.0, %v2494
  %v2496 = vpop.f32.mrf.mxu0
  %2497 = vdwg.mxu0
  %v2499 = vsel %vm534, %v2374, 0
  %v2502 = vsel %vm642, %v2382, 0
  %2504 = vmatpush.bf16.msra.mxu0 0
  %2505 = vmatpush.bf16.msra.mxu0 0
  %2506 = vmatpush.bf16.msra.mxu0 0
  %2507 = vmatpush.bf16.msra.mxu0 0
  %2508 = vmatpush.bf16.msra.mxu0 0
  %2509 = vmatpush.bf16.msra.mxu0 0
  %2510 = vmatpush.bf16.msra.mxu0 0
  %2511 = vmatpush.bf16.msra.mxu0 %v2502
  %2512 = vmatmul.bf16.gmra.mxu0 %v2499
  %v2513 = vpop.f32.mrf.mxu0
  %v2514 = vadd.f32 0.0, %v2513
  %v2515 = vpop.f32.mrf.mxu0
  %2516 = vdwg.mxu0
  %v2518 = vsel %vm534, %v2375, 0
  %v2521 = vsel %vm642, %v2383, 0
  %2523 = vmatpush.bf16.msra.mxu0 0
  %2524 = vmatpush.bf16.msra.mxu0 0
  %2525 = vmatpush.bf16.msra.mxu0 0
  %2526 = vmatpush.bf16.msra.mxu0 0
  %2527 = vmatpush.bf16.msra.mxu0 0
  %2528 = vmatpush.bf16.msra.mxu0 0
  %2529 = vmatpush.bf16.msra.mxu0 0
  %2530 = vmatpush.bf16.msra.mxu0 %v2521
  %2531 = vmatmul.bf16.gmra.mxu0 %v2518
  %v2532 = vpop.f32.mrf.mxu0
  %v2533 = vadd.f32 0.0, %v2532
  %v2534 = vpop.f32.mrf.mxu0
  %2535 = vdwg.mxu0
  %2536 = vst.msk [vmem:[#allocation2] sm:$0xff] %vm330, %v2400
  %2537 = vst.msk [vmem:[#allocation2 + $0x8] sm:$0xff] %vm330, %v2419
  %2540 = vrot.lane.b32.xlu0 %v2438, 16
  %v2541 = vpop.permute.xlu0 %2540
  %2542 = vrot.lane.b32.xlu0 %v2457, 16
  %v2543 = vpop.permute.xlu0 %2542
  %2546 = vst.msk [vmem:[#allocation2] sm:$0xff] %vm802, %v2541
  %2547 = vst.msk [vmem:[#allocation2 + $0x8] sm:$0xff] %vm802, %v2543
  %2550 = vrot.lane.b32.xlu0 %v2476, 32
  %v2551 = vpop.permute.xlu0 %2550
  %2552 = vrot.lane.b32.xlu0 %v2495, 32
  %v2553 = vpop.permute.xlu0 %2552
  %2556 = vst.msk [vmem:[#allocation2] sm:$0xff] %vm813, %v2551
  %2557 = vst.msk [vmem:[#allocation2 + $0x8] sm:$0xff] %vm813, %v2553
  %2560 = vrot.lane.b32.xlu0 %v2514, 48
  %v2561 = vpop.permute.xlu0 %2560
  %2562 = vrot.lane.b32.xlu0 %v2533, 48
  %v2563 = vpop.permute.xlu0 %2562
  %2566 = vst.msk [vmem:[#allocation2] sm:$0xff] %vm824, %v2561
  %2567 = vst.msk [vmem:[#allocation2 + $0x8] sm:$0xff] %vm824, %v2563
  %v2568 = vld [vmem:[#allocation2] sm:$0xff]
  %v2569 = vld [vmem:[#allocation2 + $0x8] sm:$0xff]
  %s2570 = scalar_lea.vmem %s8, 32
  %v2571 = vld [vmem:[%s2570] sm:$0xf]
  %v2572 = vld [vmem:[%s2570 + $0x4] sm:$0xf]
  %v2573 = vld [vmem:[%s2570 + $0x8] sm:$0xf]
  %v2574 = vld [vmem:[%s2570 + $0xc] sm:$0xf]
  %v2575 = vld [vmem:[%s2570 + $0x10] sm:$0xf]
  %v2576 = vld [vmem:[%s2570 + $0x14] sm:$0xf]
  %v2577 = vld [vmem:[%s2570 + $0x18] sm:$0xf]
  %v2578 = vld [vmem:[%s2570 + $0x1c] sm:$0xf]
  %v2579 = vpack.c.bf16 %v2569, %v2568
  %v2588 = vunpack.c.l.b16 %v2571
  %v2589 = vunpack.c.l.b16 %v2572
  %v2590 = vunpack.c.l.b16 %v2573
  %v2591 = vunpack.c.l.b16 %v2574
  %v2592 = vunpack.c.l.b16 %v2575
  %v2593 = vunpack.c.l.b16 %v2576
  %v2594 = vunpack.c.l.b16 %v2577
  %v2595 = vunpack.c.l.b16 %v2578
  %v2596 = vpack.c.b16 %v2589, %v2588
  %v2597 = vpack.c.b16 %v2591, %v2590
  %v2598 = vpack.c.b16 %v2593, %v2592
  %v2599 = vpack.c.b16 %v2595, %v2594
  %v2605 = vsel %vm83, %v2579, 0
  %2607 = vmatpush.bf16.msra.mxu0 0
  %2608 = vmatpush.bf16.msra.mxu0 0
  %2609 = vmatpush.bf16.msra.mxu0 0
  %2610 = vmatpush.bf16.msra.mxu0 0
  %2611 = vmatpush.bf16.msra.mxu0 %v2599
  %2612 = vmatpush.bf16.msra.mxu0 %v2598
  %2613 = vmatpush.bf16.msra.mxu0 %v2597
  %2614 = vmatpush.bf16.msra.mxu0 %v2596
  %2615 = vmatmul.bf16.gmra.mxu0 %v2605
  %v2616 = vpop.f32.mrf.mxu0
  %v2617 = vadd.f32 0.0, %v2616
  %v2618 = vpop.f32.mrf.mxu0
  %v2619 = vadd.f32 0.0, %v2618
  %2620 = vdwg.mxu0
  %v2621 = vadd.f32 %v1877, %v2617
  %v2622 = vadd.f32 %v1878, %v2619
  %v2623 = vmul.f32 %v2621, %v2621
  %v2624 = vmul.f32 %v2622, %v2622
  %v2625 = vsel %vm83, %v2623, 0.0
  %2626 = vadd.xlane.f32.xlu0 %v2625
  %v2627 = vpop.xlane.xlu0 %2626
  %v2628 = vsel %vm83, %v2624, 0.0
  %2629 = vadd.xlane.f32.xlu0 %v2628
  %v2630 = vpop.xlane.xlu0 %2629
  %v2631 = vmul.f32 %v2627, %v96
  %v2632 = vmul.f32 %v2630, %v96
  %v2633 = vadd.f32 %v2631, 1e-06
  %v2634 = vadd.f32 %v2632, 1e-06
  %v2635 = vrsqrt.pop %v2633
  %v2636 = vmul.f32 %v2635, %v2633
  %v2637 = vmul.f32 %v2636, %v2635
  %v2638 = vmul.f32 0.5, %v2637
  %v2639 = vsub.f32 1.5, %v2638
  %v2640 = vmul.f32 %v2635, %v2639
  %vm2641 = vweird.f32 %v2633
  %vm2642 = vweird.f32 %v2635
  %vm2643 = vmor %vm2641, %vm2642
  %v2644 = vsel %vm2643, %v2635, %v2640
  %v2645 = vrsqrt.pop %v2634
  %v2646 = vmul.f32 %v2645, %v2634
  %v2647 = vmul.f32 %v2646, %v2645
  %v2648 = vmul.f32 0.5, %v2647
  %v2649 = vsub.f32 1.5, %v2648
  %v2650 = vmul.f32 %v2645, %v2649
  %vm2651 = vweird.f32 %v2634
  %vm2652 = vweird.f32 %v2645
  %vm2653 = vmor %vm2651, %vm2652
  %v2654 = vsel %vm2653, %v2645, %v2650
  %v2655 = vmul.f32 %v2621, %v2644
  %v2656 = vmul.f32 %v2622, %v2654
  %v2657 = vmul.f32 %v2655, %v1918
  %v2658 = vmul.f32 %v2656, %v1918
  %s2659 = scalar_lea.vmem %s1, 16
  %v2660 = vld [vmem:[%s2659] sm:$0xff]
  %v2661 = vld [vmem:[%s2659 + $0x8] sm:$0xff]
  %s2662 = scalar_lea.vmem %s9, 64
  %v2663 = vld [vmem:[%s2662] sm:$0xff]
  %v2664 = vld [vmem:[%s2662 + $0x8] sm:$0xff]
  %v2665 = vld [vmem:[%s2662 + $0x10] sm:$0xff]
  %v2666 = vld [vmem:[%s2662 + $0x18] sm:$0xff]
  %v2667 = vld [vmem:[%s2662 + $0x20] sm:$0xff]
  %v2668 = vld [vmem:[%s2662 + $0x28] sm:$0xff]
  %v2669 = vld [vmem:[%s2662 + $0x30] sm:$0xff]
  %v2670 = vld [vmem:[%s2662 + $0x38] sm:$0xff]
  %v2671 = vpack.c.bf16 %v2658, %v2657
  %v2672 = vpack.c.bf16 %v2661, %v2660
  %v2681 = vunpack.c.l.b16 %v2663
  %v2682 = vunpack.c.h.b16 %v2663
  %v2683 = vunpack.c.l.b16 %v2664
  %v2684 = vunpack.c.h.b16 %v2664
  %v2685 = vunpack.c.l.b16 %v2665
  %v2686 = vunpack.c.h.b16 %v2665
  %v2687 = vunpack.c.l.b16 %v2666
  %v2688 = vunpack.c.h.b16 %v2666
  %v2689 = vunpack.c.l.b16 %v2667
  %v2690 = vunpack.c.h.b16 %v2667
  %v2691 = vunpack.c.l.b16 %v2668
  %v2692 = vunpack.c.h.b16 %v2668
  %v2693 = vunpack.c.l.b16 %v2669
  %v2694 = vunpack.c.h.b16 %v2669
  %v2695 = vunpack.c.l.b16 %v2670
  %v2696 = vunpack.c.h.b16 %v2670
  %v2697 = vpack.c.b16 %v2683, %v2681
  %v2698 = vpack.c.b16 %v2684, %v2682
  %v2699 = vpack.c.b16 %v2687, %v2685
  %v2700 = vpack.c.b16 %v2688, %v2686
  %v2701 = vpack.c.b16 %v2691, %v2689
  %v2702 = vpack.c.b16 %v2692, %v2690
  %v2703 = vpack.c.b16 %v2695, %v2693
  %v2704 = vpack.c.b16 %v2696, %v2694
  %v2714 = vsel %vm83, %v2671, 0
  %v2717 = vsel %vm83, %v2672, 0
  %2719 = vmatpush.bf16.msra.mxu0 0
  %2720 = vmatpush.bf16.msra.mxu0 0
  %2721 = vmatpush.bf16.msra.mxu0 0
  %2722 = vmatpush.bf16.msra.mxu0 0
  %2723 = vmatpush.bf16.msra.mxu0 %v2703
  %2724 = vmatpush.bf16.msra.mxu0 %v2701
  %2725 = vmatpush.bf16.msra.mxu0 %v2699
  %2726 = vmatpush.bf16.msra.mxu0 %v2697
  %2727 = vmatmul.bf16.gmra.mxu0 %v2714
  %v2728 = vpop.f32.mrf.mxu0
  %v2729 = vadd.f32 0.0, %v2728
  %v2730 = vpop.f32.mrf.mxu0
  %v2731 = vadd.f32 0.0, %v2730
  %2732 = vmatmul.bf16.gmra.mxu0 %v2717
  %v2733 = vpop.f32.mrf.mxu0
  %v2734 = vadd.f32 0.0, %v2733
  %v2735 = vpop.f32.mrf.mxu0
  %v2736 = vadd.f32 0.0, %v2735
  %2737 = vdwg.mxu0
  %2738 = vmatpush.bf16.msra.mxu0 0
  %2739 = vmatpush.bf16.msra.mxu0 0
  %2740 = vmatpush.bf16.msra.mxu0 0
  %2741 = vmatpush.bf16.msra.mxu0 0
  %2742 = vmatpush.bf16.msra.mxu0 %v2704
  %2743 = vmatpush.bf16.msra.mxu0 %v2702
  %2744 = vmatpush.bf16.msra.mxu0 %v2700
  %2745 = vmatpush.bf16.msra.mxu0 %v2698
  %2746 = vmatmul.bf16.gmra.mxu0 %v2714
  %v2747 = vpop.f32.mrf.mxu0
  %v2748 = vpop.f32.mrf.mxu0
  %2749 = vmatmul.bf16.gmra.mxu0 %v2717
  %v2750 = vpop.f32.mrf.mxu0
  %v2751 = vadd.f32 0.0, %v2750
  %v2752 = vpop.f32.mrf.mxu0
  %v2753 = vadd.f32 0.0, %v2752
  %2754 = vdwg.mxu0
  %2757 = vrot.lane.b32.xlu0 %v2729, 112
  %v2758 = vpop.permute.xlu0 %2757
  %2759 = vrot.lane.b32.xlu0 %v2731, 112
  %v2760 = vpop.permute.xlu0 %2759
  %2763 = vrot.lane.b32.xlu0 %v2729, 96
  %v2764 = vpop.permute.xlu0 %2763
  %2765 = vrot.lane.b32.xlu0 %v2731, 96
  %v2766 = vpop.permute.xlu0 %2765
  %2769 = vrot.lane.b32.xlu0 %v2729, 80
  %v2770 = vpop.permute.xlu0 %2769
  %2771 = vrot.lane.b32.xlu0 %v2731, 80
  %v2772 = vpop.permute.xlu0 %2771
  %2777 = vrot.lane.b32.xlu0 %v2734, 112
  %v2778 = vpop.permute.xlu0 %2777
  %2779 = vrot.lane.b32.xlu0 %v2736, 112
  %v2780 = vpop.permute.xlu0 %2779
  %2783 = vrot.lane.b32.xlu0 %v2734, 96
  %v2784 = vpop.permute.xlu0 %2783
  %2785 = vrot.lane.b32.xlu0 %v2736, 96
  %v2786 = vpop.permute.xlu0 %2785
  %2789 = vrot.lane.b32.xlu0 %v2734, 80
  %v2790 = vpop.permute.xlu0 %2789
  %2791 = vrot.lane.b32.xlu0 %v2736, 80
  %v2792 = vpop.permute.xlu0 %2791
  %2797 = vrot.lane.b32.xlu0 %v2751, 112
  %v2798 = vpop.permute.xlu0 %2797
  %2799 = vrot.lane.b32.xlu0 %v2753, 112
  %v2800 = vpop.permute.xlu0 %2799
  %2803 = vrot.lane.b32.xlu0 %v2751, 96
  %v2804 = vpop.permute.xlu0 %2803
  %2805 = vrot.lane.b32.xlu0 %v2753, 96
  %v2806 = vpop.permute.xlu0 %2805
  %2809 = vrot.lane.b32.xlu0 %v2751, 80
  %v2810 = vpop.permute.xlu0 %2809
  %2811 = vrot.lane.b32.xlu0 %v2753, 80
  %v2812 = vpop.permute.xlu0 %2811
  %v2815 = vpack.c.bf16 %v2729, %v2729
  %v2816 = vpack.c.bf16 %v2731, %v2731
  %v2817 = vpack.c.bf16 %v2758, %v2758
  %v2818 = vpack.c.bf16 %v2760, %v2760
  %v2819 = vpack.c.bf16 %v2764, %v2764
  %v2820 = vpack.c.bf16 %v2766, %v2766
  %v2821 = vpack.c.bf16 %v2770, %v2770
  %v2822 = vpack.c.bf16 %v2772, %v2772
  %v2823 = vpack.c.bf16 %v2734, %v2734
  %v2824 = vpack.c.bf16 %v2736, %v2736
  %v2825 = vpack.c.bf16 %v2778, %v2778
  %v2826 = vpack.c.bf16 %v2780, %v2780
  %v2827 = vpack.c.bf16 %v2784, %v2784
  %v2828 = vpack.c.bf16 %v2786, %v2786
  %v2829 = vpack.c.bf16 %v2790, %v2790
  %v2830 = vpack.c.bf16 %v2792, %v2792
  %v2832 = vunpack.c.l.b16 %v2823
  %v2833 = vpack.c.b16 %v2832, %v2832
  %2834 = vrot.lane.b32.xlu0 %v2833, 64
  %v2835 = vpop.permute.xlu0 %2834
  %v2837 = vsel %vm330, %v2815, 0
  %v2840 = vsel %vm330, %v2835, 0
  %2842 = vmatpush.bf16.xpose.msra.mxu0 0
  %2843 = vmatpush.bf16.xpose.msra.mxu0 0
  %2844 = vmatpush.bf16.xpose.msra.mxu0 0
  %2845 = vmatpush.bf16.xpose.msra.mxu0 0
  %2846 = vmatpush.bf16.xpose.msra.mxu0 0
  %2847 = vmatpush.bf16.xpose.msra.mxu0 0
  %2848 = vmatpush.bf16.xpose.msra.mxu0 0
  %2849 = vmatpush.bf16.xpose.msra.mxu0 %v2840
  %2850 = vmatmul.bf16.gmra.mxu0 %v2837
  %v2851 = vpop.f32.mrf.mxu0
  %v2852 = vadd.f32 0.0, %v2851
  %v2853 = vpop.f32.mrf.mxu0
  %2854 = vdwg.mxu0
  %v2856 = vunpack.c.l.b16 %v2824
  %v2857 = vpack.c.b16 %v2856, %v2856
  %2858 = vrot.lane.b32.xlu0 %v2857, 64
  %v2859 = vpop.permute.xlu0 %2858
  %v2861 = vsel %vm330, %v2816, 0
  %v2864 = vsel %vm330, %v2859, 0
  %2866 = vmatpush.bf16.xpose.msra.mxu0 0
  %2867 = vmatpush.bf16.xpose.msra.mxu0 0
  %2868 = vmatpush.bf16.xpose.msra.mxu0 0
  %2869 = vmatpush.bf16.xpose.msra.mxu0 0
  %2870 = vmatpush.bf16.xpose.msra.mxu0 0
  %2871 = vmatpush.bf16.xpose.msra.mxu0 0
  %2872 = vmatpush.bf16.xpose.msra.mxu0 0
  %2873 = vmatpush.bf16.xpose.msra.mxu0 %v2864
  %2874 = vmatmul.bf16.gmra.mxu0 %v2861
  %v2875 = vpop.f32.mrf.mxu0
  %v2876 = vadd.f32 0.0, %v2875
  %v2877 = vpop.f32.mrf.mxu0
  %2878 = vdwg.mxu0
  %v2880 = vunpack.c.l.b16 %v2825
  %v2881 = vpack.c.b16 %v2880, %v2880
  %2882 = vrot.lane.b32.xlu0 %v2881, 64
  %v2883 = vpop.permute.xlu0 %2882
  %v2885 = vsel %vm330, %v2817, 0
  %v2888 = vsel %vm330, %v2883, 0
  %2890 = vmatpush.bf16.xpose.msra.mxu0 0
  %2891 = vmatpush.bf16.xpose.msra.mxu0 0
  %2892 = vmatpush.bf16.xpose.msra.mxu0 0
  %2893 = vmatpush.bf16.xpose.msra.mxu0 0
  %2894 = vmatpush.bf16.xpose.msra.mxu0 0
  %2895 = vmatpush.bf16.xpose.msra.mxu0 0
  %2896 = vmatpush.bf16.xpose.msra.mxu0 0
  %2897 = vmatpush.bf16.xpose.msra.mxu0 %v2888
  %2898 = vmatmul.bf16.gmra.mxu0 %v2885
  %v2899 = vpop.f32.mrf.mxu0
  %v2900 = vadd.f32 0.0, %v2899
  %v2901 = vpop.f32.mrf.mxu0
  %2902 = vdwg.mxu0
  %v2904 = vunpack.c.l.b16 %v2826
  %v2905 = vpack.c.b16 %v2904, %v2904
  %2906 = vrot.lane.b32.xlu0 %v2905, 64
  %v2907 = vpop.permute.xlu0 %2906
  %v2909 = vsel %vm330, %v2818, 0
  %v2912 = vsel %vm330, %v2907, 0
  %2914 = vmatpush.bf16.xpose.msra.mxu0 0
  %2915 = vmatpush.bf16.xpose.msra.mxu0 0
  %2916 = vmatpush.bf16.xpose.msra.mxu0 0
  %2917 = vmatpush.bf16.xpose.msra.mxu0 0
  %2918 = vmatpush.bf16.xpose.msra.mxu0 0
  %2919 = vmatpush.bf16.xpose.msra.mxu0 0
  %2920 = vmatpush.bf16.xpose.msra.mxu0 0
  %2921 = vmatpush.bf16.xpose.msra.mxu0 %v2912
  %2922 = vmatmul.bf16.gmra.mxu0 %v2909
  %v2923 = vpop.f32.mrf.mxu0
  %v2924 = vadd.f32 0.0, %v2923
  %v2925 = vpop.f32.mrf.mxu0
  %2926 = vdwg.mxu0
  %v2928 = vunpack.c.l.b16 %v2827
  %v2929 = vpack.c.b16 %v2928, %v2928
  %2930 = vrot.lane.b32.xlu0 %v2929, 64
  %v2931 = vpop.permute.xlu0 %2930
  %v2933 = vsel %vm330, %v2819, 0
  %v2936 = vsel %vm330, %v2931, 0
  %2938 = vmatpush.bf16.xpose.msra.mxu0 0
  %2939 = vmatpush.bf16.xpose.msra.mxu0 0
  %2940 = vmatpush.bf16.xpose.msra.mxu0 0
  %2941 = vmatpush.bf16.xpose.msra.mxu0 0
  %2942 = vmatpush.bf16.xpose.msra.mxu0 0
  %2943 = vmatpush.bf16.xpose.msra.mxu0 0
  %2944 = vmatpush.bf16.xpose.msra.mxu0 0
  %2945 = vmatpush.bf16.xpose.msra.mxu0 %v2936
  %2946 = vmatmul.bf16.gmra.mxu0 %v2933
  %v2947 = vpop.f32.mrf.mxu0
  %v2948 = vadd.f32 0.0, %v2947
  %v2949 = vpop.f32.mrf.mxu0
  %2950 = vdwg.mxu0
  %v2952 = vunpack.c.l.b16 %v2828
  %v2953 = vpack.c.b16 %v2952, %v2952
  %2954 = vrot.lane.b32.xlu0 %v2953, 64
  %v2955 = vpop.permute.xlu0 %2954
  %v2957 = vsel %vm330, %v2820, 0
  %v2960 = vsel %vm330, %v2955, 0
  %2962 = vmatpush.bf16.xpose.msra.mxu0 0
  %2963 = vmatpush.bf16.xpose.msra.mxu0 0
  %2964 = vmatpush.bf16.xpose.msra.mxu0 0
  %2965 = vmatpush.bf16.xpose.msra.mxu0 0
  %2966 = vmatpush.bf16.xpose.msra.mxu0 0
  %2967 = vmatpush.bf16.xpose.msra.mxu0 0
  %2968 = vmatpush.bf16.xpose.msra.mxu0 0
  %2969 = vmatpush.bf16.xpose.msra.mxu0 %v2960
  %2970 = vmatmul.bf16.gmra.mxu0 %v2957
  %v2971 = vpop.f32.mrf.mxu0
  %v2972 = vadd.f32 0.0, %v2971
  %v2973 = vpop.f32.mrf.mxu0
  %2974 = vdwg.mxu0
  %v2976 = vunpack.c.l.b16 %v2829
  %v2977 = vpack.c.b16 %v2976, %v2976
  %2978 = vrot.lane.b32.xlu0 %v2977, 64
  %v2979 = vpop.permute.xlu0 %2978
  %v2981 = vsel %vm330, %v2821, 0
  %v2984 = vsel %vm330, %v2979, 0
  %2986 = vmatpush.bf16.xpose.msra.mxu0 0
  %2987 = vmatpush.bf16.xpose.msra.mxu0 0
  %2988 = vmatpush.bf16.xpose.msra.mxu0 0
  %2989 = vmatpush.bf16.xpose.msra.mxu0 0
  %2990 = vmatpush.bf16.xpose.msra.mxu0 0
  %2991 = vmatpush.bf16.xpose.msra.mxu0 0
  %2992 = vmatpush.bf16.xpose.msra.mxu0 0
  %2993 = vmatpush.bf16.xpose.msra.mxu0 %v2984
  %2994 = vmatmul.bf16.gmra.mxu0 %v2981
  %v2995 = vpop.f32.mrf.mxu0
  %v2996 = vadd.f32 0.0, %v2995
  %v2997 = vpop.f32.mrf.mxu0
  %2998 = vdwg.mxu0
  %v3000 = vunpack.c.l.b16 %v2830
  %v3001 = vpack.c.b16 %v3000, %v3000
  %3002 = vrot.lane.b32.xlu0 %v3001, 64
  %v3003 = vpop.permute.xlu0 %3002
  %v3005 = vsel %vm330, %v2822, 0
  %v3008 = vsel %vm330, %v3003, 0
  %3010 = vmatpush.bf16.xpose.msra.mxu0 0
  %3011 = vmatpush.bf16.xpose.msra.mxu0 0
  %3012 = vmatpush.bf16.xpose.msra.mxu0 0
  %3013 = vmatpush.bf16.xpose.msra.mxu0 0
  %3014 = vmatpush.bf16.xpose.msra.mxu0 0
  %3015 = vmatpush.bf16.xpose.msra.mxu0 0
  %3016 = vmatpush.bf16.xpose.msra.mxu0 0
  %3017 = vmatpush.bf16.xpose.msra.mxu0 %v3008
  %3018 = vmatmul.bf16.gmra.mxu0 %v3005
  %v3019 = vpop.f32.mrf.mxu0
  %v3020 = vadd.f32 0.0, %v3019
  %v3021 = vpop.f32.mrf.mxu0
  %3022 = vdwg.mxu0
  %v3023 = vmul.f32 %v2852, 0.25
  %v3024 = vmul.f32 %v2876, 0.25
  %v3025 = vmul.f32 %v2900, 0.25
  %v3026 = vmul.f32 %v2924, 0.25
  %v3027 = vmul.f32 %v2948, 0.25
  %v3028 = vmul.f32 %v2972, 0.25
  %v3029 = vmul.f32 %v2996, 0.25
  %v3030 = vmul.f32 %v3020, 0.25
  %v3031 = vadd.f32 %v3023, %v76
  %v3032 = vadd.f32 %v3024, %v76
  %v3033 = vadd.f32 %v3025, %v76
  %v3034 = vadd.f32 %v3026, %v76
  %v3035 = vadd.f32 %v3027, %v76
  %v3036 = vadd.f32 %v3028, %v76
  %v3037 = vadd.f32 %v3029, %v76
  %v3038 = vadd.f32 %v3030, %v76
  %v3039 = vsel %vm534, %v3031, -inf
  %3040 = vmax.xlane.f32.xlu0 %v3039
  %v3041 = vpop.xlane.xlu0 %3040
  %v3042 = vsel %vm534, %v3032, -inf
  %3043 = vmax.xlane.f32.xlu0 %v3042
  %v3044 = vpop.xlane.xlu0 %3043
  %v3045 = vsel %vm534, %v3033, -inf
  %3046 = vmax.xlane.f32.xlu0 %v3045
  %v3047 = vpop.xlane.xlu0 %3046
  %v3048 = vsel %vm534, %v3034, -inf
  %3049 = vmax.xlane.f32.xlu0 %v3048
  %v3050 = vpop.xlane.xlu0 %3049
  %v3051 = vsel %vm534, %v3035, -inf
  %3052 = vmax.xlane.f32.xlu0 %v3051
  %v3053 = vpop.xlane.xlu0 %3052
  %v3054 = vsel %vm534, %v3036, -inf
  %3055 = vmax.xlane.f32.xlu0 %v3054
  %v3056 = vpop.xlane.xlu0 %3055
  %v3057 = vsel %vm534, %v3037, -inf
  %3058 = vmax.xlane.f32.xlu0 %v3057
  %v3059 = vpop.xlane.xlu0 %3058
  %v3060 = vsel %vm534, %v3038, -inf
  %3061 = vmax.xlane.f32.xlu0 %v3060
  %v3062 = vpop.xlane.xlu0 %3061
  %v3063 = vsub.f32 %v3031, %v3041
  %v3064 = vsub.f32 %v3032, %v3044
  %v3065 = vsub.f32 %v3033, %v3047
  %v3066 = vsub.f32 %v3034, %v3050
  %v3067 = vsub.f32 %v3035, %v3053
  %v3068 = vsub.f32 %v3036, %v3056
  %v3069 = vsub.f32 %v3037, %v3059
  %v3070 = vsub.f32 %v3038, %v3062
  %v3071 = vmul.f32 %v3063, 1.442695
  %v3072 = vpow.pop %v3071
  %v3073 = vmul.f32 %v3064, 1.442695
  %v3074 = vpow.pop %v3073
  %v3075 = vmul.f32 %v3065, 1.442695
  %v3076 = vpow.pop %v3075
  %v3077 = vmul.f32 %v3066, 1.442695
  %v3078 = vpow.pop %v3077
  %v3079 = vmul.f32 %v3067, 1.442695
  %v3080 = vpow.pop %v3079
  %v3081 = vmul.f32 %v3068, 1.442695
  %v3082 = vpow.pop %v3081
  %v3083 = vmul.f32 %v3069, 1.442695
  %v3084 = vpow.pop %v3083
  %v3085 = vmul.f32 %v3070, 1.442695
  %v3086 = vpow.pop %v3085
  %v3087 = vsel %vm534, %v3072, 0.0
  %3088 = vadd.xlane.f32.xlu0 %v3087
  %v3089 = vpop.xlane.xlu0 %3088
  %v3090 = vsel %vm534, %v3074, 0.0
  %3091 = vadd.xlane.f32.xlu0 %v3090
  %v3092 = vpop.xlane.xlu0 %3091
  %v3093 = vsel %vm534, %v3076, 0.0
  %3094 = vadd.xlane.f32.xlu0 %v3093
  %v3095 = vpop.xlane.xlu0 %3094
  %v3096 = vsel %vm534, %v3078, 0.0
  %3097 = vadd.xlane.f32.xlu0 %v3096
  %v3098 = vpop.xlane.xlu0 %3097
  %v3099 = vsel %vm534, %v3080, 0.0
  %3100 = vadd.xlane.f32.xlu0 %v3099
  %v3101 = vpop.xlane.xlu0 %3100
  %v3102 = vsel %vm534, %v3082, 0.0
  %3103 = vadd.xlane.f32.xlu0 %v3102
  %v3104 = vpop.xlane.xlu0 %3103
  %v3105 = vsel %vm534, %v3084, 0.0
  %3106 = vadd.xlane.f32.xlu0 %v3105
  %v3107 = vpop.xlane.xlu0 %3106
  %v3108 = vsel %vm534, %v3086, 0.0
  %3109 = vadd.xlane.f32.xlu0 %v3108
  %v3110 = vpop.xlane.xlu0 %3109
  %v3111 = vrcp.pop %v3089
  %v3112 = vrcp.pop %v3092
  %v3113 = vrcp.pop %v3095
  %v3114 = vrcp.pop %v3098
  %v3115 = vrcp.pop %v3101
  %v3116 = vrcp.pop %v3104
  %v3117 = vrcp.pop %v3107
  %v3118 = vrcp.pop %v3110
  %v3119 = vmul.f32 %v3072, %v3111
  %v3120 = vmul.f32 %v3074, %v3112
  %v3121 = vmul.f32 %v3076, %v3113
  %v3122 = vmul.f32 %v3078, %v3114
  %v3123 = vmul.f32 %v3080, %v3115
  %v3124 = vmul.f32 %v3082, %v3116
  %v3125 = vmul.f32 %v3084, %v3117
  %v3126 = vmul.f32 %v3086, %v3118
  %v3127 = vpack.c.bf16 %v3119, %v3119
  %v3128 = vpack.c.bf16 %v3120, %v3120
  %v3129 = vpack.c.bf16 %v3121, %v3121
  %v3130 = vpack.c.bf16 %v3122, %v3122
  %v3131 = vpack.c.bf16 %v3123, %v3123
  %v3132 = vpack.c.bf16 %v3124, %v3124
  %v3133 = vpack.c.bf16 %v3125, %v3125
  %v3134 = vpack.c.bf16 %v3126, %v3126
  %v3135 = vpack.c.bf16 %v2751, %v2751
  %v3136 = vpack.c.bf16 %v2753, %v2753
  %v3137 = vpack.c.bf16 %v2798, %v2798
  %v3138 = vpack.c.bf16 %v2800, %v2800
  %v3139 = vpack.c.bf16 %v2804, %v2804
  %v3140 = vpack.c.bf16 %v2806, %v2806
  %v3141 = vpack.c.bf16 %v2810, %v2810
  %v3142 = vpack.c.bf16 %v2812, %v2812
  %v3144 = vsel %vm534, %v3127, 0
  %v3147 = vsel %vm642, %v3135, 0
  %3149 = vmatpush.bf16.msra.mxu0 0
  %3150 = vmatpush.bf16.msra.mxu0 0
  %3151 = vmatpush.bf16.msra.mxu0 0
  %3152 = vmatpush.bf16.msra.mxu0 0
  %3153 = vmatpush.bf16.msra.mxu0 0
  %3154 = vmatpush.bf16.msra.mxu0 0
  %3155 = vmatpush.bf16.msra.mxu0 0
  %3156 = vmatpush.bf16.msra.mxu0 %v3147
  %3157 = vmatmul.bf16.gmra.mxu0 %v3144
  %v3158 = vpop.f32.mrf.mxu0
  %v3159 = vadd.f32 0.0, %v3158
  %v3160 = vpop.f32.mrf.mxu0
  %3161 = vdwg.mxu0
  %v3163 = vsel %vm534, %v3128, 0
  %v3166 = vsel %vm642, %v3136, 0
  %3168 = vmatpush.bf16.msra.mxu0 0
  %3169 = vmatpush.bf16.msra.mxu0 0
  %3170 = vmatpush.bf16.msra.mxu0 0
  %3171 = vmatpush.bf16.msra.mxu0 0
  %3172 = vmatpush.bf16.msra.mxu0 0
  %3173 = vmatpush.bf16.msra.mxu0 0
  %3174 = vmatpush.bf16.msra.mxu0 0
  %3175 = vmatpush.bf16.msra.mxu0 %v3166
  %3176 = vmatmul.bf16.gmra.mxu0 %v3163
  %v3177 = vpop.f32.mrf.mxu0
  %v3178 = vadd.f32 0.0, %v3177
  %v3179 = vpop.f32.mrf.mxu0
  %3180 = vdwg.mxu0
  %v3182 = vsel %vm534, %v3129, 0
  %v3185 = vsel %vm642, %v3137, 0
  %3187 = vmatpush.bf16.msra.mxu0 0
  %3188 = vmatpush.bf16.msra.mxu0 0
  %3189 = vmatpush.bf16.msra.mxu0 0
  %3190 = vmatpush.bf16.msra.mxu0 0
  %3191 = vmatpush.bf16.msra.mxu0 0
  %3192 = vmatpush.bf16.msra.mxu0 0
  %3193 = vmatpush.bf16.msra.mxu0 0
  %3194 = vmatpush.bf16.msra.mxu0 %v3185
  %3195 = vmatmul.bf16.gmra.mxu0 %v3182
  %v3196 = vpop.f32.mrf.mxu0
  %v3197 = vadd.f32 0.0, %v3196
  %v3198 = vpop.f32.mrf.mxu0
  %3199 = vdwg.mxu0
  %v3201 = vsel %vm534, %v3130, 0
  %v3204 = vsel %vm642, %v3138, 0
  %3206 = vmatpush.bf16.msra.mxu0 0
  %3207 = vmatpush.bf16.msra.mxu0 0
  %3208 = vmatpush.bf16.msra.mxu0 0
  %3209 = vmatpush.bf16.msra.mxu0 0
  %3210 = vmatpush.bf16.msra.mxu0 0
  %3211 = vmatpush.bf16.msra.mxu0 0
  %3212 = vmatpush.bf16.msra.mxu0 0
  %3213 = vmatpush.bf16.msra.mxu0 %v3204
  %3214 = vmatmul.bf16.gmra.mxu0 %v3201
  %v3215 = vpop.f32.mrf.mxu0
  %v3216 = vadd.f32 0.0, %v3215
  %v3217 = vpop.f32.mrf.mxu0
  %3218 = vdwg.mxu0
  %v3220 = vsel %vm534, %v3131, 0
  %v3223 = vsel %vm642, %v3139, 0
  %3225 = vmatpush.bf16.msra.mxu0 0
  %3226 = vmatpush.bf16.msra.mxu0 0
  %3227 = vmatpush.bf16.msra.mxu0 0
  %3228 = vmatpush.bf16.msra.mxu0 0
  %3229 = vmatpush.bf16.msra.mxu0 0
  %3230 = vmatpush.bf16.msra.mxu0 0
  %3231 = vmatpush.bf16.msra.mxu0 0
  %3232 = vmatpush.bf16.msra.mxu0 %v3223
  %3233 = vmatmul.bf16.gmra.mxu0 %v3220
  %v3234 = vpop.f32.mrf.mxu0
  %v3235 = vadd.f32 0.0, %v3234
  %v3236 = vpop.f32.mrf.mxu0
  %3237 = vdwg.mxu0
  %v3239 = vsel %vm534, %v3132, 0
  %v3242 = vsel %vm642, %v3140, 0
  %3244 = vmatpush.bf16.msra.mxu0 0
  %3245 = vmatpush.bf16.msra.mxu0 0
  %3246 = vmatpush.bf16.msra.mxu0 0
  %3247 = vmatpush.bf16.msra.mxu0 0
  %3248 = vmatpush.bf16.msra.mxu0 0
  %3249 = vmatpush.bf16.msra.mxu0 0
  %3250 = vmatpush.bf16.msra.mxu0 0
  %3251 = vmatpush.bf16.msra.mxu0 %v3242
  %3252 = vmatmul.bf16.gmra.mxu0 %v3239
  %v3253 = vpop.f32.mrf.mxu0
  %v3254 = vadd.f32 0.0, %v3253
  %v3255 = vpop.f32.mrf.mxu0
  %3256 = vdwg.mxu0
  %v3258 = vsel %vm534, %v3133, 0
  %v3261 = vsel %vm642, %v3141, 0
  %3263 = vmatpush.bf16.msra.mxu0 0
  %3264 = vmatpush.bf16.msra.mxu0 0
  %3265 = vmatpush.bf16.msra.mxu0 0
  %3266 = vmatpush.bf16.msra.mxu0 0
  %3267 = vmatpush.bf16.msra.mxu0 0
  %3268 = vmatpush.bf16.msra.mxu0 0
  %3269 = vmatpush.bf16.msra.mxu0 0
  %3270 = vmatpush.bf16.msra.mxu0 %v3261
  %3271 = vmatmul.bf16.gmra.mxu0 %v3258
  %v3272 = vpop.f32.mrf.mxu0
  %v3273 = vadd.f32 0.0, %v3272
  %v3274 = vpop.f32.mrf.mxu0
  %3275 = vdwg.mxu0
  %v3277 = vsel %vm534, %v3134, 0
  %v3280 = vsel %vm642, %v3142, 0
  %3282 = vmatpush.bf16.msra.mxu0 0
  %3283 = vmatpush.bf16.msra.mxu0 0
  %3284 = vmatpush.bf16.msra.mxu0 0
  %3285 = vmatpush.bf16.msra.mxu0 0
  %3286 = vmatpush.bf16.msra.mxu0 0
  %3287 = vmatpush.bf16.msra.mxu0 0
  %3288 = vmatpush.bf16.msra.mxu0 0
  %3289 = vmatpush.bf16.msra.mxu0 %v3280
  %3290 = vmatmul.bf16.gmra.mxu0 %v3277
  %v3291 = vpop.f32.mrf.mxu0
  %v3292 = vadd.f32 0.0, %v3291
  %v3293 = vpop.f32.mrf.mxu0
  %3294 = vdwg.mxu0
  %3295 = vst.msk [vmem:[#allocation2] sm:$0xff] %vm330, %v3159
  %3296 = vst.msk [vmem:[#allocation2 + $0x8] sm:$0xff] %vm330, %v3178
  %3299 = vrot.lane.b32.xlu0 %v3197, 16
  %v3300 = vpop.permute.xlu0 %3299
  %3301 = vrot.lane.b32.xlu0 %v3216, 16
  %v3302 = vpop.permute.xlu0 %3301
  %3305 = vst.msk [vmem:[#allocation2] sm:$0xff] %vm802, %v3300
  %3306 = vst.msk [vmem:[#allocation2 + $0x8] sm:$0xff] %vm802, %v3302
  %3309 = vrot.lane.b32.xlu0 %v3235, 32
  %v3310 = vpop.permute.xlu0 %3309
  %3311 = vrot.lane.b32.xlu0 %v3254, 32
  %v3312 = vpop.permute.xlu0 %3311
  %3315 = vst.msk [vmem:[#allocation2] sm:$0xff] %vm813, %v3310
  %3316 = vst.msk [vmem:[#allocation2 + $0x8] sm:$0xff] %vm813, %v3312
  %3319 = vrot.lane.b32.xlu0 %v3273, 48
  %v3320 = vpop.permute.xlu0 %3319
  %3321 = vrot.lane.b32.xlu0 %v3292, 48
  %v3322 = vpop.permute.xlu0 %3321
  %3325 = vst.msk [vmem:[#allocation2] sm:$0xff] %vm824, %v3320
  %3326 = vst.msk [vmem:[#allocation2 + $0x8] sm:$0xff] %vm824, %v3322
  %v3327 = vld [vmem:[#allocation2] sm:$0xff]
  %v3328 = vld [vmem:[#allocation2 + $0x8] sm:$0xff]
  %s3329 = scalar_lea.vmem %s10, 32
  %v3330 = vld [vmem:[%s3329] sm:$0xf]
  %v3331 = vld [vmem:[%s3329 + $0x4] sm:$0xf]
  %v3332 = vld [vmem:[%s3329 + $0x8] sm:$0xf]
  %v3333 = vld [vmem:[%s3329 + $0xc] sm:$0xf]
  %v3334 = vld [vmem:[%s3329 + $0x10] sm:$0xf]
  %v3335 = vld [vmem:[%s3329 + $0x14] sm:$0xf]
  %v3336 = vld [vmem:[%s3329 + $0x18] sm:$0xf]
  %v3337 = vld [vmem:[%s3329 + $0x1c] sm:$0xf]
  %v3338 = vpack.c.bf16 %v3328, %v3327
  %v3347 = vunpack.c.l.b16 %v3330
  %v3348 = vunpack.c.l.b16 %v3331
  %v3349 = vunpack.c.l.b16 %v3332
  %v3350 = vunpack.c.l.b16 %v3333
  %v3351 = vunpack.c.l.b16 %v3334
  %v3352 = vunpack.c.l.b16 %v3335
  %v3353 = vunpack.c.l.b16 %v3336
  %v3354 = vunpack.c.l.b16 %v3337
  %v3355 = vpack.c.b16 %v3348, %v3347
  %v3356 = vpack.c.b16 %v3350, %v3349
  %v3357 = vpack.c.b16 %v3352, %v3351
  %v3358 = vpack.c.b16 %v3354, %v3353
  %v3364 = vsel %vm83, %v3338, 0
  %3366 = vmatpush.bf16.msra.mxu0 0
  %3367 = vmatpush.bf16.msra.mxu0 0
  %3368 = vmatpush.bf16.msra.mxu0 0
  %3369 = vmatpush.bf16.msra.mxu0 0
  %3370 = vmatpush.bf16.msra.mxu0 %v3358
  %3371 = vmatpush.bf16.msra.mxu0 %v3357
  %3372 = vmatpush.bf16.msra.mxu0 %v3356
  %3373 = vmatpush.bf16.msra.mxu0 %v3355
  %3374 = vmatmul.bf16.gmra.mxu0 %v3364
  %v3375 = vpop.f32.mrf.mxu0
  %v3376 = vadd.f32 0.0, %v3375
  %v3377 = vpop.f32.mrf.mxu0
  %v3378 = vadd.f32 0.0, %v3377
  %3379 = vdwg.mxu0
  %v3380 = vadd.f32 %v2621, %v3376
  %v3381 = vadd.f32 %v2622, %v3378
  %v3382 = vmul.f32 %v3380, %v3380
  %v3383 = vmul.f32 %v3381, %v3381
  %v3384 = vsel %vm83, %v3382, 0.0
  %3385 = vadd.xlane.f32.xlu0 %v3384
  %v3386 = vpop.xlane.xlu0 %3385
  %v3387 = vsel %vm83, %v3383, 0.0
  %3388 = vadd.xlane.f32.xlu0 %v3387
  %v3389 = vpop.xlane.xlu0 %3388
  %v3390 = vmul.f32 %v3386, %v96
  %v3391 = vmul.f32 %v3389, %v96
  %v3392 = vadd.f32 %v3390, 1e-06
  %v3393 = vadd.f32 %v3391, 1e-06
  %v3394 = vrsqrt.pop %v3392
  %v3395 = vmul.f32 %v3394, %v3392
  %v3396 = vmul.f32 %v3395, %v3394
  %v3397 = vmul.f32 0.5, %v3396
  %v3398 = vsub.f32 1.5, %v3397
  %v3399 = vmul.f32 %v3394, %v3398
  %vm3400 = vweird.f32 %v3392
  %vm3401 = vweird.f32 %v3394
  %vm3402 = vmor %vm3400, %vm3401
  %v3403 = vsel %vm3402, %v3394, %v3399
  %v3404 = vrsqrt.pop %v3393
  %v3405 = vmul.f32 %v3404, %v3393
  %v3406 = vmul.f32 %v3405, %v3404
  %v3407 = vmul.f32 0.5, %v3406
  %v3408 = vsub.f32 1.5, %v3407
  %v3409 = vmul.f32 %v3404, %v3408
  %vm3410 = vweird.f32 %v3393
  %vm3411 = vweird.f32 %v3404
  %vm3412 = vmor %vm3410, %vm3411
  %v3413 = vsel %vm3412, %v3404, %v3409
  %v3414 = vmul.f32 %v3380, %v3403
  %v3415 = vmul.f32 %v3381, %v3413
  %v3417 = vperm.slane %v1882, 0
  %v3419 = vmul.f32 %v3414, %v3417
  %v3420 = vmul.f32 %v3415, %v3417
  %s3421 = scalar_lea.vmem %s11, 64
  %v3422 = vld [vmem:[%s3421] sm:$0xff]
  %v3423 = vld [vmem:[%s3421 + $0x8] sm:$0xff]
  %v3424 = vld [vmem:[%s3421 + $0x10] sm:$0xff]
  %v3425 = vld [vmem:[%s3421 + $0x18] sm:$0xff]
  %v3426 = vld [vmem:[%s3421 + $0x20] sm:$0xff]
  %v3427 = vld [vmem:[%s3421 + $0x28] sm:$0xff]
  %v3428 = vld [vmem:[%s3421 + $0x30] sm:$0xff]
  %v3429 = vld [vmem:[%s3421 + $0x38] sm:$0xff]
  %v3430 = vpack.c.bf16 %v3420, %v3419
  %v3439 = vunpack.c.l.b16 %v3422
  %v3440 = vunpack.c.h.b16 %v3422
  %v3441 = vunpack.c.l.b16 %v3423
  %v3442 = vunpack.c.h.b16 %v3423
  %v3443 = vunpack.c.l.b16 %v3424
  %v3444 = vunpack.c.h.b16 %v3424
  %v3445 = vunpack.c.l.b16 %v3425
  %v3446 = vunpack.c.h.b16 %v3425
  %v3447 = vunpack.c.l.b16 %v3426
  %v3448 = vunpack.c.h.b16 %v3426
  %v3449 = vunpack.c.l.b16 %v3427
  %v3450 = vunpack.c.h.b16 %v3427
  %v3451 = vunpack.c.l.b16 %v3428
  %v3452 = vunpack.c.h.b16 %v3428
  %v3453 = vunpack.c.l.b16 %v3429
  %v3454 = vunpack.c.h.b16 %v3429
  %v3455 = vpack.c.b16 %v3441, %v3439
  %v3456 = vpack.c.b16 %v3442, %v3440
  %v3457 = vpack.c.b16 %v3445, %v3443
  %v3458 = vpack.c.b16 %v3446, %v3444
  %v3459 = vpack.c.b16 %v3449, %v3447
  %v3460 = vpack.c.b16 %v3450, %v3448
  %v3461 = vpack.c.b16 %v3453, %v3451
  %v3462 = vpack.c.b16 %v3454, %v3452
  %v3472 = vsel %vm83, %v3430, 0
  %3474 = vmatpush.bf16.msra.mxu0 0
  %3475 = vmatpush.bf16.msra.mxu0 0
  %3476 = vmatpush.bf16.msra.mxu0 0
  %3477 = vmatpush.bf16.msra.mxu0 0
  %3478 = vmatpush.bf16.msra.mxu0 %v3461
  %3479 = vmatpush.bf16.msra.mxu0 %v3459
  %3480 = vmatpush.bf16.msra.mxu0 %v3457
  %3481 = vmatpush.bf16.msra.mxu0 %v3455
  %3482 = vmatmul.bf16.gmra.mxu0 %v3472
  %v3483 = vpop.f32.mrf.mxu0
  %v3484 = vadd.f32 0.0, %v3483
  %v3485 = vpop.f32.mrf.mxu0
  %v3486 = vadd.f32 0.0, %v3485
  %3487 = vdwg.mxu0
  %3488 = vmatpush.bf16.msra.mxu0 0
  %3489 = vmatpush.bf16.msra.mxu0 0
  %3490 = vmatpush.bf16.msra.mxu0 0
  %3491 = vmatpush.bf16.msra.mxu0 0
  %3492 = vmatpush.bf16.msra.mxu0 %v3462
  %3493 = vmatpush.bf16.msra.mxu0 %v3460
  %3494 = vmatpush.bf16.msra.mxu0 %v3458
  %3495 = vmatpush.bf16.msra.mxu0 %v3456
  %3496 = vmatmul.bf16.gmra.mxu0 %v3472
  %v3497 = vpop.f32.mrf.mxu0
  %v3498 = vadd.f32 0.0, %v3497
  %v3499 = vpop.f32.mrf.mxu0
  %v3500 = vadd.f32 0.0, %v3499
  %3501 = vdwg.mxu0
  %v3502 = vxor.u32 %v3484, 2147483648
  %v3503 = vxor.u32 %v3486, 2147483648
  %v3504 = vmul.f32 %v3502, 1.442695
  %v3505 = vpow.pop %v3504
  %v3506 = vmul.f32 %v3503, 1.442695
  %v3507 = vpow.pop %v3506
  %v3508 = vadd.f32 %v3505, 1.0
  %v3509 = vadd.f32 %v3507, 1.0
  %v3510 = vrcp.pop %v3508
  %v3511 = vmul.f32 %v3508, %v3510
  %v3512 = vsub.f32 1.0, %v3511
  %v3513 = vmul.f32 %v3510, %v3512
  %v3514 = vadd.f32 %v3510, %v3513
  %vm3515 = vweird.f32 %v3508
  %vm3516 = vweird.f32 %v3510
  %vm3517 = vmor %vm3515, %vm3516
  %v3518 = vsel %vm3517, %v3510, %v3514
  %v3519 = vand.u32 2147483647, %v3508
  %vm3520 = vcmp.eq.f32.partialorder %v3519, 8.507059e+37
  %v3521 = vand.u32 %v3508, 2147483648
  %v3522 = vor.u32 1.1754944e-38, %v3521
  %v3523 = vsel %vm3520, %v3522, %v3518
  %v3524 = vmul.f32 1.0, %v3523
  %v3525 = vrcp.pop %v3509
  %v3526 = vmul.f32 %v3509, %v3525
  %v3527 = vsub.f32 1.0, %v3526
  %v3528 = vmul.f32 %v3525, %v3527
  %v3529 = vadd.f32 %v3525, %v3528
  %vm3530 = vweird.f32 %v3509
  %vm3531 = vweird.f32 %v3525
  %vm3532 = vmor %vm3530, %vm3531
  %v3533 = vsel %vm3532, %v3525, %v3529
  %v3534 = vand.u32 2147483647, %v3509
  %vm3535 = vcmp.eq.f32.partialorder %v3534, 8.507059e+37
  %v3536 = vand.u32 %v3509, 2147483648
  %v3537 = vor.u32 1.1754944e-38, %v3536
  %v3538 = vsel %vm3535, %v3537, %v3533
  %v3539 = vmul.f32 1.0, %v3538
  %v3540 = vmul.f32 %v3484, %v3524
  %v3541 = vmul.f32 %v3486, %v3539
  %v3542 = vmul.f32 %v3540, %v3498
  %v3543 = vmul.f32 %v3541, %v3500
  %s3544 = scalar_lea.vmem %s12, 64
  %v3545 = vld [vmem:[%s3544] sm:$0xf]
  %v3546 = vld [vmem:[%s3544 + $0x4] sm:$0xf]
  %v3547 = vld [vmem:[%s3544 + $0x8] sm:$0xf]
  %v3548 = vld [vmem:[%s3544 + $0xc] sm:$0xf]
  %v3549 = vld [vmem:[%s3544 + $0x10] sm:$0xf]
  %v3550 = vld [vmem:[%s3544 + $0x14] sm:$0xf]
  %v3551 = vld [vmem:[%s3544 + $0x18] sm:$0xf]
  %v3552 = vld [vmem:[%s3544 + $0x1c] sm:$0xf]
  %v3553 = vld [vmem:[%s3544 + $0x20] sm:$0xf]
  %v3554 = vld [vmem:[%s3544 + $0x24] sm:$0xf]
  %v3555 = vld [vmem:[%s3544 + $0x28] sm:$0xf]
  %v3556 = vld [vmem:[%s3544 + $0x2c] sm:$0xf]
  %v3557 = vld [vmem:[%s3544 + $0x30] sm:$0xf]
  %v3558 = vld [vmem:[%s3544 + $0x34] sm:$0xf]
  %v3559 = vld [vmem:[%s3544 + $0x38] sm:$0xf]
  %v3560 = vld [vmem:[%s3544 + $0x3c] sm:$0xf]
  %v3561 = vpack.c.bf16 %v3543, %v3542
  %v3578 = vunpack.c.l.b16 %v3545
  %v3579 = vunpack.c.l.b16 %v3546
  %v3580 = vunpack.c.l.b16 %v3547
  %v3581 = vunpack.c.l.b16 %v3548
  %v3582 = vunpack.c.l.b16 %v3549
  %v3583 = vunpack.c.l.b16 %v3550
  %v3584 = vunpack.c.l.b16 %v3551
  %v3585 = vunpack.c.l.b16 %v3552
  %v3586 = vunpack.c.l.b16 %v3553
  %v3587 = vunpack.c.l.b16 %v3554
  %v3588 = vunpack.c.l.b16 %v3555
  %v3589 = vunpack.c.l.b16 %v3556
  %v3590 = vunpack.c.l.b16 %v3557
  %v3591 = vunpack.c.l.b16 %v3558
  %v3592 = vunpack.c.l.b16 %v3559
  %v3593 = vunpack.c.l.b16 %v3560
  %v3594 = vpack.c.b16 %v3579, %v3578
  %v3595 = vpack.c.b16 %v3581, %v3580
  %v3596 = vpack.c.b16 %v3583, %v3582
  %v3597 = vpack.c.b16 %v3585, %v3584
  %v3598 = vpack.c.b16 %v3587, %v3586
  %v3599 = vpack.c.b16 %v3589, %v3588
  %v3600 = vpack.c.b16 %v3591, %v3590
  %v3601 = vpack.c.b16 %v3593, %v3592
  %3610 = vmatpush.bf16.msra.mxu0 %v3601
  %3611 = vmatpush.bf16.msra.mxu0 %v3600
  %3612 = vmatpush.bf16.msra.mxu0 %v3599
  %3613 = vmatpush.bf16.msra.mxu0 %v3598
  %3614 = vmatpush.bf16.msra.mxu0 %v3597
  %3615 = vmatpush.bf16.msra.mxu0 %v3596
  %3616 = vmatpush.bf16.msra.mxu0 %v3595
  %3617 = vmatpush.bf16.msra.mxu0 %v3594
  %3618 = vmatmul.bf16.gmra.mxu0 %v3561
  %v3619 = vpop.f32.mrf.mxu0
  %v3620 = vadd.f32 0.0, %v3619
  %v3621 = vpop.f32.mrf.mxu0
  %v3622 = vadd.f32 0.0, %v3621
  %3623 = vdwg.mxu0
  %v3624 = vadd.f32 %v3380, %v3620
  %v3625 = vadd.f32 %v3381, %v3622
  %v3626 = vld [vmem:[%s13] sm:$0x1]
  %v3627 = vmul.f32 %v3624, %v3624
  %v3628 = vmul.f32 %v3625, %v3625
  %v3629 = vsel %vm83, %v3627, 0.0
  %3630 = vadd.xlane.f32.xlu0 %v3629
  %v3631 = vpop.xlane.xlu0 %3630
  %v3632 = vsel %vm83, %v3628, 0.0
  %3633 = vadd.xlane.f32.xlu0 %v3632
  %v3634 = vpop.xlane.xlu0 %3633
  %v3635 = vmul.f32 %v3631, %v96
  %v3636 = vmul.f32 %v3634, %v96
  %v3637 = vadd.f32 %v3635, 1e-06
  %v3638 = vadd.f32 %v3636, 1e-06
  %v3639 = vrsqrt.pop %v3637
  %v3640 = vmul.f32 %v3639, %v3637
  %v3641 = vmul.f32 %v3640, %v3639
  %v3642 = vmul.f32 0.5, %v3641
  %v3643 = vsub.f32 1.5, %v3642
  %v3644 = vmul.f32 %v3639, %v3643
  %vm3645 = vweird.f32 %v3637
  %vm3646 = vweird.f32 %v3639
  %vm3647 = vmor %vm3645, %vm3646
  %v3648 = vsel %vm3647, %v3639, %v3644
  %v3649 = vrsqrt.pop %v3638
  %v3650 = vmul.f32 %v3649, %v3638
  %v3651 = vmul.f32 %v3650, %v3649
  %v3652 = vmul.f32 0.5, %v3651
  %v3653 = vsub.f32 1.5, %v3652
  %v3654 = vmul.f32 %v3649, %v3653
  %vm3655 = vweird.f32 %v3638
  %vm3656 = vweird.f32 %v3649
  %vm3657 = vmor %vm3655, %vm3656
  %v3658 = vsel %vm3657, %v3649, %v3654
  %v3659 = vmul.f32 %v3624, %v3648
  %v3660 = vmul.f32 %v3625, %v3658
  %v3662 = vperm.slane %v3626, 0
  %v3664 = vmul.f32 %v3659, %v3662
  %v3665 = vmul.f32 %v3660, %v3662
  %v3666 = vld [vmem:[%s14] sm:$0xf]
  %v3667 = vld [vmem:[%s14 + $0x4] sm:$0xf]
  %v3668 = vld [vmem:[%s14 + $0x8] sm:$0xf]
  %v3669 = vld [vmem:[%s14 + $0xc] sm:$0xf]
  %v3670 = vld [vmem:[%s14 + $0x10] sm:$0xf]
  %v3671 = vld [vmem:[%s14 + $0x14] sm:$0xf]
  %v3672 = vld [vmem:[%s14 + $0x18] sm:$0xf]
  %v3673 = vld [vmem:[%s14 + $0x1c] sm:$0xf]
  %v3674 = vpack.c.bf16 %v3665, %v3664
  %v3683 = vunpack.c.l.b16 %v3666
  %v3684 = vunpack.c.l.b16 %v3667
  %v3685 = vunpack.c.l.b16 %v3668
  %v3686 = vunpack.c.l.b16 %v3669
  %v3687 = vunpack.c.l.b16 %v3670
  %v3688 = vunpack.c.l.b16 %v3671
  %v3689 = vunpack.c.l.b16 %v3672
  %v3690 = vunpack.c.l.b16 %v3673
  %v3691 = vpack.c.b16 %v3684, %v3683
  %v3692 = vpack.c.b16 %v3686, %v3685
  %v3693 = vpack.c.b16 %v3688, %v3687
  %v3694 = vpack.c.b16 %v3690, %v3689
  %v3700 = vsel %vm83, %v3674, 0
  %3702 = vmatpush.bf16.msra.mxu0 0
  %3703 = vmatpush.bf16.msra.mxu0 0
  %3704 = vmatpush.bf16.msra.mxu0 0
  %3705 = vmatpush.bf16.msra.mxu0 0
  %3706 = vmatpush.bf16.msra.mxu0 %v3694
  %3707 = vmatpush.bf16.msra.mxu0 %v3693
  %3708 = vmatpush.bf16.msra.mxu0 %v3692
  %3709 = vmatpush.bf16.msra.mxu0 %v3691
  %3710 = vmatmul.bf16.gmra.mxu0 %v3700
  %v3711 = vpop.f32.mrf.mxu0
  %v3712 = vadd.f32 0.0, %v3711
  %v3713 = vpop.f32.mrf.mxu0
  %v3714 = vadd.f32 0.0, %v3713
  %3715 = vdwg.mxu0
  %3716 = vst [vmem:[%s15] sm:$0xff] %v3712
  %3717 = vst [vmem:[%s15 + $0x8] sm:$0xff] %v3714
  // Predicated region
  $region62: #{decoder_forward.1} parent=0 // pred_check
    _
  $region63: #{decoder_forward.1} parent=0 // pred_check_branch
    %3719 = sbr.rel (0) target = $region65
  $region64: #{decoder_forward.1} parent=0 // pred_region
    _
  $region65: #{decoder_forward.1} parent=0 // pred_fallthru
    _
  // Predicated region
  $region66: #{decoder_forward.1} parent=0 // pred_check
    _
  $region67: #{decoder_forward.1} parent=0 // pred_check_branch
    %3721 = sbr.rel (0) target = $region69
  $region68: #{decoder_forward.1} parent=0 // pred_region
    _
  $region69: #{decoder_forward.1} parent=0 // pred_fallthru
    _

</llo_original>
